<compile_context>
chip_gen: v6e
topology: v6e:2x2x1
jax: 0.10.0
libtpu: 0.0.40
codegen_flags: <defaults>
</compile_context>

<pallas_src>
import functools
import math

import jax
import jax.numpy as jnp
from jax import lax
from jax.experimental import pallas as pl
from jax.experimental.pallas import tpu as pltpu


COMPUTE_DTYPE = jnp.bfloat16    # MXU operand dtype (accumulation is f32 everywhere)


# ---------------------------------------------------------------------------
# VMEM-aware sizing helpers
# ---------------------------------------------------------------------------
@functools.lru_cache(maxsize=None)
def _vmem_limit_bytes():
    """Per-kernel scoped-VMEM limit, derived from the device when possible.

    v5e/v6e have 128 MiB VMEM per TensorCore, v7x only 64 MiB; the scoped
    defaults (16/32/32 MiB) are well below what a big-H recurrence wants, so
    raise the limit explicitly and size blocks against it.
    """
    try:
        cap = int(pltpu.get_tpu_info().vmem_capacity_bytes)
    except Exception:
        cap = 64 * 1024 * 1024                      # conservative (v7x-sized)
    return min(int(cap * 0.8), 100 * 1024 * 1024)


def _pick_chunking(T, B, H, budget_bytes):
    """Pick the per-grid-step time chunk so the recurrence's resident blocks
    (gx block, double-buffered, + h-chunk scratch) stay within ~half of the
    VMEM budget, then pad T up to a multiple of it."""
    bytes_per_step = 4 * B * H * 4 * 2 + B * H * 2   # gx f32 (x2 bufs) + h bf16
    max_chunk = max(1, (budget_bytes // 2) // max(bytes_per_step, 1))
    t_chunk = max(1, min(32, max_chunk, T))
    # Keep t_chunk*B a multiple of 8 when possible so it can double as the
    # hoisted matmul's row tile (sublane rule on the second-minor dim).
    mult = 8 // math.gcd(B, 8)
    if t_chunk >= mult:
        t_chunk -= t_chunk % mult
    t_chunk = max(t_chunk, 1)
    T_pad = ((T + t_chunk - 1) // t_chunk) * t_chunk
    return t_chunk, T_pad


def _const_spec(block_shape, index_map):
    """BlockSpec for operands whose block never changes across the grid
    (W_hh, W_proj, biases): single VMEM buffer instead of the default double
    buffer -- pure VMEM savings (e.g. 8 MiB for W_hh at H=1024)."""
    if hasattr(pl, "Buffered"):
        try:
            return pl.BlockSpec(block_shape, index_map,
                                pipeline_mode=pl.Buffered(buffer_count=1))
        except TypeError:
            pass
    return pl.BlockSpec(block_shape, index_map)


# ---------------------------------------------------------------------------
# Kernel 1: hoisted input->gates matmul, written gate-major (4, N, H).
# ---------------------------------------------------------------------------
def _gate_matmul_kernel(x_ref, w_ref, b_ref, o_ref):
    o_ref[0] = (
        jnp.dot(x_ref[...], w_ref[0], preferred_element_type=jnp.float32)
        + b_ref[0]
    ).astype(o_ref.dtype)


def gate_matmul_bias(x2d, w_gates, bias_gates, row_tile, vmem_limit):
    """(N, K) @ (4, K, H) + (4, 1, H) -> (4, N, H) f32, gate-major directly.

    grid = (N // row_tile, 4): the gate axis is the inner ("arbitrary") axis
    so the x row-block index is unchanged across the 4 gate steps (fetched
    once per row tile); the row axis is "parallel" (megacore shards it)."""
    n, k = x2d.shape
    h = w_gates.shape[2]
    return pl.pallas_call(
        _gate_matmul_kernel,
        out_shape=jax.ShapeDtypeStruct((4, n, h), jnp.float32),
        grid_spec=pltpu.PrefetchScalarGridSpec(
            num_scalar_prefetch=0,
            grid=(n // row_tile, 4),
            in_specs=[
                pl.BlockSpec((row_tile, k), lambda r, g: (r, 0)),
                pl.BlockSpec((1, k, h), lambda r, g: (g, 0, 0)),
                pl.BlockSpec((1, 1, h), lambda r, g: (g, 0, 0)),
            ],
            out_specs=pl.BlockSpec((1, row_tile, h), lambda r, g: (g, r, 0)),
        ),
        compiler_params=pltpu.CompilerParams(
            dimension_semantics=("parallel", "arbitrary"),
            vmem_limit_bytes=vmem_limit),
    )(x2d, w_gates, bias_gates)


# ---------------------------------------------------------------------------
# Kernel 2: recurrent chunk kernel (h/c carried in VMEM scratch across chunks)
# ---------------------------------------------------------------------------
def _lstm_step_loop(gx_ref, whh_ref, h_sc, c_sc, t_chunk, emit, *,
                    fused_gates, unroll):
    # h/c persist in VMEM scratch across time chunks; (re)initialize at the
    # FIRST TIME CHUNK of each batch block (time is grid axis 1).
    @pl.when(pl.program_id(1) == 0)
    def _():
        h_sc[...] = jnp.zeros_like(h_sc)
        c_sc[...] = jnp.zeros_like(c_sc)

    if fused_gates:
        # H % 128 == 0: one (B,H)@(H,4H) MXU pass per step; gate slices are
        # lane-aligned (128-multiple offsets) so no XLU relayout.
        w_all = whh_ref[...]                       # (H, 4H) bf16
        hd = w_all.shape[0]

        def hidden_pre(hb):
            pre = jnp.dot(hb, w_all, preferred_element_type=jnp.float32)
            return (pre[:, 0 * hd:1 * hd], pre[:, 1 * hd:2 * hd],
                    pre[:, 2 * hd:3 * hd], pre[:, 3 * hd:4 * hd])
    else:
        # Small H: per-gate dots; gates come from leading-axis slices.
        w_i, w_f, w_g, w_o = whh_ref[0], whh_ref[1], whh_ref[2], whh_ref[3]

        def hidden_pre(hb):
            return (jnp.dot(hb, w_i, preferred_element_type=jnp.float32),
                    jnp.dot(hb, w_f, preferred_element_type=jnp.float32),
                    jnp.dot(hb, w_g, preferred_element_type=jnp.float32),
                    jnp.dot(hb, w_o, preferred_element_type=jnp.float32))

    def step(t, carry):
        h, c = carry                               # h: bf16 (B,H); c: f32 (B,H)
        p_i, p_f, p_g, p_o = hidden_pre(h)
        i_g = jax.nn.sigmoid(gx_ref[0, t] + p_i)   # gate math stays f32
        f_g = jax.nn.sigmoid(gx_ref[1, t] + p_f)
        g_g = jnp.tanh(gx_ref[2, t] + p_g)
        o_g = jax.nn.sigmoid(gx_ref[3, t] + p_o)
        c_new = f_g * c + i_g * g_g
        h_new = (o_g * jnp.tanh(c_new)).astype(h.dtype)   # bf16 carry
        emit(t, h_new)
        return h_new, c_new

    h, c = lax.fori_loop(0, t_chunk, step, (h_sc[...], c_sc[...]),
                         unroll=unroll)
    h_sc[...] = h
    c_sc[...] = c


def _lstm_chunk_kernel(gx_ref, whh_ref, h_out_ref, h_sc, c_sc, *,
                       t_chunk, fused_gates, unroll):
    def emit(t, h_new):
        h_out_ref[t] = h_new.astype(h_out_ref.dtype)
    _lstm_step_loop(gx_ref, whh_ref, h_sc, c_sc, t_chunk, emit,
                    fused_gates=fused_gates, unroll=unroll)


def _lstm_chunk_proj_kernel(gx_ref, whh_ref, wp_ref, bp_ref, y_ref,
                            h_sc, c_sc, h_chunk, *,
                            t_chunk, fused_gates, unroll):
    # Buffer the chunk's hidden states in VMEM; run the output projection
    # ONCE per chunk (off the per-step serial path) as a single
    # (t_chunk*B, H) @ (H, O) MXU matmul and a single store.
    def emit(t, h_new):
        h_chunk[t] = h_new
    _lstm_step_loop(gx_ref, whh_ref, h_sc, c_sc, t_chunk, emit,
                    fused_gates=fused_gates, unroll=unroll)

    b_blk, hd = h_sc.shape
    o_dim = y_ref.shape[-1]
    hs = h_chunk[...].reshape(t_chunk * b_blk, hd)
    y = jnp.dot(hs, wp_ref[...], preferred_element_type=jnp.float32) + bp_ref[...]
    y_ref[...] = y.reshape(t_chunk, b_blk, o_dim).astype(y_ref.dtype)


def lstm_recurrence(gx, w_hh_arg, *, fused_gates, t_chunk, nb, vmem_limit,
                    w_proj_t=None, b_proj=None):
    """gx: (4, T_pad, B, H) f32 gate-major pre-activations (x part + bias).
    w_hh_arg: (4, H, H) per-gate (H < 128) or (H, 4H) fused (H % 128 == 0).
    Grid = (nb batch blocks, T_pad // t_chunk time chunks); batch is
    "parallel" (both v7x TensorCores when nb == 2), time is "arbitrary" with
    h/c carried in VMEM scratch.  If w_proj_t/b_proj are given (last layer)
    the projection is fused and the kernel returns (T_pad, B, O) f32;
    otherwise (T_pad, B, H) bf16.  Final (h_T, c_T) are discarded (the
    PyTorch module discards them too)."""
    _, T_pad, B, H = gx.shape
    b_blk = B // nb
    grid = (nb, T_pad // t_chunk)
    unroll = min(t_chunk, 8)   # partial unroll: scheduler visibility w/o vreg blowup

    gx_spec = pl.BlockSpec((4, t_chunk, b_blk, H), lambda p, tc: (0, tc, p, 0))
    whh_spec = _const_spec(w_hh_arg.shape, lambda p, tc: (0,) * w_hh_arg.ndim)
    scratch = [pltpu.VMEM((b_blk, H), COMPUTE_DTYPE),   # h (bf16 carry)
               pltpu.VMEM((b_blk, H), jnp.float32)]     # c (f32 carry)
    cparams = pltpu.CompilerParams(
        dimension_semantics=("parallel", "arbitrary"),
        vmem_limit_bytes=vmem_limit)

    if w_proj_t is None:
        return pl.pallas_call(
            functools.partial(_lstm_chunk_kernel, t_chunk=t_chunk,
                              fused_gates=fused_gates, unroll=unroll),
            out_shape=jax.ShapeDtypeStruct((T_pad, B, H), COMPUTE_DTYPE),
            grid_spec=pltpu.PrefetchScalarGridSpec(
                num_scalar_prefetch=0, grid=grid,
                in_specs=[gx_spec, whh_spec],
                out_specs=pl.BlockSpec((t_chunk, b_blk, H),
                                       lambda p, tc: (tc, p, 0)),
                scratch_shapes=scratch),
            compiler_params=cparams,
        )(gx, w_hh_arg)

    o_dim = w_proj_t.shape[1]
    return pl.pallas_call(
        functools.partial(_lstm_chunk_proj_kernel, t_chunk=t_chunk,
                          fused_gates=fused_gates, unroll=unroll),
        out_shape=jax.ShapeDtypeStruct((T_pad, B, o_dim), jnp.float32),
        grid_spec=pltpu.PrefetchScalarGridSpec(
            num_scalar_prefetch=0, grid=grid,
            in_specs=[gx_spec, whh_spec,
                      _const_spec((H, o_dim), lambda p, tc: (0, 0)),
                      _const_spec((1, o_dim), lambda p, tc: (0, 0))],
            out_specs=pl.BlockSpec((t_chunk, b_blk, o_dim),
                                   lambda p, tc: (tc, p, 0)),
            scratch_shapes=scratch + [pltpu.VMEM((t_chunk, b_blk, H),
                                                 COMPUTE_DTYPE)]),
        compiler_params=cparams,
    )(gx, w_hh_arg, w_proj_t, b_proj.reshape(1, o_dim))


# ---------------------------------------------------------------------------
# Full model
# ---------------------------------------------------------------------------
def init_params(key, n_inputs, n_outputs, state_size, n_layers):
    """PyTorch-style U(-1/sqrt(H), 1/sqrt(H)) init."""
    params = {"lstm": [], "proj": None}
    k = 1.0 / jnp.sqrt(jnp.float32(state_size))
    for layer in range(n_layers):
        in_size = n_inputs if layer == 0 else state_size
        key, k1, k2, k3, k4 = jax.random.split(key, 5)
        w_ih = jax.random.uniform(k1, (4 * state_size, in_size), jnp.float32, -k, k)
        w_hh = jax.random.uniform(k2, (4 * state_size, state_size), jnp.float32, -k, k)
        b_ih = jax.random.uniform(k3, (4 * state_size,), jnp.float32, -k, k)
        b_hh = jax.random.uniform(k4, (4 * state_size,), jnp.float32, -k, k)
        params["lstm"].append((w_ih, w_hh, b_ih, b_hh))
    key, k1, k2 = jax.random.split(key, 3)
    w_proj = jax.random.uniform(k1, (n_outputs, state_size), jnp.float32, -k, k)
    b_proj = jax.random.uniform(k2, (n_outputs,), jnp.float32, -k, k)
    params["proj"] = (w_proj, b_proj)
    return params


@functools.partial(jax.jit, static_argnums=(2,))   # n_layers must be static
def lstm_model_forward(data, params, n_layers):
    T, B, _ = data.shape
    H = params["lstm"][0][1].shape[1]              # state_size
    vmem_limit = _vmem_limit_bytes()
    t_chunk, T_pad = _pick_chunking(T, B, H, vmem_limit)
    # v7x dual-TC: batch-parallel leading grid axis when the per-core block
    # still satisfies the (8,128) sublane rule (B/2 must be a multiple of 8).
    nb = 2 if (B % 16 == 0) else 1
    fused_gates = (H % 128 == 0)

    net = data.astype(COMPUTE_DTYPE)               # (T, B, I) bf16 MXU operand
    if T_pad != T:
        # Pad time up to a multiple of t_chunk; the recurrence is causal, so
        # trailing pad steps never affect the first T outputs (sliced below).
        net = jnp.concatenate(
            [net, jnp.zeros((T_pad - T, B, net.shape[-1]), net.dtype)], axis=0)

    # Row tile of the hoisted matmul = one recurrence chunk's rows; it always
    # divides T_pad*B.  Fallback to one block if the sublane rule fails.
    n_rows = T_pad * B
    row_tile = t_chunk * B
    if row_tile % 8 != 0 or n_rows % row_tile != 0:
        row_tile = n_rows

    out = None
    for layer in range(n_layers):
        w_ih, w_hh, b_ih, b_hh = params["lstm"][layer]
        in_size = net.shape[-1]
        # Per-gate transposed input weights (4, I, H) + fused bias (4, 1, H):
        # the hoisted matmul writes gx DIRECTLY gate-major -> no XLA transpose
        # / extra HBM round-trip of the largest intermediate.
        w_ih_g = w_ih.reshape(4, H, in_size).transpose(0, 2, 1).astype(COMPUTE_DTYPE)
        bias_g = (b_ih + b_hh).astype(jnp.float32).reshape(4, 1, H)

        # 1) Hoisted, fully parallel input->gates matmul over all T_pad*B rows.
        gx = gate_matmul_bias(net.reshape(n_rows, in_size), w_ih_g, bias_g,
                              row_tile, vmem_limit)         # (4, N, H) f32
        gx = gx.reshape(4, T_pad, B, H)                      # free reshape

        # Hidden weights: fused (H, 4H) when H % 128 == 0, else per-gate.
        if fused_gates:
            w_hh_arg = w_hh.T.astype(COMPUTE_DTYPE)                          # (H, 4H)
        else:
            w_hh_arg = w_hh.reshape(4, H, H).transpose(0, 2, 1).astype(COMPUTE_DTYPE)

        if layer == n_layers - 1:
            w_proj, b_proj = params["proj"]
            # 2) Last layer: recurrence with the output projection fused in,
            #    applied once per chunk (off the per-step serial path).
            out = lstm_recurrence(
                gx, w_hh_arg, fused_gates=fused_gates, t_chunk=t_chunk,
                nb=nb, vmem_limit=vmem_limit,
                w_proj_t=w_proj.T.astype(COMPUTE_DTYPE),
                b_proj=b_proj.astype(jnp.float32))
        else:
            net = lstm_recurrence(gx, w_hh_arg, fused_gates=fused_gates,
                                  t_chunk=t_chunk, nb=nb,
                                  vmem_limit=vmem_limit)     # (T_pad,B,H) bf16

    return out[:T] if T_pad != T else out


# ---------------------------------------------------------------------------
# Pure-JAX reference with matching numerics (bf16 MXU operands, f32 acc/gates)
# ---------------------------------------------------------------------------
def lstm_model_ref(data, params, n_layers):
    cd = COMPUTE_DTYPE
    net = data.astype(cd)
    for layer in range(n_layers):
        w_ih, w_hh, b_ih, b_hh = params["lstm"][layer]
        H = w_hh.shape[1]
        T, B, _ = net.shape
        gx = (jnp.dot(net.reshape(T * B, -1), w_ih.T.astype(cd),
                      preferred_element_type=jnp.float32)
              + (b_ih + b_hh)).reshape(T, B, 4 * H)
        w_hh_t = w_hh.T.astype(cd)

        def step(carry, gx_t):
            h, c = carry
            gates = gx_t + jnp.dot(h.astype(cd), w_hh_t,
                                   preferred_element_type=jnp.float32)
            i = jax.nn.sigmoid(gates[:, 0 * H:1 * H])
            f = jax.nn.sigmoid(gates[:, 1 * H:2 * H])
            g = jnp.tanh(gates[:, 2 * H:3 * H])
            o = jax.nn.sigmoid(gates[:, 3 * H:4 * H])
            c = f * c + i * g
            h = o * jnp.tanh(c)
            return (h, c), h

        init = (jnp.zeros((B, H), jnp.float32), jnp.zeros((B, H), jnp.float32))
        _, hs = lax.scan(step, init, gx)
        net = hs.astype(cd)
    w_proj, b_proj = params["proj"]
    T, B, H = net.shape
    out = (jnp.dot(net.reshape(T * B, H), w_proj.T.astype(cd),
                   preferred_element_type=jnp.float32) + b_proj)
    return out.reshape(T, B, -1)


if __name__ == "__main__":
    # Small, forward-consistent shapes; data is time-major (T, B, n_inputs).
    T, B = 8, 2
    n_inputs, state_size, n_outputs, n_layers = 4, 32, 8, 2

    key = jax.random.PRNGKey(0)
    key, kd = jax.random.split(key)
    data = jax.random.normal(kd, (T, B, n_inputs), jnp.float32)
    params = init_params(key, n_inputs, n_outputs, state_size, n_layers)

    out = lstm_model_forward(data, params, n_layers)
    out = jax.block_until_ready(out)

    ref = lstm_model_ref(data, params, n_layers)
    assert out.shape == (T, B, n_outputs), out.shape
    err = float(jnp.max(jnp.abs(out.astype(jnp.float32) - ref)))
    assert err < 1e-2, err
    print("KERNEL_OK")
</pallas_src>

<mosaic_0001>
module attributes {stable_mosaic.version = 11 : i64} {
  func.func @_gate_matmul_kernel(%arg0: i32, %arg1: i32, %arg2: memref<16x32xbf16, #tpu.memory_space<vmem>>, %arg3: memref<1x32x32xbf16, #tpu.memory_space<vmem>>, %arg4: memref<1x1x32xf32, #tpu.memory_space<vmem>>, %arg5: memref<1x16x32xf32, #tpu.memory_space<vmem>>) attributes {dimension_semantics = [#tpu.dimension_semantics<parallel>, #tpu.dimension_semantics<arbitrary>], iteration_bounds = array<i64: 1, 4>, scalar_prefetch = 0 : i64, scratch_operands = 0 : i64, tpu.core_type = #tpu.core_type<tc>, window_params = [{transform_indices = @transform_0, window_bounds = array<i64: 16, 32>}, {transform_indices = @transform_1, window_bounds = array<i64: 1, 32, 32>}, {transform_indices = @transform_2, window_bounds = array<i64: 1, 1, 32>}, {transform_indices = @transform_3, window_bounds = array<i64: 1, 16, 32>}]} {
    %c0 = arith.constant 0 : index
    %c0_0 = arith.constant 0 : index
    %0 = vector.load %arg2[%c0, %c0_0] : memref<16x32xbf16, #tpu.memory_space<vmem>>, vector<16x32xbf16>
    %c0_1 = arith.constant 0 : index
    %c0_2 = arith.constant 0 : index
    %c0_3 = arith.constant 0 : index
    %1 = vector.load %arg3[%c0_1, %c0_2, %c0_3] : memref<1x32x32xbf16, #tpu.memory_space<vmem>>, vector<1x32x32xbf16>
    %2 = vector.shape_cast %1 : vector<1x32x32xbf16> to vector<32x32xbf16>
    %cst = arith.constant dense<0.000000e+00> : vector<16x32xf32>
    %3 = tpu.matmul %0, %2, %cst {dimension_numbers = #tpu.dot_dimension_numbers<[1], [0], [0], [1], [0, 0, 1, 1], [], []>} : vector<16x32xbf16>, vector<32x32xbf16>, vector<16x32xf32> -> vector<16x32xf32>
    %c0_4 = arith.constant 0 : index
    %c0_5 = arith.constant 0 : index
    %c0_6 = arith.constant 0 : index
    %4 = vector.load %arg4[%c0_4, %c0_5, %c0_6] : memref<1x1x32xf32, #tpu.memory_space<vmem>>, vector<1x1x32xf32>
    %5 = vector.shape_cast %4 : vector<1x1x32xf32> to vector<1x32xf32>
    %6 = vector.broadcast %5 : vector<1x32xf32> to vector<16x32xf32>
    %7 = arith.addf %3, %6 : vector<16x32xf32>
    %c0_7 = arith.constant 0 : index
    %c0_8 = arith.constant 0 : index
    %c0_9 = arith.constant 0 : index
    %8 = vector.load %arg5[%c0_7, %c0_8, %c0_9] : memref<1x16x32xf32, #tpu.memory_space<vmem>>, vector<1x16x32xf32>
    %9 = vector.shape_cast %8 : vector<1x16x32xf32> to vector<16x32xf32>
    %10 = vector.shape_cast %7 : vector<16x32xf32> to vector<1x16x32xf32>
    tpu.vector_store %arg5[%c0_7, %c0_8, %c0_9], %10 {strides = array<i32>} : memref<1x16x32xf32, #tpu.memory_space<vmem>>, vector<1x16x32xf32>,
    return
  }
  func.func @transform_0(%arg0: i32, %arg1: i32) -> (i32, i32) {
    %c0_i32 = arith.constant 0 : i32
    %c0_i32_0 = arith.constant 0 : i32
    return %arg0, %c0_i32 : i32, i32
  }
  func.func @transform_1(%arg0: i32, %arg1: i32) -> (i32, i32, i32) {
    %c0_i32 = arith.constant 0 : i32
    %c0_i32_0 = arith.constant 0 : i32
    %c0_i32_1 = arith.constant 0 : i32
    return %arg1, %c0_i32, %c0_i32_0 : i32, i32, i32
  }
  func.func @transform_2(%arg0: i32, %arg1: i32) -> (i32, i32, i32) {
    %c0_i32 = arith.constant 0 : i32
    %c0_i32_0 = arith.constant 0 : i32
    %c0_i32_1 = arith.constant 0 : i32
    return %arg1, %c0_i32, %c0_i32_0 : i32, i32, i32
  }
  func.func @transform_3(%arg0: i32, %arg1: i32) -> (i32, i32, i32) {
    %c0_i32 = arith.constant 0 : i32
    %c0_i32_0 = arith.constant 0 : i32
    return %arg1, %arg0, %c0_i32 : i32, i32, i32
  }
}

module attributes {stable_mosaic.version = 11 : i64} {
  func.func @_gate_matmul_kernel(%arg0: i32, %arg1: i32, %arg2: memref<16x4xbf16, #tpu.memory_space<vmem>>, %arg3: memref<1x4x32xbf16, #tpu.memory_space<vmem>>, %arg4: memref<1x1x32xf32, #tpu.memory_space<vmem>>, %arg5: memref<1x16x32xf32, #tpu.memory_space<vmem>>) attributes {dimension_semantics = [#tpu.dimension_semantics<parallel>, #tpu.dimension_semantics<arbitrary>], iteration_bounds = array<i64: 1, 4>, scalar_prefetch = 0 : i64, scratch_operands = 0 : i64, tpu.core_type = #tpu.core_type<tc>, window_params = [{transform_indices = @transform_0, window_bounds = array<i64: 16, 4>}, {transform_indices = @transform_1, window_bounds = array<i64: 1, 4, 32>}, {transform_indices = @transform_2, window_bounds = array<i64: 1, 1, 32>}, {transform_indices = @transform_3, window_bounds = array<i64: 1, 16, 32>}]} {
    %c0 = arith.constant 0 : index
    %c0_0 = arith.constant 0 : index
    %0 = vector.load %arg2[%c0, %c0_0] : memref<16x4xbf16, #tpu.memory_space<vmem>>, vector<16x4xbf16>
    %c0_1 = arith.constant 0 : index
    %c0_2 = arith.constant 0 : index
    %c0_3 = arith.constant 0 : index
    %1 = vector.load %arg3[%c0_1, %c0_2, %c0_3] : memref<1x4x32xbf16, #tpu.memory_space<vmem>>, vector<1x4x32xbf16>
    %2 = vector.shape_cast %1 : vector<1x4x32xbf16> to vector<4x32xbf16>
    %cst = arith.constant dense<0.000000e+00> : vector<16x32xf32>
    %3 = tpu.matmul %0, %2, %cst {dimension_numbers = #tpu.dot_dimension_numbers<[1], [0], [0], [1], [0, 0, 1, 1], [], []>} : vector<16x4xbf16>, vector<4x32xbf16>, vector<16x32xf32> -> vector<16x32xf32>
    %c0_4 = arith.constant 0 : index
    %c0_5 = arith.constant 0 : index
    %c0_6 = arith.constant 0 : index
    %4 = vector.load %arg4[%c0_4, %c0_5, %c0_6] : memref<1x1x32xf32, #tpu.memory_space<vmem>>, vector<1x1x32xf32>
    %5 = vector.shape_cast %4 : vector<1x1x32xf32> to vector<1x32xf32>
    %6 = vector.broadcast %5 : vector<1x32xf32> to vector<16x32xf32>
    %7 = arith.addf %3, %6 : vector<16x32xf32>
    %c0_7 = arith.constant 0 : index
    %c0_8 = arith.constant 0 : index
    %c0_9 = arith.constant 0 : index
    %8 = vector.load %arg5[%c0_7, %c0_8, %c0_9] : memref<1x16x32xf32, #tpu.memory_space<vmem>>, vector<1x16x32xf32>
    %9 = vector.shape_cast %8 : vector<1x16x32xf32> to vector<16x32xf32>
    %10 = vector.shape_cast %7 : vector<16x32xf32> to vector<1x16x32xf32>
    tpu.vector_store %arg5[%c0_7, %c0_8, %c0_9], %10 {strides = array<i32>} : memref<1x16x32xf32, #tpu.memory_space<vmem>>, vector<1x16x32xf32>,
    return
  }
  func.func @transform_0(%arg0: i32, %arg1: i32) -> (i32, i32) {
    %c0_i32 = arith.constant 0 : i32
    %c0_i32_0 = arith.constant 0 : i32
    return %arg0, %c0_i32 : i32, i32
  }
  func.func @transform_1(%arg0: i32, %arg1: i32) -> (i32, i32, i32) {
    %c0_i32 = arith.constant 0 : i32
    %c0_i32_0 = arith.constant 0 : i32
    %c0_i32_1 = arith.constant 0 : i32
    return %arg1, %c0_i32, %c0_i32_0 : i32, i32, i32
  }
  func.func @transform_2(%arg0: i32, %arg1: i32) -> (i32, i32, i32) {
    %c0_i32 = arith.constant 0 : i32
    %c0_i32_0 = arith.constant 0 : i32
    %c0_i32_1 = arith.constant 0 : i32
    return %arg1, %c0_i32, %c0_i32_0 : i32, i32, i32
  }
  func.func @transform_3(%arg0: i32, %arg1: i32) -> (i32, i32, i32) {
    %c0_i32 = arith.constant 0 : i32
    %c0_i32_0 = arith.constant 0 : i32
    return %arg1, %arg0, %c0_i32 : i32, i32, i32
  }
}

module attributes {stable_mosaic.version = 11 : i64} {
  func.func @_lstm_chunk_kernel(%arg0: i32, %arg1: i32, %arg2: memref<4x8x2x32xf32, #tpu.memory_space<vmem>>, %arg3: memref<4x32x32xbf16, #tpu.memory_space<vmem>>, %arg4: memref<8x2x32xbf16, #tpu.memory_space<vmem>>, %arg5: memref<2x32xbf16, #tpu.memory_space<vmem>>, %arg6: memref<2x32xf32, #tpu.memory_space<vmem>>) attributes {dimension_semantics = [#tpu.dimension_semantics<parallel>, #tpu.dimension_semantics<arbitrary>], iteration_bounds = array<i64: 1, 1>, scalar_prefetch = 0 : i64, scratch_operands = 2 : i64, tpu.core_type = #tpu.core_type<tc>, window_params = [{transform_indices = @transform_0, window_bounds = array<i64: 4, 8, 2, 32>}, {pipeline_mode = #tpu.pipeline_mode<synchronous>, transform_indices = @transform_1, window_bounds = array<i64: 4, 32, 32>}, {transform_indices = @transform_2, window_bounds = array<i64: 8, 2, 32>}]} {
    %c0_i32 = arith.constant 0 : i32
    %0 = arith.cmpi eq, %arg1, %c0_i32 : i32
    %1 = arith.extui %0 : i1 to i32
    %c0_i32_0 = arith.constant 0 : i32
    %2 = arith.cmpi ne, %1, %c0_i32_0 : i32
    scf.if %2 {
      %cst_185 = arith.constant 0.000000e+00 : bf16
      %383 = vector.broadcast %cst_185 : bf16 to vector<2x32xbf16>
      %c0_186 = arith.constant 0 : index
      %c0_187 = arith.constant 0 : index
      %384 = vector.load %arg5[%c0_186, %c0_187] : memref<2x32xbf16, #tpu.memory_space<vmem>>, vector<2x32xbf16>
      tpu.vector_store %arg5[%c0_186, %c0_187], %383 {strides = array<i32>} : memref<2x32xbf16, #tpu.memory_space<vmem>>, vector<2x32xbf16>,
      %cst_188 = arith.constant 0.000000e+00 : f32
      %385 = vector.broadcast %cst_188 : f32 to vector<2x32xf32>
      %c0_189 = arith.constant 0 : index
      %c0_190 = arith.constant 0 : index
      %386 = vector.load %arg6[%c0_189, %c0_190] : memref<2x32xf32, #tpu.memory_space<vmem>>, vector<2x32xf32>
      tpu.vector_store %arg6[%c0_189, %c0_190], %385 {strides = array<i32>} : memref<2x32xf32, #tpu.memory_space<vmem>>, vector<2x32xf32>,
    } else {
    }
    %c0 = arith.constant 0 : index
    %c0_1 = arith.constant 0 : index
    %c0_2 = arith.constant 0 : index
    %3 = vector.load %arg3[%c0, %c0_1, %c0_2] : memref<4x32x32xbf16, #tpu.memory_space<vmem>>, vector<1x32x32xbf16>
    %4 = vector.shape_cast %3 : vector<1x32x32xbf16> to vector<32x32xbf16>
    %c1 = arith.constant 1 : index
    %c0_3 = arith.constant 0 : index
    %c0_4 = arith.constant 0 : index
    %5 = vector.load %arg3[%c1, %c0_3, %c0_4] : memref<4x32x32xbf16, #tpu.memory_space<vmem>>, vector<1x32x32xbf16>
    %6 = vector.shape_cast %5 : vector<1x32x32xbf16> to vector<32x32xbf16>
    %c2 = arith.constant 2 : index
    %c0_5 = arith.constant 0 : index
    %c0_6 = arith.constant 0 : index
    %7 = vector.load %arg3[%c2, %c0_5, %c0_6] : memref<4x32x32xbf16, #tpu.memory_space<vmem>>, vector<1x32x32xbf16>
    %8 = vector.shape_cast %7 : vector<1x32x32xbf16> to vector<32x32xbf16>
    %c3 = arith.constant 3 : index
    %c0_7 = arith.constant 0 : index
    %c0_8 = arith.constant 0 : index
    %9 = vector.load %arg3[%c3, %c0_7, %c0_8] : memref<4x32x32xbf16, #tpu.memory_space<vmem>>, vector<1x32x32xbf16>
    %10 = vector.shape_cast %9 : vector<1x32x32xbf16> to vector<32x32xbf16>
    %c0_9 = arith.constant 0 : index
    %c0_10 = arith.constant 0 : index
    %11 = vector.load %arg5[%c0_9, %c0_10] : memref<2x32xbf16, #tpu.memory_space<vmem>>, vector<2x32xbf16>
    %c0_11 = arith.constant 0 : index
    %c0_12 = arith.constant 0 : index
    %12 = vector.load %arg6[%c0_11, %c0_12] : memref<2x32xf32, #tpu.memory_space<vmem>>, vector<2x32xf32>
    %c0_i32_13 = arith.constant 0 : i32
    %cst = arith.constant dense<0.000000e+00> : vector<2x32xf32>
    %13 = tpu.matmul %11, %4, %cst {dimension_numbers = #tpu.dot_dimension_numbers<[1], [0], [0], [1], [0, 0, 1, 1], [], []>} : vector<2x32xbf16>, vector<32x32xbf16>, vector<2x32xf32> -> vector<2x32xf32>
    %cst_14 = arith.constant dense<0.000000e+00> : vector<2x32xf32>
    %14 = tpu.matmul %11, %6, %cst_14 {dimension_numbers = #tpu.dot_dimension_numbers<[1], [0], [0], [1], [0, 0, 1, 1], [], []>} : vector<2x32xbf16>, vector<32x32xbf16>, vector<2x32xf32> -> vector<2x32xf32>
    %cst_15 = arith.constant dense<0.000000e+00> : vector<2x32xf32>
    %15 = tpu.matmul %11, %8, %cst_15 {dimension_numbers = #tpu.dot_dimension_numbers<[1], [0], [0], [1], [0, 0, 1, 1], [], []>} : vector<2x32xbf16>, vector<32x32xbf16>, vector<2x32xf32> -> vector<2x32xf32>
    %cst_16 = arith.constant dense<0.000000e+00> : vector<2x32xf32>
    %16 = tpu.matmul %11, %10, %cst_16 {dimension_numbers = #tpu.dot_dimension_numbers<[1], [0], [0], [1], [0, 0, 1, 1], [], []>} : vector<2x32xbf16>, vector<32x32xbf16>, vector<2x32xf32> -> vector<2x32xf32>
    %c0_17 = arith.constant 0 : index
    %17 = arith.index_cast %c0_i32_13 : i32 to index
    %c0_18 = arith.constant 0 : index
    %c0_19 = arith.constant 0 : index
    %18 = vector.load %arg2[%c0_17, %17, %c0_18, %c0_19] : memref<4x8x2x32xf32, #tpu.memory_space<vmem>>, vector<1x1x2x32xf32>
    %19 = vector.shape_cast %18 : vector<1x1x2x32xf32> to vector<2x32xf32>
    %20 = arith.addf %19, %13 : vector<2x32xf32>
    %21 = arith.negf %20 : vector<2x32xf32>
    %22 = math.exp %21 : vector<2x32xf32>
    %cst_20 = arith.constant 1.000000e+00 : f32
    %23 = vector.broadcast %cst_20 : f32 to vector<2x32xf32>
    %24 = arith.addf %23, %22 : vector<2x32xf32>
    %25 = arith.divf %23, %24 : vector<2x32xf32>
    %c1_21 = arith.constant 1 : index
    %26 = arith.index_cast %c0_i32_13 : i32 to index
    %c0_22 = arith.constant 0 : index
    %c0_23 = arith.constant 0 : index
    %27 = vector.load %arg2[%c1_21, %26, %c0_22, %c0_23] : memref<4x8x2x32xf32, #tpu.memory_space<vmem>>, vector<1x1x2x32xf32>
    %28 = vector.shape_cast %27 : vector<1x1x2x32xf32> to vector<2x32xf32>
    %29 = arith.addf %28, %14 : vector<2x32xf32>
    %30 = arith.negf %29 : vector<2x32xf32>
    %31 = math.exp %30 : vector<2x32xf32>
    %cst_24 = arith.constant 1.000000e+00 : f32
    %32 = vector.broadcast %cst_24 : f32 to vector<2x32xf32>
    %33 = arith.addf %32, %31 : vector<2x32xf32>
    %34 = arith.divf %32, %33 : vector<2x32xf32>
    %c2_25 = arith.constant 2 : index
    %35 = arith.index_cast %c0_i32_13 : i32 to index
    %c0_26 = arith.constant 0 : index
    %c0_27 = arith.constant 0 : index
    %36 = vector.load %arg2[%c2_25, %35, %c0_26, %c0_27] : memref<4x8x2x32xf32, #tpu.memory_space<vmem>>, vector<1x1x2x32xf32>
    %37 = vector.shape_cast %36 : vector<1x1x2x32xf32> to vector<2x32xf32>
    %38 = arith.addf %37, %15 : vector<2x32xf32>
    %39 = math.tanh %38 : vector<2x32xf32>
    %c3_28 = arith.constant 3 : index
    %40 = arith.index_cast %c0_i32_13 : i32 to index
    %c0_29 = arith.constant 0 : index
    %c0_30 = arith.constant 0 : index
    %41 = vector.load %arg2[%c3_28, %40, %c0_29, %c0_30] : memref<4x8x2x32xf32, #tpu.memory_space<vmem>>, vector<1x1x2x32xf32>
    %42 = vector.shape_cast %41 : vector<1x1x2x32xf32> to vector<2x32xf32>
    %43 = arith.addf %42, %16 : vector<2x32xf32>
    %44 = arith.negf %43 : vector<2x32xf32>
    %45 = math.exp %44 : vector<2x32xf32>
    %cst_31 = arith.constant 1.000000e+00 : f32
    %46 = vector.broadcast %cst_31 : f32 to vector<2x32xf32>
    %47 = arith.addf %46, %45 : vector<2x32xf32>
    %48 = arith.divf %46, %47 : vector<2x32xf32>
    %49 = arith.mulf %34, %12 : vector<2x32xf32>
    %50 = arith.mulf %25, %39 : vector<2x32xf32>
    %51 = arith.addf %49, %50 : vector<2x32xf32>
    %52 = math.tanh %51 : vector<2x32xf32>
    %53 = arith.mulf %48, %52 : vector<2x32xf32>
    %54 = arith.truncf %53 : vector<2x32xf32> to vector<2x32xbf16>
    %55 = arith.index_cast %c0_i32_13 : i32 to index
    %c0_32 = arith.constant 0 : index
    %c0_33 = arith.constant 0 : index
    %56 = vector.load %arg4[%55, %c0_32, %c0_33] : memref<8x2x32xbf16, #tpu.memory_space<vmem>>, vector<1x2x32xbf16>
    %57 = vector.shape_cast %56 : vector<1x2x32xbf16> to vector<2x32xbf16>
    %58 = vector.shape_cast %54 : vector<2x32xbf16> to vector<1x2x32xbf16>
    tpu.vector_store %arg4[%55, %c0_32, %c0_33], %58 {strides = array<i32>} : memref<8x2x32xbf16, #tpu.memory_space<vmem>>, vector<1x2x32xbf16>,
    %c1_i32 = arith.constant 1 : i32
    %cst_34 = arith.constant dense<0.000000e+00> : vector<2x32xf32>
    %59 = tpu.matmul %54, %4, %cst_34 {dimension_numbers = #tpu.dot_dimension_numbers<[1], [0], [0], [1], [0, 0, 1, 1], [], []>} : vector<2x32xbf16>, vector<32x32xbf16>, vector<2x32xf32> -> vector<2x32xf32>
    %cst_35 = arith.constant dense<0.000000e+00> : vector<2x32xf32>
    %60 = tpu.matmul %54, %6, %cst_35 {dimension_numbers = #tpu.dot_dimension_numbers<[1], [0], [0], [1], [0, 0, 1, 1], [], []>} : vector<2x32xbf16>, vector<32x32xbf16>, vector<2x32xf32> -> vector<2x32xf32>
    %cst_36 = arith.constant dense<0.000000e+00> : vector<2x32xf32>
    %61 = tpu.matmul %54, %8, %cst_36 {dimension_numbers = #tpu.dot_dimension_numbers<[1], [0], [0], [1], [0, 0, 1, 1], [], []>} : vector<2x32xbf16>, vector<32x32xbf16>, vector<2x32xf32> -> vector<2x32xf32>
    %cst_37 = arith.constant dense<0.000000e+00> : vector<2x32xf32>
    %62 = tpu.matmul %54, %10, %cst_37 {dimension_numbers = #tpu.dot_dimension_numbers<[1], [0], [0], [1], [0, 0, 1, 1], [], []>} : vector<2x32xbf16>, vector<32x32xbf16>, vector<2x32xf32> -> vector<2x32xf32>
    %c0_38 = arith.constant 0 : index
    %63 = arith.index_cast %c1_i32 : i32 to index
    %c0_39 = arith.constant 0 : index
    %c0_40 = arith.constant 0 : index
    %64 = vector.load %arg2[%c0_38, %63, %c0_39, %c0_40] : memref<4x8x2x32xf32, #tpu.memory_space<vmem>>, vector<1x1x2x32xf32>
    %65 = vector.shape_cast %64 : vector<1x1x2x32xf32> to vector<2x32xf32>
    %66 = arith.addf %65, %59 : vector<2x32xf32>
    %67 = arith.negf %66 : vector<2x32xf32>
    %68 = math.exp %67 : vector<2x32xf32>
    %cst_41 = arith.constant 1.000000e+00 : f32
    %69 = vector.broadcast %cst_41 : f32 to vector<2x32xf32>
    %70 = arith.addf %69, %68 : vector<2x32xf32>
    %71 = arith.divf %69, %70 : vector<2x32xf32>
    %c1_42 = arith.constant 1 : index
    %72 = arith.index_cast %c1_i32 : i32 to index
    %c0_43 = arith.constant 0 : index
    %c0_44 = arith.constant 0 : index
    %73 = vector.load %arg2[%c1_42, %72, %c0_43, %c0_44] : memref<4x8x2x32xf32, #tpu.memory_space<vmem>>, vector<1x1x2x32xf32>
    %74 = vector.shape_cast %73 : vector<1x1x2x32xf32> to vector<2x32xf32>
    %75 = arith.addf %74, %60 : vector<2x32xf32>
    %76 = arith.negf %75 : vector<2x32xf32>
    %77 = math.exp %76 : vector<2x32xf32>
    %cst_45 = arith.constant 1.000000e+00 : f32
    %78 = vector.broadcast %cst_45 : f32 to vector<2x32xf32>
    %79 = arith.addf %78, %77 : vector<2x32xf32>
    %80 = arith.divf %78, %79 : vector<2x32xf32>
    %c2_46 = arith.constant 2 : index
    %81 = arith.index_cast %c1_i32 : i32 to index
    %c0_47 = arith.constant 0 : index
    %c0_48 = arith.constant 0 : index
    %82 = vector.load %arg2[%c2_46, %81, %c0_47, %c0_48] : memref<4x8x2x32xf32, #tpu.memory_space<vmem>>, vector<1x1x2x32xf32>
    %83 = vector.shape_cast %82 : vector<1x1x2x32xf32> to vector<2x32xf32>
    %84 = arith.addf %83, %61 : vector<2x32xf32>
    %85 = math.tanh %84 : vector<2x32xf32>
    %c3_49 = arith.constant 3 : index
    %86 = arith.index_cast %c1_i32 : i32 to index
    %c0_50 = arith.constant 0 : index
    %c0_51 = arith.constant 0 : index
    %87 = vector.load %arg2[%c3_49, %86, %c0_50, %c0_51] : memref<4x8x2x32xf32, #tpu.memory_space<vmem>>, vector<1x1x2x32xf32>
    %88 = vector.shape_cast %87 : vector<1x1x2x32xf32> to vector<2x32xf32>
    %89 = arith.addf %88, %62 : vector<2x32xf32>
    %90 = arith.negf %89 : vector<2x32xf32>
    %91 = math.exp %90 : vector<2x32xf32>
    %cst_52 = arith.constant 1.000000e+00 : f32
    %92 = vector.broadcast %cst_52 : f32 to vector<2x32xf32>
    %93 = arith.addf %92, %91 : vector<2x32xf32>
    %94 = arith.divf %92, %93 : vector<2x32xf32>
    %95 = arith.mulf %80, %51 : vector<2x32xf32>
    %96 = arith.mulf %71, %85 : vector<2x32xf32>
    %97 = arith.addf %95, %96 : vector<2x32xf32>
    %98 = math.tanh %97 : vector<2x32xf32>
    %99 = arith.mulf %94, %98 : vector<2x32xf32>
    %100 = arith.truncf %99 : vector<2x32xf32> to vector<2x32xbf16>
    %101 = arith.index_cast %c1_i32 : i32 to index
    %c0_53 = arith.constant 0 : index
    %c0_54 = arith.constant 0 : index
    %102 = vector.load %arg4[%101, %c0_53, %c0_54] : memref<8x2x32xbf16, #tpu.memory_space<vmem>>, vector<1x2x32xbf16>
    %103 = vector.shape_cast %102 : vector<1x2x32xbf16> to vector<2x32xbf16>
    %104 = vector.shape_cast %100 : vector<2x32xbf16> to vector<1x2x32xbf16>
    tpu.vector_store %arg4[%101, %c0_53, %c0_54], %104 {strides = array<i32>} : memref<8x2x32xbf16, #tpu.memory_space<vmem>>, vector<1x2x32xbf16>,
    %c2_i32 = arith.constant 2 : i32
    %cst_55 = arith.constant dense<0.000000e+00> : vector<2x32xf32>
    %105 = tpu.matmul %100, %4, %cst_55 {dimension_numbers = #tpu.dot_dimension_numbers<[1], [0], [0], [1], [0, 0, 1, 1], [], []>} : vector<2x32xbf16>, vector<32x32xbf16>, vector<2x32xf32> -> vector<2x32xf32>
    %cst_56 = arith.constant dense<0.000000e+00> : vector<2x32xf32>
    %106 = tpu.matmul %100, %6, %cst_56 {dimension_numbers = #tpu.dot_dimension_numbers<[1], [0], [0], [1], [0, 0, 1, 1], [], []>} : vector<2x32xbf16>, vector<32x32xbf16>, vector<2x32xf32> -> vector<2x32xf32>
    %cst_57 = arith.constant dense<0.000000e+00> : vector<2x32xf32>
    %107 = tpu.matmul %100, %8, %cst_57 {dimension_numbers = #tpu.dot_dimension_numbers<[1], [0], [0], [1], [0, 0, 1, 1], [], []>} : vector<2x32xbf16>, vector<32x32xbf16>, vector<2x32xf32> -> vector<2x32xf32>
    %cst_58 = arith.constant dense<0.000000e+00> : vector<2x32xf32>
    %108 = tpu.matmul %100, %10, %cst_58 {dimension_numbers = #tpu.dot_dimension_numbers<[1], [0], [0], [1], [0, 0, 1, 1], [], []>} : vector<2x32xbf16>, vector<32x32xbf16>, vector<2x32xf32> -> vector<2x32xf32>
    %c0_59 = arith.constant 0 : index
    %109 = arith.index_cast %c2_i32 : i32 to index
    %c0_60 = arith.constant 0 : index
    %c0_61 = arith.constant 0 : index
    %110 = vector.load %arg2[%c0_59, %109, %c0_60, %c0_61] : memref<4x8x2x32xf32, #tpu.memory_space<vmem>>, vector<1x1x2x32xf32>
    %111 = vector.shape_cast %110 : vector<1x1x2x32xf32> to vector<2x32xf32>
    %112 = arith.addf %111, %105 : vector<2x32xf32>
    %113 = arith.negf %112 : vector<2x32xf32>
    %114 = math.exp %113 : vector<2x32xf32>
    %cst_62 = arith.constant 1.000000e+00 : f32
    %115 = vector.broadcast %cst_62 : f32 to vector<2x32xf32>
    %116 = arith.addf %115, %114 : vector<2x32xf32>
    %117 = arith.divf %115, %116 : vector<2x32xf32>
    %c1_63 = arith.constant 1 : index
    %118 = arith.index_cast %c2_i32 : i32 to index
    %c0_64 = arith.constant 0 : index
    %c0_65 = arith.constant 0 : index
    %119 = vector.load %arg2[%c1_63, %118, %c0_64, %c0_65] : memref<4x8x2x32xf32, #tpu.memory_space<vmem>>, vector<1x1x2x32xf32>
    %120 = vector.shape_cast %119 : vector<1x1x2x32xf32> to vector<2x32xf32>
    %121 = arith.addf %120, %106 : vector<2x32xf32>
    %122 = arith.negf %121 : vector<2x32xf32>
    %123 = math.exp %122 : vector<2x32xf32>
    %cst_66 = arith.constant 1.000000e+00 : f32
    %124 = vector.broadcast %cst_66 : f32 to vector<2x32xf32>
    %125 = arith.addf %124, %123 : vector<2x32xf32>
    %126 = arith.divf %124, %125 : vector<2x32xf32>
    %c2_67 = arith.constant 2 : index
    %127 = arith.index_cast %c2_i32 : i32 to index
    %c0_68 = arith.constant 0 : index
    %c0_69 = arith.constant 0 : index
    %128 = vector.load %arg2[%c2_67, %127, %c0_68, %c0_69] : memref<4x8x2x32xf32, #tpu.memory_space<vmem>>, vector<1x1x2x32xf32>
    %129 = vector.shape_cast %128 : vector<1x1x2x32xf32> to vector<2x32xf32>
    %130 = arith.addf %129, %107 : vector<2x32xf32>
    %131 = math.tanh %130 : vector<2x32xf32>
    %c3_70 = arith.constant 3 : index
    %132 = arith.index_cast %c2_i32 : i32 to index
    %c0_71 = arith.constant 0 : index
    %c0_72 = arith.constant 0 : index
    %133 = vector.load %arg2[%c3_70, %132, %c0_71, %c0_72] : memref<4x8x2x32xf32, #tpu.memory_space<vmem>>, vector<1x1x2x32xf32>
    %134 = vector.shape_cast %133 : vector<1x1x2x32xf32> to vector<2x32xf32>
    %135 = arith.addf %134, %108 : vector<2x32xf32>
    %136 = arith.negf %135 : vector<2x32xf32>
    %137 = math.exp %136 : vector<2x32xf32>
    %cst_73 = arith.constant 1.000000e+00 : f32
    %138 = vector.broadcast %cst_73 : f32 to vector<2x32xf32>
    %139 = arith.addf %138, %137 : vector<2x32xf32>
    %140 = arith.divf %138, %139 : vector<2x32xf32>
    %141 = arith.mulf %126, %97 : vector<2x32xf32>
    %142 = arith.mulf %117, %131 : vector<2x32xf32>
    %143 = arith.addf %141, %142 : vector<2x32xf32>
    %144 = math.tanh %143 : vector<2x32xf32>
    %145 = arith.mulf %140, %144 : vector<2x32xf32>
    %146 = arith.truncf %145 : vector<2x32xf32> to vector<2x32xbf16>
    %147 = arith.index_cast %c2_i32 : i32 to index
    %c0_74 = arith.constant 0 : index
    %c0_75 = arith.constant 0 : index
    %148 = vector.load %arg4[%147, %c0_74, %c0_75] : memref<8x2x32xbf16, #tpu.memory_space<vmem>>, vector<1x2x32xbf16>
    %149 = vector.shape_cast %148 : vector<1x2x32xbf16> to vector<2x32xbf16>
    %150 = vector.shape_cast %146 : vector<2x32xbf16> to vector<1x2x32xbf16>
    tpu.vector_store %arg4[%147, %c0_74, %c0_75], %150 {strides = array<i32>} : memref<8x2x32xbf16, #tpu.memory_space<vmem>>, vector<1x2x32xbf16>,
    %c3_i32 = arith.constant 3 : i32
    %cst_76 = arith.constant dense<0.000000e+00> : vector<2x32xf32>
    %151 = tpu.matmul %146, %4, %cst_76 {dimension_numbers = #tpu.dot_dimension_numbers<[1], [0], [0], [1], [0, 0, 1, 1], [], []>} : vector<2x32xbf16>, vector<32x32xbf16>, vector<2x32xf32> -> vector<2x32xf32>
    %cst_77 = arith.constant dense<0.000000e+00> : vector<2x32xf32>
    %152 = tpu.matmul %146, %6, %cst_77 {dimension_numbers = #tpu.dot_dimension_numbers<[1], [0], [0], [1], [0, 0, 1, 1], [], []>} : vector<2x32xbf16>, vector<32x32xbf16>, vector<2x32xf32> -> vector<2x32xf32>
    %cst_78 = arith.constant dense<0.000000e+00> : vector<2x32xf32>
    %153 = tpu.matmul %146, %8, %cst_78 {dimension_numbers = #tpu.dot_dimension_numbers<[1], [0], [0], [1], [0, 0, 1, 1], [], []>} : vector<2x32xbf16>, vector<32x32xbf16>, vector<2x32xf32> -> vector<2x32xf32>
    %cst_79 = arith.constant dense<0.000000e+00> : vector<2x32xf32>
    %154 = tpu.matmul %146, %10, %cst_79 {dimension_numbers = #tpu.dot_dimension_numbers<[1], [0], [0], [1], [0, 0, 1, 1], [], []>} : vector<2x32xbf16>, vector<32x32xbf16>, vector<2x32xf32> -> vector<2x32xf32>
    %c0_80 = arith.constant 0 : index
    %155 = arith.index_cast %c3_i32 : i32 to index
    %c0_81 = arith.constant 0 : index
    %c0_82 = arith.constant 0 : index
    %156 = vector.load %arg2[%c0_80, %155, %c0_81, %c0_82] : memref<4x8x2x32xf32, #tpu.memory_space<vmem>>, vector<1x1x2x32xf32>
    %157 = vector.shape_cast %156 : vector<1x1x2x32xf32> to vector<2x32xf32>
    %158 = arith.addf %157, %151 : vector<2x32xf32>
    %159 = arith.negf %158 : vector<2x32xf32>
    %160 = math.exp %159 : vector<2x32xf32>
    %cst_83 = arith.constant 1.000000e+00 : f32
    %161 = vector.broadcast %cst_83 : f32 to vector<2x32xf32>
    %162 = arith.addf %161, %160 : vector<2x32xf32>
    %163 = arith.divf %161, %162 : vector<2x32xf32>
    %c1_84 = arith.constant 1 : index
    %164 = arith.index_cast %c3_i32 : i32 to index
    %c0_85 = arith.constant 0 : index
    %c0_86 = arith.constant 0 : index
    %165 = vector.load %arg2[%c1_84, %164, %c0_85, %c0_86] : memref<4x8x2x32xf32, #tpu.memory_space<vmem>>, vector<1x1x2x32xf32>
    %166 = vector.shape_cast %165 : vector<1x1x2x32xf32> to vector<2x32xf32>
    %167 = arith.addf %166, %152 : vector<2x32xf32>
    %168 = arith.negf %167 : vector<2x32xf32>
    %169 = math.exp %168 : vector<2x32xf32>
    %cst_87 = arith.constant 1.000000e+00 : f32
    %170 = vector.broadcast %cst_87 : f32 to vector<2x32xf32>
    %171 = arith.addf %170, %169 : vector<2x32xf32>
    %172 = arith.divf %170, %171 : vector<2x32xf32>
    %c2_88 = arith.constant 2 : index
    %173 = arith.index_cast %c3_i32 : i32 to index
    %c0_89 = arith.constant 0 : index
    %c0_90 = arith.constant 0 : index
    %174 = vector.load %arg2[%c2_88, %173, %c0_89, %c0_90] : memref<4x8x2x32xf32, #tpu.memory_space<vmem>>, vector<1x1x2x32xf32>
    %175 = vector.shape_cast %174 : vector<1x1x2x32xf32> to vector<2x32xf32>
    %176 = arith.addf %175, %153 : vector<2x32xf32>
    %177 = math.tanh %176 : vector<2x32xf32>
    %c3_91 = arith.constant 3 : index
    %178 = arith.index_cast %c3_i32 : i32 to index
    %c0_92 = arith.constant 0 : index
    %c0_93 = arith.constant 0 : index
    %179 = vector.load %arg2[%c3_91, %178, %c0_92, %c0_93] : memref<4x8x2x32xf32, #tpu.memory_space<vmem>>, vector<1x1x2x32xf32>
    %180 = vector.shape_cast %179 : vector<1x1x2x32xf32> to vector<2x32xf32>
    %181 = arith.addf %180, %154 : vector<2x32xf32>
    %182 = arith.negf %181 : vector<2x32xf32>
    %183 = math.exp %182 : vector<2x32xf32>
    %cst_94 = arith.constant 1.000000e+00 : f32
    %184 = vector.broadcast %cst_94 : f32 to vector<2x32xf32>
    %185 = arith.addf %184, %183 : vector<2x32xf32>
    %186 = arith.divf %184, %185 : vector<2x32xf32>
    %187 = arith.mulf %172, %143 : vector<2x32xf32>
    %188 = arith.mulf %163, %177 : vector<2x32xf32>
    %189 = arith.addf %187, %188 : vector<2x32xf32>
    %190 = math.tanh %189 : vector<2x32xf32>
    %191 = arith.mulf %186, %190 : vector<2x32xf32>
    %192 = arith.truncf %191 : vector<2x32xf32> to vector<2x32xbf16>
    %193 = arith.index_cast %c3_i32 : i32 to index
    %c0_95 = arith.constant 0 : index
    %c0_96 = arith.constant 0 : index
    %194 = vector.load %arg4[%193, %c0_95, %c0_96] : memref<8x2x32xbf16, #tpu.memory_space<vmem>>, vector<1x2x32xbf16>
    %195 = vector.shape_cast %194 : vector<1x2x32xbf16> to vector<2x32xbf16>
    %196 = vector.shape_cast %192 : vector<2x32xbf16> to vector<1x2x32xbf16>
    tpu.vector_store %arg4[%193, %c0_95, %c0_96], %196 {strides = array<i32>} : memref<8x2x32xbf16, #tpu.memory_space<vmem>>, vector<1x2x32xbf16>,
    %c4_i32 = arith.constant 4 : i32
    %cst_97 = arith.constant dense<0.000000e+00> : vector<2x32xf32>
    %197 = tpu.matmul %192, %4, %cst_97 {dimension_numbers = #tpu.dot_dimension_numbers<[1], [0], [0], [1], [0, 0, 1, 1], [], []>} : vector<2x32xbf16>, vector<32x32xbf16>, vector<2x32xf32> -> vector<2x32xf32>
    %cst_98 = arith.constant dense<0.000000e+00> : vector<2x32xf32>
    %198 = tpu.matmul %192, %6, %cst_98 {dimension_numbers = #tpu.dot_dimension_numbers<[1], [0], [0], [1], [0, 0, 1, 1], [], []>} : vector<2x32xbf16>, vector<32x32xbf16>, vector<2x32xf32> -> vector<2x32xf32>
    %cst_99 = arith.constant dense<0.000000e+00> : vector<2x32xf32>
    %199 = tpu.matmul %192, %8, %cst_99 {dimension_numbers = #tpu.dot_dimension_numbers<[1], [0], [0], [1], [0, 0, 1, 1], [], []>} : vector<2x32xbf16>, vector<32x32xbf16>, vector<2x32xf32> -> vector<2x32xf32>
    %cst_100 = arith.constant dense<0.000000e+00> : vector<2x32xf32>
    %200 = tpu.matmul %192, %10, %cst_100 {dimension_numbers = #tpu.dot_dimension_numbers<[1], [0], [0], [1], [0, 0, 1, 1], [], []>} : vector<2x32xbf16>, vector<32x32xbf16>, vector<2x32xf32> -> vector<2x32xf32>
    %c0_101 = arith.constant 0 : index
    %201 = arith.index_cast %c4_i32 : i32 to index
    %c0_102 = arith.constant 0 : index
    %c0_103 = arith.constant 0 : index
    %202 = vector.load %arg2[%c0_101, %201, %c0_102, %c0_103] : memref<4x8x2x32xf32, #tpu.memory_space<vmem>>, vector<1x1x2x32xf32>
    %203 = vector.shape_cast %202 : vector<1x1x2x32xf32> to vector<2x32xf32>
    %204 = arith.addf %203, %197 : vector<2x32xf32>
    %205 = arith.negf %204 : vector<2x32xf32>
    %206 = math.exp %205 : vector<2x32xf32>
    %cst_104 = arith.constant 1.000000e+00 : f32
    %207 = vector.broadcast %cst_104 : f32 to vector<2x32xf32>
    %208 = arith.addf %207, %206 : vector<2x32xf32>
    %209 = arith.divf %207, %208 : vector<2x32xf32>
    %c1_105 = arith.constant 1 : index
    %210 = arith.index_cast %c4_i32 : i32 to index
    %c0_106 = arith.constant 0 : index
    %c0_107 = arith.constant 0 : index
    %211 = vector.load %arg2[%c1_105, %210, %c0_106, %c0_107] : memref<4x8x2x32xf32, #tpu.memory_space<vmem>>, vector<1x1x2x32xf32>
    %212 = vector.shape_cast %211 : vector<1x1x2x32xf32> to vector<2x32xf32>
    %213 = arith.addf %212, %198 : vector<2x32xf32>
    %214 = arith.negf %213 : vector<2x32xf32>
    %215 = math.exp %214 : vector<2x32xf32>
    %cst_108 = arith.constant 1.000000e+00 : f32
    %216 = vector.broadcast %cst_108 : f32 to vector<2x32xf32>
    %217 = arith.addf %216, %215 : vector<2x32xf32>
    %218 = arith.divf %216, %217 : vector<2x32xf32>
    %c2_109 = arith.constant 2 : index
    %219 = arith.index_cast %c4_i32 : i32 to index
    %c0_110 = arith.constant 0 : index
    %c0_111 = arith.constant 0 : index
    %220 = vector.load %arg2[%c2_109, %219, %c0_110, %c0_111] : memref<4x8x2x32xf32, #tpu.memory_space<vmem>>, vector<1x1x2x32xf32>
    %221 = vector.shape_cast %220 : vector<1x1x2x32xf32> to vector<2x32xf32>
    %222 = arith.addf %221, %199 : vector<2x32xf32>
    %223 = math.tanh %222 : vector<2x32xf32>
    %c3_112 = arith.constant 3 : index
    %224 = arith.index_cast %c4_i32 : i32 to index
    %c0_113 = arith.constant 0 : index
    %c0_114 = arith.constant 0 : index
    %225 = vector.load %arg2[%c3_112, %224, %c0_113, %c0_114] : memref<4x8x2x32xf32, #tpu.memory_space<vmem>>, vector<1x1x2x32xf32>
    %226 = vector.shape_cast %225 : vector<1x1x2x32xf32> to vector<2x32xf32>
    %227 = arith.addf %226, %200 : vector<2x32xf32>
    %228 = arith.negf %227 : vector<2x32xf32>
    %229 = math.exp %228 : vector<2x32xf32>
    %cst_115 = arith.constant 1.000000e+00 : f32
    %230 = vector.broadcast %cst_115 : f32 to vector<2x32xf32>
    %231 = arith.addf %230, %229 : vector<2x32xf32>
    %232 = arith.divf %230, %231 : vector<2x32xf32>
    %233 = arith.mulf %218, %189 : vector<2x32xf32>
    %234 = arith.mulf %209, %223 : vector<2x32xf32>
    %235 = arith.addf %233, %234 : vector<2x32xf32>
    %236 = math.tanh %235 : vector<2x32xf32>
    %237 = arith.mulf %232, %236 : vector<2x32xf32>
    %238 = arith.truncf %237 : vector<2x32xf32> to vector<2x32xbf16>
    %239 = arith.index_cast %c4_i32 : i32 to index
    %c0_116 = arith.constant 0 : index
    %c0_117 = arith.constant 0 : index
    %240 = vector.load %arg4[%239, %c0_116, %c0_117] : memref<8x2x32xbf16, #tpu.memory_space<vmem>>, vector<1x2x32xbf16>
    %241 = vector.shape_cast %240 : vector<1x2x32xbf16> to vector<2x32xbf16>
    %242 = vector.shape_cast %238 : vector<2x32xbf16> to vector<1x2x32xbf16>
    tpu.vector_store %arg4[%239, %c0_116, %c0_117], %242 {strides = array<i32>} : memref<8x2x32xbf16, #tpu.memory_space<vmem>>, vector<1x2x32xbf16>,
    %c5_i32 = arith.constant 5 : i32
    %cst_118 = arith.constant dense<0.000000e+00> : vector<2x32xf32>
    %243 = tpu.matmul %238, %4, %cst_118 {dimension_numbers = #tpu.dot_dimension_numbers<[1], [0], [0], [1], [0, 0, 1, 1], [], []>} : vector<2x32xbf16>, vector<32x32xbf16>, vector<2x32xf32> -> vector<2x32xf32>
    %cst_119 = arith.constant dense<0.000000e+00> : vector<2x32xf32>
    %244 = tpu.matmul %238, %6, %cst_119 {dimension_numbers = #tpu.dot_dimension_numbers<[1], [0], [0], [1], [0, 0, 1, 1], [], []>} : vector<2x32xbf16>, vector<32x32xbf16>, vector<2x32xf32> -> vector<2x32xf32>
    %cst_120 = arith.constant dense<0.000000e+00> : vector<2x32xf32>
    %245 = tpu.matmul %238, %8, %cst_120 {dimension_numbers = #tpu.dot_dimension_numbers<[1], [0], [0], [1], [0, 0, 1, 1], [], []>} : vector<2x32xbf16>, vector<32x32xbf16>, vector<2x32xf32> -> vector<2x32xf32>
    %cst_121 = arith.constant dense<0.000000e+00> : vector<2x32xf32>
    %246 = tpu.matmul %238, %10, %cst_121 {dimension_numbers = #tpu.dot_dimension_numbers<[1], [0], [0], [1], [0, 0, 1, 1], [], []>} : vector<2x32xbf16>, vector<32x32xbf16>, vector<2x32xf32> -> vector<2x32xf32>
    %c0_122 = arith.constant 0 : index
    %247 = arith.index_cast %c5_i32 : i32 to index
    %c0_123 = arith.constant 0 : index
    %c0_124 = arith.constant 0 : index
    %248 = vector.load %arg2[%c0_122, %247, %c0_123, %c0_124] : memref<4x8x2x32xf32, #tpu.memory_space<vmem>>, vector<1x1x2x32xf32>
    %249 = vector.shape_cast %248 : vector<1x1x2x32xf32> to vector<2x32xf32>
    %250 = arith.addf %249, %243 : vector<2x32xf32>
    %251 = arith.negf %250 : vector<2x32xf32>
    %252 = math.exp %251 : vector<2x32xf32>
    %cst_125 = arith.constant 1.000000e+00 : f32
    %253 = vector.broadcast %cst_125 : f32 to vector<2x32xf32>
    %254 = arith.addf %253, %252 : vector<2x32xf32>
    %255 = arith.divf %253, %254 : vector<2x32xf32>
    %c1_126 = arith.constant 1 : index
    %256 = arith.index_cast %c5_i32 : i32 to index
    %c0_127 = arith.constant 0 : index
    %c0_128 = arith.constant 0 : index
    %257 = vector.load %arg2[%c1_126, %256, %c0_127, %c0_128] : memref<4x8x2x32xf32, #tpu.memory_space<vmem>>, vector<1x1x2x32xf32>
    %258 = vector.shape_cast %257 : vector<1x1x2x32xf32> to vector<2x32xf32>
    %259 = arith.addf %258, %244 : vector<2x32xf32>
    %260 = arith.negf %259 : vector<2x32xf32>
    %261 = math.exp %260 : vector<2x32xf32>
    %cst_129 = arith.constant 1.000000e+00 : f32
    %262 = vector.broadcast %cst_129 : f32 to vector<2x32xf32>
    %263 = arith.addf %262, %261 : vector<2x32xf32>
    %264 = arith.divf %262, %263 : vector<2x32xf32>
    %c2_130 = arith.constant 2 : index
    %265 = arith.index_cast %c5_i32 : i32 to index
    %c0_131 = arith.constant 0 : index
    %c0_132 = arith.constant 0 : index
    %266 = vector.load %arg2[%c2_130, %265, %c0_131, %c0_132] : memref<4x8x2x32xf32, #tpu.memory_space<vmem>>, vector<1x1x2x32xf32>
    %267 = vector.shape_cast %266 : vector<1x1x2x32xf32> to vector<2x32xf32>
    %268 = arith.addf %267, %245 : vector<2x32xf32>
    %269 = math.tanh %268 : vector<2x32xf32>
    %c3_133 = arith.constant 3 : index
    %270 = arith.index_cast %c5_i32 : i32 to index
    %c0_134 = arith.constant 0 : index
    %c0_135 = arith.constant 0 : index
    %271 = vector.load %arg2[%c3_133, %270, %c0_134, %c0_135] : memref<4x8x2x32xf32, #tpu.memory_space<vmem>>, vector<1x1x2x32xf32>
    %272 = vector.shape_cast %271 : vector<1x1x2x32xf32> to vector<2x32xf32>
    %273 = arith.addf %272, %246 : vector<2x32xf32>
    %274 = arith.negf %273 : vector<2x32xf32>
    %275 = math.exp %274 : vector<2x32xf32>
    %cst_136 = arith.constant 1.000000e+00 : f32
    %276 = vector.broadcast %cst_136 : f32 to vector<2x32xf32>
    %277 = arith.addf %276, %275 : vector<2x32xf32>
    %278 = arith.divf %276, %277 : vector<2x32xf32>
    %279 = arith.mulf %264, %235 : vector<2x32xf32>
    %280 = arith.mulf %255, %269 : vector<2x32xf32>
    %281 = arith.addf %279, %280 : vector<2x32xf32>
    %282 = math.tanh %281 : vector<2x32xf32>
    %283 = arith.mulf %278, %282 : vector<2x32xf32>
    %284 = arith.truncf %283 : vector<2x32xf32> to vector<2x32xbf16>
    %285 = arith.index_cast %c5_i32 : i32 to index
    %c0_137 = arith.constant 0 : index
    %c0_138 = arith.constant 0 : index
    %286 = vector.load %arg4[%285, %c0_137, %c0_138] : memref<8x2x32xbf16, #tpu.memory_space<vmem>>, vector<1x2x32xbf16>
    %287 = vector.shape_cast %286 : vector<1x2x32xbf16> to vector<2x32xbf16>
    %288 = vector.shape_cast %284 : vector<2x32xbf16> to vector<1x2x32xbf16>
    tpu.vector_store %arg4[%285, %c0_137, %c0_138], %288 {strides = array<i32>} : memref<8x2x32xbf16, #tpu.memory_space<vmem>>, vector<1x2x32xbf16>,
    %c6_i32 = arith.constant 6 : i32
    %cst_139 = arith.constant dense<0.000000e+00> : vector<2x32xf32>
    %289 = tpu.matmul %284, %4, %cst_139 {dimension_numbers = #tpu.dot_dimension_numbers<[1], [0], [0], [1], [0, 0, 1, 1], [], []>} : vector<2x32xbf16>, vector<32x32xbf16>, vector<2x32xf32> -> vector<2x32xf32>
    %cst_140 = arith.constant dense<0.000000e+00> : vector<2x32xf32>
    %290 = tpu.matmul %284, %6, %cst_140 {dimension_numbers = #tpu.dot_dimension_numbers<[1], [0], [0], [1], [0, 0, 1, 1], [], []>} : vector<2x32xbf16>, vector<32x32xbf16>, vector<2x32xf32> -> vector<2x32xf32>
    %cst_141 = arith.constant dense<0.000000e+00> : vector<2x32xf32>
    %291 = tpu.matmul %284, %8, %cst_141 {dimension_numbers = #tpu.dot_dimension_numbers<[1], [0], [0], [1], [0, 0, 1, 1], [], []>} : vector<2x32xbf16>, vector<32x32xbf16>, vector<2x32xf32> -> vector<2x32xf32>
    %cst_142 = arith.constant dense<0.000000e+00> : vector<2x32xf32>
    %292 = tpu.matmul %284, %10, %cst_142 {dimension_numbers = #tpu.dot_dimension_numbers<[1], [0], [0], [1], [0, 0, 1, 1], [], []>} : vector<2x32xbf16>, vector<32x32xbf16>, vector<2x32xf32> -> vector<2x32xf32>
    %c0_143 = arith.constant 0 : index
    %293 = arith.index_cast %c6_i32 : i32 to index
    %c0_144 = arith.constant 0 : index
    %c0_145 = arith.constant 0 : index
    %294 = vector.load %arg2[%c0_143, %293, %c0_144, %c0_145] : memref<4x8x2x32xf32, #tpu.memory_space<vmem>>, vector<1x1x2x32xf32>
    %295 = vector.shape_cast %294 : vector<1x1x2x32xf32> to vector<2x32xf32>
    %296 = arith.addf %295, %289 : vector<2x32xf32>
    %297 = arith.negf %296 : vector<2x32xf32>
    %298 = math.exp %297 : vector<2x32xf32>
    %cst_146 = arith.constant 1.000000e+00 : f32
    %299 = vector.broadcast %cst_146 : f32 to vector<2x32xf32>
    %300 = arith.addf %299, %298 : vector<2x32xf32>
    %301 = arith.divf %299, %300 : vector<2x32xf32>
    %c1_147 = arith.constant 1 : index
    %302 = arith.index_cast %c6_i32 : i32 to index
    %c0_148 = arith.constant 0 : index
    %c0_149 = arith.constant 0 : index
    %303 = vector.load %arg2[%c1_147, %302, %c0_148, %c0_149] : memref<4x8x2x32xf32, #tpu.memory_space<vmem>>, vector<1x1x2x32xf32>
    %304 = vector.shape_cast %303 : vector<1x1x2x32xf32> to vector<2x32xf32>
    %305 = arith.addf %304, %290 : vector<2x32xf32>
    %306 = arith.negf %305 : vector<2x32xf32>
    %307 = math.exp %306 : vector<2x32xf32>
    %cst_150 = arith.constant 1.000000e+00 : f32
    %308 = vector.broadcast %cst_150 : f32 to vector<2x32xf32>
    %309 = arith.addf %308, %307 : vector<2x32xf32>
    %310 = arith.divf %308, %309 : vector<2x32xf32>
    %c2_151 = arith.constant 2 : index
    %311 = arith.index_cast %c6_i32 : i32 to index
    %c0_152 = arith.constant 0 : index
    %c0_153 = arith.constant 0 : index
    %312 = vector.load %arg2[%c2_151, %311, %c0_152, %c0_153] : memref<4x8x2x32xf32, #tpu.memory_space<vmem>>, vector<1x1x2x32xf32>
    %313 = vector.shape_cast %312 : vector<1x1x2x32xf32> to vector<2x32xf32>
    %314 = arith.addf %313, %291 : vector<2x32xf32>
    %315 = math.tanh %314 : vector<2x32xf32>
    %c3_154 = arith.constant 3 : index
    %316 = arith.index_cast %c6_i32 : i32 to index
    %c0_155 = arith.constant 0 : index
    %c0_156 = arith.constant 0 : index
    %317 = vector.load %arg2[%c3_154, %316, %c0_155, %c0_156] : memref<4x8x2x32xf32, #tpu.memory_space<vmem>>, vector<1x1x2x32xf32>
    %318 = vector.shape_cast %317 : vector<1x1x2x32xf32> to vector<2x32xf32>
    %319 = arith.addf %318, %292 : vector<2x32xf32>
    %320 = arith.negf %319 : vector<2x32xf32>
    %321 = math.exp %320 : vector<2x32xf32>
    %cst_157 = arith.constant 1.000000e+00 : f32
    %322 = vector.broadcast %cst_157 : f32 to vector<2x32xf32>
    %323 = arith.addf %322, %321 : vector<2x32xf32>
    %324 = arith.divf %322, %323 : vector<2x32xf32>
    %325 = arith.mulf %310, %281 : vector<2x32xf32>
    %326 = arith.mulf %301, %315 : vector<2x32xf32>
    %327 = arith.addf %325, %326 : vector<2x32xf32>
    %328 = math.tanh %327 : vector<2x32xf32>
    %329 = arith.mulf %324, %328 : vector<2x32xf32>
    %330 = arith.truncf %329 : vector<2x32xf32> to vector<2x32xbf16>
    %331 = arith.index_cast %c6_i32 : i32 to index
    %c0_158 = arith.constant 0 : index
    %c0_159 = arith.constant 0 : index
    %332 = vector.load %arg4[%331, %c0_158, %c0_159] : memref<8x2x32xbf16, #tpu.memory_space<vmem>>, vector<1x2x32xbf16>
    %333 = vector.shape_cast %332 : vector<1x2x32xbf16> to vector<2x32xbf16>
    %334 = vector.shape_cast %330 : vector<2x32xbf16> to vector<1x2x32xbf16>
    tpu.vector_store %arg4[%331, %c0_158, %c0_159], %334 {strides = array<i32>} : memref<8x2x32xbf16, #tpu.memory_space<vmem>>, vector<1x2x32xbf16>,
    %c7_i32 = arith.constant 7 : i32
    %cst_160 = arith.constant dense<0.000000e+00> : vector<2x32xf32>
    %335 = tpu.matmul %330, %4, %cst_160 {dimension_numbers = #tpu.dot_dimension_numbers<[1], [0], [0], [1], [0, 0, 1, 1], [], []>} : vector<2x32xbf16>, vector<32x32xbf16>, vector<2x32xf32> -> vector<2x32xf32>
    %cst_161 = arith.constant dense<0.000000e+00> : vector<2x32xf32>
    %336 = tpu.matmul %330, %6, %cst_161 {dimension_numbers = #tpu.dot_dimension_numbers<[1], [0], [0], [1], [0, 0, 1, 1], [], []>} : vector<2x32xbf16>, vector<32x32xbf16>, vector<2x32xf32> -> vector<2x32xf32>
    %cst_162 = arith.constant dense<0.000000e+00> : vector<2x32xf32>
    %337 = tpu.matmul %330, %8, %cst_162 {dimension_numbers = #tpu.dot_dimension_numbers<[1], [0], [0], [1], [0, 0, 1, 1], [], []>} : vector<2x32xbf16>, vector<32x32xbf16>, vector<2x32xf32> -> vector<2x32xf32>
    %cst_163 = arith.constant dense<0.000000e+00> : vector<2x32xf32>
    %338 = tpu.matmul %330, %10, %cst_163 {dimension_numbers = #tpu.dot_dimension_numbers<[1], [0], [0], [1], [0, 0, 1, 1], [], []>} : vector<2x32xbf16>, vector<32x32xbf16>, vector<2x32xf32> -> vector<2x32xf32>
    %c0_164 = arith.constant 0 : index
    %339 = arith.index_cast %c7_i32 : i32 to index
    %c0_165 = arith.constant 0 : index
    %c0_166 = arith.constant 0 : index
    %340 = vector.load %arg2[%c0_164, %339, %c0_165, %c0_166] : memref<4x8x2x32xf32, #tpu.memory_space<vmem>>, vector<1x1x2x32xf32>
    %341 = vector.shape_cast %340 : vector<1x1x2x32xf32> to vector<2x32xf32>
    %342 = arith.addf %341, %335 : vector<2x32xf32>
    %343 = arith.negf %342 : vector<2x32xf32>
    %344 = math.exp %343 : vector<2x32xf32>
    %cst_167 = arith.constant 1.000000e+00 : f32
    %345 = vector.broadcast %cst_167 : f32 to vector<2x32xf32>
    %346 = arith.addf %345, %344 : vector<2x32xf32>
    %347 = arith.divf %345, %346 : vector<2x32xf32>
    %c1_168 = arith.constant 1 : index
    %348 = arith.index_cast %c7_i32 : i32 to index
    %c0_169 = arith.constant 0 : index
    %c0_170 = arith.constant 0 : index
    %349 = vector.load %arg2[%c1_168, %348, %c0_169, %c0_170] : memref<4x8x2x32xf32, #tpu.memory_space<vmem>>, vector<1x1x2x32xf32>
    %350 = vector.shape_cast %349 : vector<1x1x2x32xf32> to vector<2x32xf32>
    %351 = arith.addf %350, %336 : vector<2x32xf32>
    %352 = arith.negf %351 : vector<2x32xf32>
    %353 = math.exp %352 : vector<2x32xf32>
    %cst_171 = arith.constant 1.000000e+00 : f32
    %354 = vector.broadcast %cst_171 : f32 to vector<2x32xf32>
    %355 = arith.addf %354, %353 : vector<2x32xf32>
    %356 = arith.divf %354, %355 : vector<2x32xf32>
    %c2_172 = arith.constant 2 : index
    %357 = arith.index_cast %c7_i32 : i32 to index
    %c0_173 = arith.constant 0 : index
    %c0_174 = arith.constant 0 : index
    %358 = vector.load %arg2[%c2_172, %357, %c0_173, %c0_174] : memref<4x8x2x32xf32, #tpu.memory_space<vmem>>, vector<1x1x2x32xf32>
    %359 = vector.shape_cast %358 : vector<1x1x2x32xf32> to vector<2x32xf32>
    %360 = arith.addf %359, %337 : vector<2x32xf32>
    %361 = math.tanh %360 : vector<2x32xf32>
    %c3_175 = arith.constant 3 : index
    %362 = arith.index_cast %c7_i32 : i32 to index
    %c0_176 = arith.constant 0 : index
    %c0_177 = arith.constant 0 : index
    %363 = vector.load %arg2[%c3_175, %362, %c0_176, %c0_177] : memref<4x8x2x32xf32, #tpu.memory_space<vmem>>, vector<1x1x2x32xf32>
    %364 = vector.shape_cast %363 : vector<1x1x2x32xf32> to vector<2x32xf32>
    %365 = arith.addf %364, %338 : vector<2x32xf32>
    %366 = arith.negf %365 : vector<2x32xf32>
    %367 = math.exp %366 : vector<2x32xf32>
    %cst_178 = arith.constant 1.000000e+00 : f32
    %368 = vector.broadcast %cst_178 : f32 to vector<2x32xf32>
    %369 = arith.addf %368, %367 : vector<2x32xf32>
    %370 = arith.divf %368, %369 : vector<2x32xf32>
    %371 = arith.mulf %356, %327 : vector<2x32xf32>
    %372 = arith.mulf %347, %361 : vector<2x32xf32>
    %373 = arith.addf %371, %372 : vector<2x32xf32>
    %374 = math.tanh %373 : vector<2x32xf32>
    %375 = arith.mulf %370, %374 : vector<2x32xf32>
    %376 = arith.truncf %375 : vector<2x32xf32> to vector<2x32xbf16>
    %377 = arith.index_cast %c7_i32 : i32 to index
    %c0_179 = arith.constant 0 : index
    %c0_180 = arith.constant 0 : index
    %378 = vector.load %arg4[%377, %c0_179, %c0_180] : memref<8x2x32xbf16, #tpu.memory_space<vmem>>, vector<1x2x32xbf16>
    %379 = vector.shape_cast %378 : vector<1x2x32xbf16> to vector<2x32xbf16>
    %380 = vector.shape_cast %376 : vector<2x32xbf16> to vector<1x2x32xbf16>
    tpu.vector_store %arg4[%377, %c0_179, %c0_180], %380 {strides = array<i32>} : memref<8x2x32xbf16, #tpu.memory_space<vmem>>, vector<1x2x32xbf16>,
    %c8_i32 = arith.constant 8 : i32
    %c0_181 = arith.constant 0 : index
    %c0_182 = arith.constant 0 : index
    %381 = vector.load %arg5[%c0_181, %c0_182] : memref<2x32xbf16, #tpu.memory_space<vmem>>, vector<2x32xbf16>
    tpu.vector_store %arg5[%c0_181, %c0_182], %376 {strides = array<i32>} : memref<2x32xbf16, #tpu.memory_space<vmem>>, vector<2x32xbf16>,
    %c0_183 = arith.constant 0 : index
    %c0_184 = arith.constant 0 : index
    %382 = vector.load %arg6[%c0_183, %c0_184] : memref<2x32xf32, #tpu.memory_space<vmem>>, vector<2x32xf32>
    tpu.vector_store %arg6[%c0_183, %c0_184], %373 {strides = array<i32>} : memref<2x32xf32, #tpu.memory_space<vmem>>, vector<2x32xf32>,
    return
  }
  func.func @transform_0(%arg0: i32, %arg1: i32) -> (i32, i32, i32, i32) {
    %c0_i32 = arith.constant 0 : i32
    %c0_i32_0 = arith.constant 0 : i32
    %c0_i32_1 = arith.constant 0 : i32
    return %c0_i32, %arg1, %arg0, %c0_i32_0 : i32, i32, i32, i32
  }
  func.func @transform_1(%arg0: i32, %arg1: i32) -> (i32, i32, i32) {
    %c0_i32 = arith.constant 0 : i32
    %c0_i32_0 = arith.constant 0 : i32
    %c0_i32_1 = arith.constant 0 : i32
    %c0_i32_2 = arith.constant 0 : i32
    return %c0_i32, %c0_i32_0, %c0_i32_1 : i32, i32, i32
  }
  func.func @transform_2(%arg0: i32, %arg1: i32) -> (i32, i32, i32) {
    %c0_i32 = arith.constant 0 : i32
    %c0_i32_0 = arith.constant 0 : i32
    return %arg1, %arg0, %c0_i32 : i32, i32, i32
  }
}

module attributes {stable_mosaic.version = 11 : i64} {
  func.func @_lstm_chunk_proj_kernel(%arg0: i32, %arg1: i32, %arg2: memref<4x8x2x32xf32, #tpu.memory_space<vmem>>, %arg3: memref<4x32x32xbf16, #tpu.memory_space<vmem>>, %arg4: memref<32x8xbf16, #tpu.memory_space<vmem>>, %arg5: memref<1x8xf32, #tpu.memory_space<vmem>>, %arg6: memref<8x2x8xf32, #tpu.memory_space<vmem>>, %arg7: memref<2x32xbf16, #tpu.memory_space<vmem>>, %arg8: memref<2x32xf32, #tpu.memory_space<vmem>>, %arg9: memref<8x2x32xbf16, #tpu.memory_space<vmem>>) attributes {dimension_semantics = [#tpu.dimension_semantics<parallel>, #tpu.dimension_semantics<arbitrary>], iteration_bounds = array<i64: 1, 1>, scalar_prefetch = 0 : i64, scratch_operands = 3 : i64, tpu.core_type = #tpu.core_type<tc>, window_params = [{transform_indices = @transform_0, window_bounds = array<i64: 4, 8, 2, 32>}, {pipeline_mode = #tpu.pipeline_mode<synchronous>, transform_indices = @transform_1, window_bounds = array<i64: 4, 32, 32>}, {pipeline_mode = #tpu.pipeline_mode<synchronous>, transform_indices = @transform_2, window_bounds = array<i64: 32, 8>}, {pipeline_mode = #tpu.pipeline_mode<synchronous>, transform_indices = @transform_3, window_bounds = array<i64: 1, 8>}, {transform_indices = @transform_4, window_bounds = array<i64: 8, 2, 8>}]} {
    %c0_i32 = arith.constant 0 : i32
    %0 = arith.cmpi eq, %arg1, %c0_i32 : i32
    %1 = arith.extui %0 : i1 to i32
    %c0_i32_0 = arith.constant 0 : i32
    %2 = arith.cmpi ne, %1, %c0_i32_0 : i32
    scf.if %2 {
      %cst_196 = arith.constant 0.000000e+00 : bf16
      %392 = vector.broadcast %cst_196 : bf16 to vector<2x32xbf16>
      %c0_197 = arith.constant 0 : index
      %c0_198 = arith.constant 0 : index
      %393 = vector.load %arg7[%c0_197, %c0_198] : memref<2x32xbf16, #tpu.memory_space<vmem>>, vector<2x32xbf16>
      tpu.vector_store %arg7[%c0_197, %c0_198], %392 {strides = array<i32>} : memref<2x32xbf16, #tpu.memory_space<vmem>>, vector<2x32xbf16>,
      %cst_199 = arith.constant 0.000000e+00 : f32
      %394 = vector.broadcast %cst_199 : f32 to vector<2x32xf32>
      %c0_200 = arith.constant 0 : index
      %c0_201 = arith.constant 0 : index
      %395 = vector.load %arg8[%c0_200, %c0_201] : memref<2x32xf32, #tpu.memory_space<vmem>>, vector<2x32xf32>
      tpu.vector_store %arg8[%c0_200, %c0_201], %394 {strides = array<i32>} : memref<2x32xf32, #tpu.memory_space<vmem>>, vector<2x32xf32>,
    } else {
    }
    %c0 = arith.constant 0 : index
    %c0_1 = arith.constant 0 : index
    %c0_2 = arith.constant 0 : index
    %3 = vector.load %arg3[%c0, %c0_1, %c0_2] : memref<4x32x32xbf16, #tpu.memory_space<vmem>>, vector<1x32x32xbf16>
    %4 = vector.shape_cast %3 : vector<1x32x32xbf16> to vector<32x32xbf16>
    %c1 = arith.constant 1 : index
    %c0_3 = arith.constant 0 : index
    %c0_4 = arith.constant 0 : index
    %5 = vector.load %arg3[%c1, %c0_3, %c0_4] : memref<4x32x32xbf16, #tpu.memory_space<vmem>>, vector<1x32x32xbf16>
    %6 = vector.shape_cast %5 : vector<1x32x32xbf16> to vector<32x32xbf16>
    %c2 = arith.constant 2 : index
    %c0_5 = arith.constant 0 : index
    %c0_6 = arith.constant 0 : index
    %7 = vector.load %arg3[%c2, %c0_5, %c0_6] : memref<4x32x32xbf16, #tpu.memory_space<vmem>>, vector<1x32x32xbf16>
    %8 = vector.shape_cast %7 : vector<1x32x32xbf16> to vector<32x32xbf16>
    %c3 = arith.constant 3 : index
    %c0_7 = arith.constant 0 : index
    %c0_8 = arith.constant 0 : index
    %9 = vector.load %arg3[%c3, %c0_7, %c0_8] : memref<4x32x32xbf16, #tpu.memory_space<vmem>>, vector<1x32x32xbf16>
    %10 = vector.shape_cast %9 : vector<1x32x32xbf16> to vector<32x32xbf16>
    %c0_9 = arith.constant 0 : index
    %c0_10 = arith.constant 0 : index
    %11 = vector.load %arg7[%c0_9, %c0_10] : memref<2x32xbf16, #tpu.memory_space<vmem>>, vector<2x32xbf16>
    %c0_11 = arith.constant 0 : index
    %c0_12 = arith.constant 0 : index
    %12 = vector.load %arg8[%c0_11, %c0_12] : memref<2x32xf32, #tpu.memory_space<vmem>>, vector<2x32xf32>
    %c0_i32_13 = arith.constant 0 : i32
    %cst = arith.constant dense<0.000000e+00> : vector<2x32xf32>
    %13 = tpu.matmul %11, %4, %cst {dimension_numbers = #tpu.dot_dimension_numbers<[1], [0], [0], [1], [0, 0, 1, 1], [], []>} : vector<2x32xbf16>, vector<32x32xbf16>, vector<2x32xf32> -> vector<2x32xf32>
    %cst_14 = arith.constant dense<0.000000e+00> : vector<2x32xf32>
    %14 = tpu.matmul %11, %6, %cst_14 {dimension_numbers = #tpu.dot_dimension_numbers<[1], [0], [0], [1], [0, 0, 1, 1], [], []>} : vector<2x32xbf16>, vector<32x32xbf16>, vector<2x32xf32> -> vector<2x32xf32>
    %cst_15 = arith.constant dense<0.000000e+00> : vector<2x32xf32>
    %15 = tpu.matmul %11, %8, %cst_15 {dimension_numbers = #tpu.dot_dimension_numbers<[1], [0], [0], [1], [0, 0, 1, 1], [], []>} : vector<2x32xbf16>, vector<32x32xbf16>, vector<2x32xf32> -> vector<2x32xf32>
    %cst_16 = arith.constant dense<0.000000e+00> : vector<2x32xf32>
    %16 = tpu.matmul %11, %10, %cst_16 {dimension_numbers = #tpu.dot_dimension_numbers<[1], [0], [0], [1], [0, 0, 1, 1], [], []>} : vector<2x32xbf16>, vector<32x32xbf16>, vector<2x32xf32> -> vector<2x32xf32>
    %c0_17 = arith.constant 0 : index
    %17 = arith.index_cast %c0_i32_13 : i32 to index
    %c0_18 = arith.constant 0 : index
    %c0_19 = arith.constant 0 : index
    %18 = vector.load %arg2[%c0_17, %17, %c0_18, %c0_19] : memref<4x8x2x32xf32, #tpu.memory_space<vmem>>, vector<1x1x2x32xf32>
    %19 = vector.shape_cast %18 : vector<1x1x2x32xf32> to vector<2x32xf32>
    %20 = arith.addf %19, %13 : vector<2x32xf32>
    %21 = arith.negf %20 : vector<2x32xf32>
    %22 = math.exp %21 : vector<2x32xf32>
    %cst_20 = arith.constant 1.000000e+00 : f32
    %23 = vector.broadcast %cst_20 : f32 to vector<2x32xf32>
    %24 = arith.addf %23, %22 : vector<2x32xf32>
    %25 = arith.divf %23, %24 : vector<2x32xf32>
    %c1_21 = arith.constant 1 : index
    %26 = arith.index_cast %c0_i32_13 : i32 to index
    %c0_22 = arith.constant 0 : index
    %c0_23 = arith.constant 0 : index
    %27 = vector.load %arg2[%c1_21, %26, %c0_22, %c0_23] : memref<4x8x2x32xf32, #tpu.memory_space<vmem>>, vector<1x1x2x32xf32>
    %28 = vector.shape_cast %27 : vector<1x1x2x32xf32> to vector<2x32xf32>
    %29 = arith.addf %28, %14 : vector<2x32xf32>
    %30 = arith.negf %29 : vector<2x32xf32>
    %31 = math.exp %30 : vector<2x32xf32>
    %cst_24 = arith.constant 1.000000e+00 : f32
    %32 = vector.broadcast %cst_24 : f32 to vector<2x32xf32>
    %33 = arith.addf %32, %31 : vector<2x32xf32>
    %34 = arith.divf %32, %33 : vector<2x32xf32>
    %c2_25 = arith.constant 2 : index
    %35 = arith.index_cast %c0_i32_13 : i32 to index
    %c0_26 = arith.constant 0 : index
    %c0_27 = arith.constant 0 : index
    %36 = vector.load %arg2[%c2_25, %35, %c0_26, %c0_27] : memref<4x8x2x32xf32, #tpu.memory_space<vmem>>, vector<1x1x2x32xf32>
    %37 = vector.shape_cast %36 : vector<1x1x2x32xf32> to vector<2x32xf32>
    %38 = arith.addf %37, %15 : vector<2x32xf32>
    %39 = math.tanh %38 : vector<2x32xf32>
    %c3_28 = arith.constant 3 : index
    %40 = arith.index_cast %c0_i32_13 : i32 to index
    %c0_29 = arith.constant 0 : index
    %c0_30 = arith.constant 0 : index
    %41 = vector.load %arg2[%c3_28, %40, %c0_29, %c0_30] : memref<4x8x2x32xf32, #tpu.memory_space<vmem>>, vector<1x1x2x32xf32>
    %42 = vector.shape_cast %41 : vector<1x1x2x32xf32> to vector<2x32xf32>
    %43 = arith.addf %42, %16 : vector<2x32xf32>
    %44 = arith.negf %43 : vector<2x32xf32>
    %45 = math.exp %44 : vector<2x32xf32>
    %cst_31 = arith.constant 1.000000e+00 : f32
    %46 = vector.broadcast %cst_31 : f32 to vector<2x32xf32>
    %47 = arith.addf %46, %45 : vector<2x32xf32>
    %48 = arith.divf %46, %47 : vector<2x32xf32>
    %49 = arith.mulf %34, %12 : vector<2x32xf32>
    %50 = arith.mulf %25, %39 : vector<2x32xf32>
    %51 = arith.addf %49, %50 : vector<2x32xf32>
    %52 = math.tanh %51 : vector<2x32xf32>
    %53 = arith.mulf %48, %52 : vector<2x32xf32>
    %54 = arith.truncf %53 : vector<2x32xf32> to vector<2x32xbf16>
    %55 = arith.index_cast %c0_i32_13 : i32 to index
    %c0_32 = arith.constant 0 : index
    %c0_33 = arith.constant 0 : index
    %56 = vector.load %arg9[%55, %c0_32, %c0_33] : memref<8x2x32xbf16, #tpu.memory_space<vmem>>, vector<1x2x32xbf16>
    %57 = vector.shape_cast %56 : vector<1x2x32xbf16> to vector<2x32xbf16>
    %58 = vector.shape_cast %54 : vector<2x32xbf16> to vector<1x2x32xbf16>
    tpu.vector_store %arg9[%55, %c0_32, %c0_33], %58 {strides = array<i32>} : memref<8x2x32xbf16, #tpu.memory_space<vmem>>, vector<1x2x32xbf16>,
    %c1_i32 = arith.constant 1 : i32
    %cst_34 = arith.constant dense<0.000000e+00> : vector<2x32xf32>
    %59 = tpu.matmul %54, %4, %cst_34 {dimension_numbers = #tpu.dot_dimension_numbers<[1], [0], [0], [1], [0, 0, 1, 1], [], []>} : vector<2x32xbf16>, vector<32x32xbf16>, vector<2x32xf32> -> vector<2x32xf32>
    %cst_35 = arith.constant dense<0.000000e+00> : vector<2x32xf32>
    %60 = tpu.matmul %54, %6, %cst_35 {dimension_numbers = #tpu.dot_dimension_numbers<[1], [0], [0], [1], [0, 0, 1, 1], [], []>} : vector<2x32xbf16>, vector<32x32xbf16>, vector<2x32xf32> -> vector<2x32xf32>
    %cst_36 = arith.constant dense<0.000000e+00> : vector<2x32xf32>
    %61 = tpu.matmul %54, %8, %cst_36 {dimension_numbers = #tpu.dot_dimension_numbers<[1], [0], [0], [1], [0, 0, 1, 1], [], []>} : vector<2x32xbf16>, vector<32x32xbf16>, vector<2x32xf32> -> vector<2x32xf32>
    %cst_37 = arith.constant dense<0.000000e+00> : vector<2x32xf32>
    %62 = tpu.matmul %54, %10, %cst_37 {dimension_numbers = #tpu.dot_dimension_numbers<[1], [0], [0], [1], [0, 0, 1, 1], [], []>} : vector<2x32xbf16>, vector<32x32xbf16>, vector<2x32xf32> -> vector<2x32xf32>
    %c0_38 = arith.constant 0 : index
    %63 = arith.index_cast %c1_i32 : i32 to index
    %c0_39 = arith.constant 0 : index
    %c0_40 = arith.constant 0 : index
    %64 = vector.load %arg2[%c0_38, %63, %c0_39, %c0_40] : memref<4x8x2x32xf32, #tpu.memory_space<vmem>>, vector<1x1x2x32xf32>
    %65 = vector.shape_cast %64 : vector<1x1x2x32xf32> to vector<2x32xf32>
    %66 = arith.addf %65, %59 : vector<2x32xf32>
    %67 = arith.negf %66 : vector<2x32xf32>
    %68 = math.exp %67 : vector<2x32xf32>
    %cst_41 = arith.constant 1.000000e+00 : f32
    %69 = vector.broadcast %cst_41 : f32 to vector<2x32xf32>
    %70 = arith.addf %69, %68 : vector<2x32xf32>
    %71 = arith.divf %69, %70 : vector<2x32xf32>
    %c1_42 = arith.constant 1 : index
    %72 = arith.index_cast %c1_i32 : i32 to index
    %c0_43 = arith.constant 0 : index
    %c0_44 = arith.constant 0 : index
    %73 = vector.load %arg2[%c1_42, %72, %c0_43, %c0_44] : memref<4x8x2x32xf32, #tpu.memory_space<vmem>>, vector<1x1x2x32xf32>
    %74 = vector.shape_cast %73 : vector<1x1x2x32xf32> to vector<2x32xf32>
    %75 = arith.addf %74, %60 : vector<2x32xf32>
    %76 = arith.negf %75 : vector<2x32xf32>
    %77 = math.exp %76 : vector<2x32xf32>
    %cst_45 = arith.constant 1.000000e+00 : f32
    %78 = vector.broadcast %cst_45 : f32 to vector<2x32xf32>
    %79 = arith.addf %78, %77 : vector<2x32xf32>
    %80 = arith.divf %78, %79 : vector<2x32xf32>
    %c2_46 = arith.constant 2 : index
    %81 = arith.index_cast %c1_i32 : i32 to index
    %c0_47 = arith.constant 0 : index
    %c0_48 = arith.constant 0 : index
    %82 = vector.load %arg2[%c2_46, %81, %c0_47, %c0_48] : memref<4x8x2x32xf32, #tpu.memory_space<vmem>>, vector<1x1x2x32xf32>
    %83 = vector.shape_cast %82 : vector<1x1x2x32xf32> to vector<2x32xf32>
    %84 = arith.addf %83, %61 : vector<2x32xf32>
    %85 = math.tanh %84 : vector<2x32xf32>
    %c3_49 = arith.constant 3 : index
    %86 = arith.index_cast %c1_i32 : i32 to index
    %c0_50 = arith.constant 0 : index
    %c0_51 = arith.constant 0 : index
    %87 = vector.load %arg2[%c3_49, %86, %c0_50, %c0_51] : memref<4x8x2x32xf32, #tpu.memory_space<vmem>>, vector<1x1x2x32xf32>
    %88 = vector.shape_cast %87 : vector<1x1x2x32xf32> to vector<2x32xf32>
    %89 = arith.addf %88, %62 : vector<2x32xf32>
    %90 = arith.negf %89 : vector<2x32xf32>
    %91 = math.exp %90 : vector<2x32xf32>
    %cst_52 = arith.constant 1.000000e+00 : f32
    %92 = vector.broadcast %cst_52 : f32 to vector<2x32xf32>
    %93 = arith.addf %92, %91 : vector<2x32xf32>
    %94 = arith.divf %92, %93 : vector<2x32xf32>
    %95 = arith.mulf %80, %51 : vector<2x32xf32>
    %96 = arith.mulf %71, %85 : vector<2x32xf32>
    %97 = arith.addf %95, %96 : vector<2x32xf32>
    %98 = math.tanh %97 : vector<2x32xf32>
    %99 = arith.mulf %94, %98 : vector<2x32xf32>
    %100 = arith.truncf %99 : vector<2x32xf32> to vector<2x32xbf16>
    %101 = arith.index_cast %c1_i32 : i32 to index
    %c0_53 = arith.constant 0 : index
    %c0_54 = arith.constant 0 : index
    %102 = vector.load %arg9[%101, %c0_53, %c0_54] : memref<8x2x32xbf16, #tpu.memory_space<vmem>>, vector<1x2x32xbf16>
    %103 = vector.shape_cast %102 : vector<1x2x32xbf16> to vector<2x32xbf16>
    %104 = vector.shape_cast %100 : vector<2x32xbf16> to vector<1x2x32xbf16>
    tpu.vector_store %arg9[%101, %c0_53, %c0_54], %104 {strides = array<i32>} : memref<8x2x32xbf16, #tpu.memory_space<vmem>>, vector<1x2x32xbf16>,
    %c2_i32 = arith.constant 2 : i32
    %cst_55 = arith.constant dense<0.000000e+00> : vector<2x32xf32>
    %105 = tpu.matmul %100, %4, %cst_55 {dimension_numbers = #tpu.dot_dimension_numbers<[1], [0], [0], [1], [0, 0, 1, 1], [], []>} : vector<2x32xbf16>, vector<32x32xbf16>, vector<2x32xf32> -> vector<2x32xf32>
    %cst_56 = arith.constant dense<0.000000e+00> : vector<2x32xf32>
    %106 = tpu.matmul %100, %6, %cst_56 {dimension_numbers = #tpu.dot_dimension_numbers<[1], [0], [0], [1], [0, 0, 1, 1], [], []>} : vector<2x32xbf16>, vector<32x32xbf16>, vector<2x32xf32> -> vector<2x32xf32>
    %cst_57 = arith.constant dense<0.000000e+00> : vector<2x32xf32>
    %107 = tpu.matmul %100, %8, %cst_57 {dimension_numbers = #tpu.dot_dimension_numbers<[1], [0], [0], [1], [0, 0, 1, 1], [], []>} : vector<2x32xbf16>, vector<32x32xbf16>, vector<2x32xf32> -> vector<2x32xf32>
    %cst_58 = arith.constant dense<0.000000e+00> : vector<2x32xf32>
    %108 = tpu.matmul %100, %10, %cst_58 {dimension_numbers = #tpu.dot_dimension_numbers<[1], [0], [0], [1], [0, 0, 1, 1], [], []>} : vector<2x32xbf16>, vector<32x32xbf16>, vector<2x32xf32> -> vector<2x32xf32>
    %c0_59 = arith.constant 0 : index
    %109 = arith.index_cast %c2_i32 : i32 to index
    %c0_60 = arith.constant 0 : index
    %c0_61 = arith.constant 0 : index
    %110 = vector.load %arg2[%c0_59, %109, %c0_60, %c0_61] : memref<4x8x2x32xf32, #tpu.memory_space<vmem>>, vector<1x1x2x32xf32>
    %111 = vector.shape_cast %110 : vector<1x1x2x32xf32> to vector<2x32xf32>
    %112 = arith.addf %111, %105 : vector<2x32xf32>
    %113 = arith.negf %112 : vector<2x32xf32>
    %114 = math.exp %113 : vector<2x32xf32>
    %cst_62 = arith.constant 1.000000e+00 : f32
    %115 = vector.broadcast %cst_62 : f32 to vector<2x32xf32>
    %116 = arith.addf %115, %114 : vector<2x32xf32>
    %117 = arith.divf %115, %116 : vector<2x32xf32>
    %c1_63 = arith.constant 1 : index
    %118 = arith.index_cast %c2_i32 : i32 to index
    %c0_64 = arith.constant 0 : index
    %c0_65 = arith.constant 0 : index
    %119 = vector.load %arg2[%c1_63, %118, %c0_64, %c0_65] : memref<4x8x2x32xf32, #tpu.memory_space<vmem>>, vector<1x1x2x32xf32>
    %120 = vector.shape_cast %119 : vector<1x1x2x32xf32> to vector<2x32xf32>
    %121 = arith.addf %120, %106 : vector<2x32xf32>
    %122 = arith.negf %121 : vector<2x32xf32>
    %123 = math.exp %122 : vector<2x32xf32>
    %cst_66 = arith.constant 1.000000e+00 : f32
    %124 = vector.broadcast %cst_66 : f32 to vector<2x32xf32>
    %125 = arith.addf %124, %123 : vector<2x32xf32>
    %126 = arith.divf %124, %125 : vector<2x32xf32>
    %c2_67 = arith.constant 2 : index
    %127 = arith.index_cast %c2_i32 : i32 to index
    %c0_68 = arith.constant 0 : index
    %c0_69 = arith.constant 0 : index
    %128 = vector.load %arg2[%c2_67, %127, %c0_68, %c0_69] : memref<4x8x2x32xf32, #tpu.memory_space<vmem>>, vector<1x1x2x32xf32>
    %129 = vector.shape_cast %128 : vector<1x1x2x32xf32> to vector<2x32xf32>
    %130 = arith.addf %129, %107 : vector<2x32xf32>
    %131 = math.tanh %130 : vector<2x32xf32>
    %c3_70 = arith.constant 3 : index
    %132 = arith.index_cast %c2_i32 : i32 to index
    %c0_71 = arith.constant 0 : index
    %c0_72 = arith.constant 0 : index
    %133 = vector.load %arg2[%c3_70, %132, %c0_71, %c0_72] : memref<4x8x2x32xf32, #tpu.memory_space<vmem>>, vector<1x1x2x32xf32>
    %134 = vector.shape_cast %133 : vector<1x1x2x32xf32> to vector<2x32xf32>
    %135 = arith.addf %134, %108 : vector<2x32xf32>
    %136 = arith.negf %135 : vector<2x32xf32>
    %137 = math.exp %136 : vector<2x32xf32>
    %cst_73 = arith.constant 1.000000e+00 : f32
    %138 = vector.broadcast %cst_73 : f32 to vector<2x32xf32>
    %139 = arith.addf %138, %137 : vector<2x32xf32>
    %140 = arith.divf %138, %139 : vector<2x32xf32>
    %141 = arith.mulf %126, %97 : vector<2x32xf32>
    %142 = arith.mulf %117, %131 : vector<2x32xf32>
    %143 = arith.addf %141, %142 : vector<2x32xf32>
    %144 = math.tanh %143 : vector<2x32xf32>
    %145 = arith.mulf %140, %144 : vector<2x32xf32>
    %146 = arith.truncf %145 : vector<2x32xf32> to vector<2x32xbf16>
    %147 = arith.index_cast %c2_i32 : i32 to index
    %c0_74 = arith.constant 0 : index
    %c0_75 = arith.constant 0 : index
    %148 = vector.load %arg9[%147, %c0_74, %c0_75] : memref<8x2x32xbf16, #tpu.memory_space<vmem>>, vector<1x2x32xbf16>
    %149 = vector.shape_cast %148 : vector<1x2x32xbf16> to vector<2x32xbf16>
    %150 = vector.shape_cast %146 : vector<2x32xbf16> to vector<1x2x32xbf16>
    tpu.vector_store %arg9[%147, %c0_74, %c0_75], %150 {strides = array<i32>} : memref<8x2x32xbf16, #tpu.memory_space<vmem>>, vector<1x2x32xbf16>,
    %c3_i32 = arith.constant 3 : i32
    %cst_76 = arith.constant dense<0.000000e+00> : vector<2x32xf32>
    %151 = tpu.matmul %146, %4, %cst_76 {dimension_numbers = #tpu.dot_dimension_numbers<[1], [0], [0], [1], [0, 0, 1, 1], [], []>} : vector<2x32xbf16>, vector<32x32xbf16>, vector<2x32xf32> -> vector<2x32xf32>
    %cst_77 = arith.constant dense<0.000000e+00> : vector<2x32xf32>
    %152 = tpu.matmul %146, %6, %cst_77 {dimension_numbers = #tpu.dot_dimension_numbers<[1], [0], [0], [1], [0, 0, 1, 1], [], []>} : vector<2x32xbf16>, vector<32x32xbf16>, vector<2x32xf32> -> vector<2x32xf32>
    %cst_78 = arith.constant dense<0.000000e+00> : vector<2x32xf32>
    %153 = tpu.matmul %146, %8, %cst_78 {dimension_numbers = #tpu.dot_dimension_numbers<[1], [0], [0], [1], [0, 0, 1, 1], [], []>} : vector<2x32xbf16>, vector<32x32xbf16>, vector<2x32xf32> -> vector<2x32xf32>
    %cst_79 = arith.constant dense<0.000000e+00> : vector<2x32xf32>
    %154 = tpu.matmul %146, %10, %cst_79 {dimension_numbers = #tpu.dot_dimension_numbers<[1], [0], [0], [1], [0, 0, 1, 1], [], []>} : vector<2x32xbf16>, vector<32x32xbf16>, vector<2x32xf32> -> vector<2x32xf32>
    %c0_80 = arith.constant 0 : index
    %155 = arith.index_cast %c3_i32 : i32 to index
    %c0_81 = arith.constant 0 : index
    %c0_82 = arith.constant 0 : index
    %156 = vector.load %arg2[%c0_80, %155, %c0_81, %c0_82] : memref<4x8x2x32xf32, #tpu.memory_space<vmem>>, vector<1x1x2x32xf32>
    %157 = vector.shape_cast %156 : vector<1x1x2x32xf32> to vector<2x32xf32>
    %158 = arith.addf %157, %151 : vector<2x32xf32>
    %159 = arith.negf %158 : vector<2x32xf32>
    %160 = math.exp %159 : vector<2x32xf32>
    %cst_83 = arith.constant 1.000000e+00 : f32
    %161 = vector.broadcast %cst_83 : f32 to vector<2x32xf32>
    %162 = arith.addf %161, %160 : vector<2x32xf32>
    %163 = arith.divf %161, %162 : vector<2x32xf32>
    %c1_84 = arith.constant 1 : index
    %164 = arith.index_cast %c3_i32 : i32 to index
    %c0_85 = arith.constant 0 : index
    %c0_86 = arith.constant 0 : index
    %165 = vector.load %arg2[%c1_84, %164, %c0_85, %c0_86] : memref<4x8x2x32xf32, #tpu.memory_space<vmem>>, vector<1x1x2x32xf32>
    %166 = vector.shape_cast %165 : vector<1x1x2x32xf32> to vector<2x32xf32>
    %167 = arith.addf %166, %152 : vector<2x32xf32>
    %168 = arith.negf %167 : vector<2x32xf32>
    %169 = math.exp %168 : vector<2x32xf32>
    %cst_87 = arith.constant 1.000000e+00 : f32
    %170 = vector.broadcast %cst_87 : f32 to vector<2x32xf32>
    %171 = arith.addf %170, %169 : vector<2x32xf32>
    %172 = arith.divf %170, %171 : vector<2x32xf32>
    %c2_88 = arith.constant 2 : index
    %173 = arith.index_cast %c3_i32 : i32 to index
    %c0_89 = arith.constant 0 : index
    %c0_90 = arith.constant 0 : index
    %174 = vector.load %arg2[%c2_88, %173, %c0_89, %c0_90] : memref<4x8x2x32xf32, #tpu.memory_space<vmem>>, vector<1x1x2x32xf32>
    %175 = vector.shape_cast %174 : vector<1x1x2x32xf32> to vector<2x32xf32>
    %176 = arith.addf %175, %153 : vector<2x32xf32>
    %177 = math.tanh %176 : vector<2x32xf32>
    %c3_91 = arith.constant 3 : index
    %178 = arith.index_cast %c3_i32 : i32 to index
    %c0_92 = arith.constant 0 : index
    %c0_93 = arith.constant 0 : index
    %179 = vector.load %arg2[%c3_91, %178, %c0_92, %c0_93] : memref<4x8x2x32xf32, #tpu.memory_space<vmem>>, vector<1x1x2x32xf32>
    %180 = vector.shape_cast %179 : vector<1x1x2x32xf32> to vector<2x32xf32>
    %181 = arith.addf %180, %154 : vector<2x32xf32>
    %182 = arith.negf %181 : vector<2x32xf32>
    %183 = math.exp %182 : vector<2x32xf32>
    %cst_94 = arith.constant 1.000000e+00 : f32
    %184 = vector.broadcast %cst_94 : f32 to vector<2x32xf32>
    %185 = arith.addf %184, %183 : vector<2x32xf32>
    %186 = arith.divf %184, %185 : vector<2x32xf32>
    %187 = arith.mulf %172, %143 : vector<2x32xf32>
    %188 = arith.mulf %163, %177 : vector<2x32xf32>
    %189 = arith.addf %187, %188 : vector<2x32xf32>
    %190 = math.tanh %189 : vector<2x32xf32>
    %191 = arith.mulf %186, %190 : vector<2x32xf32>
    %192 = arith.truncf %191 : vector<2x32xf32> to vector<2x32xbf16>
    %193 = arith.index_cast %c3_i32 : i32 to index
    %c0_95 = arith.constant 0 : index
    %c0_96 = arith.constant 0 : index
    %194 = vector.load %arg9[%193, %c0_95, %c0_96] : memref<8x2x32xbf16, #tpu.memory_space<vmem>>, vector<1x2x32xbf16>
    %195 = vector.shape_cast %194 : vector<1x2x32xbf16> to vector<2x32xbf16>
    %196 = vector.shape_cast %192 : vector<2x32xbf16> to vector<1x2x32xbf16>
    tpu.vector_store %arg9[%193, %c0_95, %c0_96], %196 {strides = array<i32>} : memref<8x2x32xbf16, #tpu.memory_space<vmem>>, vector<1x2x32xbf16>,
    %c4_i32 = arith.constant 4 : i32
    %cst_97 = arith.constant dense<0.000000e+00> : vector<2x32xf32>
    %197 = tpu.matmul %192, %4, %cst_97 {dimension_numbers = #tpu.dot_dimension_numbers<[1], [0], [0], [1], [0, 0, 1, 1], [], []>} : vector<2x32xbf16>, vector<32x32xbf16>, vector<2x32xf32> -> vector<2x32xf32>
    %cst_98 = arith.constant dense<0.000000e+00> : vector<2x32xf32>
    %198 = tpu.matmul %192, %6, %cst_98 {dimension_numbers = #tpu.dot_dimension_numbers<[1], [0], [0], [1], [0, 0, 1, 1], [], []>} : vector<2x32xbf16>, vector<32x32xbf16>, vector<2x32xf32> -> vector<2x32xf32>
    %cst_99 = arith.constant dense<0.000000e+00> : vector<2x32xf32>
    %199 = tpu.matmul %192, %8, %cst_99 {dimension_numbers = #tpu.dot_dimension_numbers<[1], [0], [0], [1], [0, 0, 1, 1], [], []>} : vector<2x32xbf16>, vector<32x32xbf16>, vector<2x32xf32> -> vector<2x32xf32>
    %cst_100 = arith.constant dense<0.000000e+00> : vector<2x32xf32>
    %200 = tpu.matmul %192, %10, %cst_100 {dimension_numbers = #tpu.dot_dimension_numbers<[1], [0], [0], [1], [0, 0, 1, 1], [], []>} : vector<2x32xbf16>, vector<32x32xbf16>, vector<2x32xf32> -> vector<2x32xf32>
    %c0_101 = arith.constant 0 : index
    %201 = arith.index_cast %c4_i32 : i32 to index
    %c0_102 = arith.constant 0 : index
    %c0_103 = arith.constant 0 : index
    %202 = vector.load %arg2[%c0_101, %201, %c0_102, %c0_103] : memref<4x8x2x32xf32, #tpu.memory_space<vmem>>, vector<1x1x2x32xf32>
    %203 = vector.shape_cast %202 : vector<1x1x2x32xf32> to vector<2x32xf32>
    %204 = arith.addf %203, %197 : vector<2x32xf32>
    %205 = arith.negf %204 : vector<2x32xf32>
    %206 = math.exp %205 : vector<2x32xf32>
    %cst_104 = arith.constant 1.000000e+00 : f32
    %207 = vector.broadcast %cst_104 : f32 to vector<2x32xf32>
    %208 = arith.addf %207, %206 : vector<2x32xf32>
    %209 = arith.divf %207, %208 : vector<2x32xf32>
    %c1_105 = arith.constant 1 : index
    %210 = arith.index_cast %c4_i32 : i32 to index
    %c0_106 = arith.constant 0 : index
    %c0_107 = arith.constant 0 : index
    %211 = vector.load %arg2[%c1_105, %210, %c0_106, %c0_107] : memref<4x8x2x32xf32, #tpu.memory_space<vmem>>, vector<1x1x2x32xf32>
    %212 = vector.shape_cast %211 : vector<1x1x2x32xf32> to vector<2x32xf32>
    %213 = arith.addf %212, %198 : vector<2x32xf32>
    %214 = arith.negf %213 : vector<2x32xf32>
    %215 = math.exp %214 : vector<2x32xf32>
    %cst_108 = arith.constant 1.000000e+00 : f32
    %216 = vector.broadcast %cst_108 : f32 to vector<2x32xf32>
    %217 = arith.addf %216, %215 : vector<2x32xf32>
    %218 = arith.divf %216, %217 : vector<2x32xf32>
    %c2_109 = arith.constant 2 : index
    %219 = arith.index_cast %c4_i32 : i32 to index
    %c0_110 = arith.constant 0 : index
    %c0_111 = arith.constant 0 : index
    %220 = vector.load %arg2[%c2_109, %219, %c0_110, %c0_111] : memref<4x8x2x32xf32, #tpu.memory_space<vmem>>, vector<1x1x2x32xf32>
    %221 = vector.shape_cast %220 : vector<1x1x2x32xf32> to vector<2x32xf32>
    %222 = arith.addf %221, %199 : vector<2x32xf32>
    %223 = math.tanh %222 : vector<2x32xf32>
    %c3_112 = arith.constant 3 : index
    %224 = arith.index_cast %c4_i32 : i32 to index
    %c0_113 = arith.constant 0 : index
    %c0_114 = arith.constant 0 : index
    %225 = vector.load %arg2[%c3_112, %224, %c0_113, %c0_114] : memref<4x8x2x32xf32, #tpu.memory_space<vmem>>, vector<1x1x2x32xf32>
    %226 = vector.shape_cast %225 : vector<1x1x2x32xf32> to vector<2x32xf32>
    %227 = arith.addf %226, %200 : vector<2x32xf32>
    %228 = arith.negf %227 : vector<2x32xf32>
    %229 = math.exp %228 : vector<2x32xf32>
    %cst_115 = arith.constant 1.000000e+00 : f32
    %230 = vector.broadcast %cst_115 : f32 to vector<2x32xf32>
    %231 = arith.addf %230, %229 : vector<2x32xf32>
    %232 = arith.divf %230, %231 : vector<2x32xf32>
    %233 = arith.mulf %218, %189 : vector<2x32xf32>
    %234 = arith.mulf %209, %223 : vector<2x32xf32>
    %235 = arith.addf %233, %234 : vector<2x32xf32>
    %236 = math.tanh %235 : vector<2x32xf32>
    %237 = arith.mulf %232, %236 : vector<2x32xf32>
    %238 = arith.truncf %237 : vector<2x32xf32> to vector<2x32xbf16>
    %239 = arith.index_cast %c4_i32 : i32 to index
    %c0_116 = arith.constant 0 : index
    %c0_117 = arith.constant 0 : index
    %240 = vector.load %arg9[%239, %c0_116, %c0_117] : memref<8x2x32xbf16, #tpu.memory_space<vmem>>, vector<1x2x32xbf16>
    %241 = vector.shape_cast %240 : vector<1x2x32xbf16> to vector<2x32xbf16>
    %242 = vector.shape_cast %238 : vector<2x32xbf16> to vector<1x2x32xbf16>
    tpu.vector_store %arg9[%239, %c0_116, %c0_117], %242 {strides = array<i32>} : memref<8x2x32xbf16, #tpu.memory_space<vmem>>, vector<1x2x32xbf16>,
    %c5_i32 = arith.constant 5 : i32
    %cst_118 = arith.constant dense<0.000000e+00> : vector<2x32xf32>
    %243 = tpu.matmul %238, %4, %cst_118 {dimension_numbers = #tpu.dot_dimension_numbers<[1], [0], [0], [1], [0, 0, 1, 1], [], []>} : vector<2x32xbf16>, vector<32x32xbf16>, vector<2x32xf32> -> vector<2x32xf32>
    %cst_119 = arith.constant dense<0.000000e+00> : vector<2x32xf32>
    %244 = tpu.matmul %238, %6, %cst_119 {dimension_numbers = #tpu.dot_dimension_numbers<[1], [0], [0], [1], [0, 0, 1, 1], [], []>} : vector<2x32xbf16>, vector<32x32xbf16>, vector<2x32xf32> -> vector<2x32xf32>
    %cst_120 = arith.constant dense<0.000000e+00> : vector<2x32xf32>
    %245 = tpu.matmul %238, %8, %cst_120 {dimension_numbers = #tpu.dot_dimension_numbers<[1], [0], [0], [1], [0, 0, 1, 1], [], []>} : vector<2x32xbf16>, vector<32x32xbf16>, vector<2x32xf32> -> vector<2x32xf32>
    %cst_121 = arith.constant dense<0.000000e+00> : vector<2x32xf32>
    %246 = tpu.matmul %238, %10, %cst_121 {dimension_numbers = #tpu.dot_dimension_numbers<[1], [0], [0], [1], [0, 0, 1, 1], [], []>} : vector<2x32xbf16>, vector<32x32xbf16>, vector<2x32xf32> -> vector<2x32xf32>
    %c0_122 = arith.constant 0 : index
    %247 = arith.index_cast %c5_i32 : i32 to index
    %c0_123 = arith.constant 0 : index
    %c0_124 = arith.constant 0 : index
    %248 = vector.load %arg2[%c0_122, %247, %c0_123, %c0_124] : memref<4x8x2x32xf32, #tpu.memory_space<vmem>>, vector<1x1x2x32xf32>
    %249 = vector.shape_cast %248 : vector<1x1x2x32xf32> to vector<2x32xf32>
    %250 = arith.addf %249, %243 : vector<2x32xf32>
    %251 = arith.negf %250 : vector<2x32xf32>
    %252 = math.exp %251 : vector<2x32xf32>
    %cst_125 = arith.constant 1.000000e+00 : f32
    %253 = vector.broadcast %cst_125 : f32 to vector<2x32xf32>
    %254 = arith.addf %253, %252 : vector<2x32xf32>
    %255 = arith.divf %253, %254 : vector<2x32xf32>
    %c1_126 = arith.constant 1 : index
    %256 = arith.index_cast %c5_i32 : i32 to index
    %c0_127 = arith.constant 0 : index
    %c0_128 = arith.constant 0 : index
    %257 = vector.load %arg2[%c1_126, %256, %c0_127, %c0_128] : memref<4x8x2x32xf32, #tpu.memory_space<vmem>>, vector<1x1x2x32xf32>
    %258 = vector.shape_cast %257 : vector<1x1x2x32xf32> to vector<2x32xf32>
    %259 = arith.addf %258, %244 : vector<2x32xf32>
    %260 = arith.negf %259 : vector<2x32xf32>
    %261 = math.exp %260 : vector<2x32xf32>
    %cst_129 = arith.constant 1.000000e+00 : f32
    %262 = vector.broadcast %cst_129 : f32 to vector<2x32xf32>
    %263 = arith.addf %262, %261 : vector<2x32xf32>
    %264 = arith.divf %262, %263 : vector<2x32xf32>
    %c2_130 = arith.constant 2 : index
    %265 = arith.index_cast %c5_i32 : i32 to index
    %c0_131 = arith.constant 0 : index
    %c0_132 = arith.constant 0 : index
    %266 = vector.load %arg2[%c2_130, %265, %c0_131, %c0_132] : memref<4x8x2x32xf32, #tpu.memory_space<vmem>>, vector<1x1x2x32xf32>
    %267 = vector.shape_cast %266 : vector<1x1x2x32xf32> to vector<2x32xf32>
    %268 = arith.addf %267, %245 : vector<2x32xf32>
    %269 = math.tanh %268 : vector<2x32xf32>
    %c3_133 = arith.constant 3 : index
    %270 = arith.index_cast %c5_i32 : i32 to index
    %c0_134 = arith.constant 0 : index
    %c0_135 = arith.constant 0 : index
    %271 = vector.load %arg2[%c3_133, %270, %c0_134, %c0_135] : memref<4x8x2x32xf32, #tpu.memory_space<vmem>>, vector<1x1x2x32xf32>
    %272 = vector.shape_cast %271 : vector<1x1x2x32xf32> to vector<2x32xf32>
    %273 = arith.addf %272, %246 : vector<2x32xf32>
    %274 = arith.negf %273 : vector<2x32xf32>
    %275 = math.exp %274 : vector<2x32xf32>
    %cst_136 = arith.constant 1.000000e+00 : f32
    %276 = vector.broadcast %cst_136 : f32 to vector<2x32xf32>
    %277 = arith.addf %276, %275 : vector<2x32xf32>
    %278 = arith.divf %276, %277 : vector<2x32xf32>
    %279 = arith.mulf %264, %235 : vector<2x32xf32>
    %280 = arith.mulf %255, %269 : vector<2x32xf32>
    %281 = arith.addf %279, %280 : vector<2x32xf32>
    %282 = math.tanh %281 : vector<2x32xf32>
    %283 = arith.mulf %278, %282 : vector<2x32xf32>
    %284 = arith.truncf %283 : vector<2x32xf32> to vector<2x32xbf16>
    %285 = arith.index_cast %c5_i32 : i32 to index
    %c0_137 = arith.constant 0 : index
    %c0_138 = arith.constant 0 : index
    %286 = vector.load %arg9[%285, %c0_137, %c0_138] : memref<8x2x32xbf16, #tpu.memory_space<vmem>>, vector<1x2x32xbf16>
    %287 = vector.shape_cast %286 : vector<1x2x32xbf16> to vector<2x32xbf16>
    %288 = vector.shape_cast %284 : vector<2x32xbf16> to vector<1x2x32xbf16>
    tpu.vector_store %arg9[%285, %c0_137, %c0_138], %288 {strides = array<i32>} : memref<8x2x32xbf16, #tpu.memory_space<vmem>>, vector<1x2x32xbf16>,
    %c6_i32 = arith.constant 6 : i32
    %cst_139 = arith.constant dense<0.000000e+00> : vector<2x32xf32>
    %289 = tpu.matmul %284, %4, %cst_139 {dimension_numbers = #tpu.dot_dimension_numbers<[1], [0], [0], [1], [0, 0, 1, 1], [], []>} : vector<2x32xbf16>, vector<32x32xbf16>, vector<2x32xf32> -> vector<2x32xf32>
    %cst_140 = arith.constant dense<0.000000e+00> : vector<2x32xf32>
    %290 = tpu.matmul %284, %6, %cst_140 {dimension_numbers = #tpu.dot_dimension_numbers<[1], [0], [0], [1], [0, 0, 1, 1], [], []>} : vector<2x32xbf16>, vector<32x32xbf16>, vector<2x32xf32> -> vector<2x32xf32>
    %cst_141 = arith.constant dense<0.000000e+00> : vector<2x32xf32>
    %291 = tpu.matmul %284, %8, %cst_141 {dimension_numbers = #tpu.dot_dimension_numbers<[1], [0], [0], [1], [0, 0, 1, 1], [], []>} : vector<2x32xbf16>, vector<32x32xbf16>, vector<2x32xf32> -> vector<2x32xf32>
    %cst_142 = arith.constant dense<0.000000e+00> : vector<2x32xf32>
    %292 = tpu.matmul %284, %10, %cst_142 {dimension_numbers = #tpu.dot_dimension_numbers<[1], [0], [0], [1], [0, 0, 1, 1], [], []>} : vector<2x32xbf16>, vector<32x32xbf16>, vector<2x32xf32> -> vector<2x32xf32>
    %c0_143 = arith.constant 0 : index
    %293 = arith.index_cast %c6_i32 : i32 to index
    %c0_144 = arith.constant 0 : index
    %c0_145 = arith.constant 0 : index
    %294 = vector.load %arg2[%c0_143, %293, %c0_144, %c0_145] : memref<4x8x2x32xf32, #tpu.memory_space<vmem>>, vector<1x1x2x32xf32>
    %295 = vector.shape_cast %294 : vector<1x1x2x32xf32> to vector<2x32xf32>
    %296 = arith.addf %295, %289 : vector<2x32xf32>
    %297 = arith.negf %296 : vector<2x32xf32>
    %298 = math.exp %297 : vector<2x32xf32>
    %cst_146 = arith.constant 1.000000e+00 : f32
    %299 = vector.broadcast %cst_146 : f32 to vector<2x32xf32>
    %300 = arith.addf %299, %298 : vector<2x32xf32>
    %301 = arith.divf %299, %300 : vector<2x32xf32>
    %c1_147 = arith.constant 1 : index
    %302 = arith.index_cast %c6_i32 : i32 to index
    %c0_148 = arith.constant 0 : index
    %c0_149 = arith.constant 0 : index
    %303 = vector.load %arg2[%c1_147, %302, %c0_148, %c0_149] : memref<4x8x2x32xf32, #tpu.memory_space<vmem>>, vector<1x1x2x32xf32>
    %304 = vector.shape_cast %303 : vector<1x1x2x32xf32> to vector<2x32xf32>
    %305 = arith.addf %304, %290 : vector<2x32xf32>
    %306 = arith.negf %305 : vector<2x32xf32>
    %307 = math.exp %306 : vector<2x32xf32>
    %cst_150 = arith.constant 1.000000e+00 : f32
    %308 = vector.broadcast %cst_150 : f32 to vector<2x32xf32>
    %309 = arith.addf %308, %307 : vector<2x32xf32>
    %310 = arith.divf %308, %309 : vector<2x32xf32>
    %c2_151 = arith.constant 2 : index
    %311 = arith.index_cast %c6_i32 : i32 to index
    %c0_152 = arith.constant 0 : index
    %c0_153 = arith.constant 0 : index
    %312 = vector.load %arg2[%c2_151, %311, %c0_152, %c0_153] : memref<4x8x2x32xf32, #tpu.memory_space<vmem>>, vector<1x1x2x32xf32>
    %313 = vector.shape_cast %312 : vector<1x1x2x32xf32> to vector<2x32xf32>
    %314 = arith.addf %313, %291 : vector<2x32xf32>
    %315 = math.tanh %314 : vector<2x32xf32>
    %c3_154 = arith.constant 3 : index
    %316 = arith.index_cast %c6_i32 : i32 to index
    %c0_155 = arith.constant 0 : index
    %c0_156 = arith.constant 0 : index
    %317 = vector.load %arg2[%c3_154, %316, %c0_155, %c0_156] : memref<4x8x2x32xf32, #tpu.memory_space<vmem>>, vector<1x1x2x32xf32>
    %318 = vector.shape_cast %317 : vector<1x1x2x32xf32> to vector<2x32xf32>
    %319 = arith.addf %318, %292 : vector<2x32xf32>
    %320 = arith.negf %319 : vector<2x32xf32>
    %321 = math.exp %320 : vector<2x32xf32>
    %cst_157 = arith.constant 1.000000e+00 : f32
    %322 = vector.broadcast %cst_157 : f32 to vector<2x32xf32>
    %323 = arith.addf %322, %321 : vector<2x32xf32>
    %324 = arith.divf %322, %323 : vector<2x32xf32>
    %325 = arith.mulf %310, %281 : vector<2x32xf32>
    %326 = arith.mulf %301, %315 : vector<2x32xf32>
    %327 = arith.addf %325, %326 : vector<2x32xf32>
    %328 = math.tanh %327 : vector<2x32xf32>
    %329 = arith.mulf %324, %328 : vector<2x32xf32>
    %330 = arith.truncf %329 : vector<2x32xf32> to vector<2x32xbf16>
    %331 = arith.index_cast %c6_i32 : i32 to index
    %c0_158 = arith.constant 0 : index
    %c0_159 = arith.constant 0 : index
    %332 = vector.load %arg9[%331, %c0_158, %c0_159] : memref<8x2x32xbf16, #tpu.memory_space<vmem>>, vector<1x2x32xbf16>
    %333 = vector.shape_cast %332 : vector<1x2x32xbf16> to vector<2x32xbf16>
    %334 = vector.shape_cast %330 : vector<2x32xbf16> to vector<1x2x32xbf16>
    tpu.vector_store %arg9[%331, %c0_158, %c0_159], %334 {strides = array<i32>} : memref<8x2x32xbf16, #tpu.memory_space<vmem>>, vector<1x2x32xbf16>,
    %c7_i32 = arith.constant 7 : i32
    %cst_160 = arith.constant dense<0.000000e+00> : vector<2x32xf32>
    %335 = tpu.matmul %330, %4, %cst_160 {dimension_numbers = #tpu.dot_dimension_numbers<[1], [0], [0], [1], [0, 0, 1, 1], [], []>} : vector<2x32xbf16>, vector<32x32xbf16>, vector<2x32xf32> -> vector<2x32xf32>
    %cst_161 = arith.constant dense<0.000000e+00> : vector<2x32xf32>
    %336 = tpu.matmul %330, %6, %cst_161 {dimension_numbers = #tpu.dot_dimension_numbers<[1], [0], [0], [1], [0, 0, 1, 1], [], []>} : vector<2x32xbf16>, vector<32x32xbf16>, vector<2x32xf32> -> vector<2x32xf32>
    %cst_162 = arith.constant dense<0.000000e+00> : vector<2x32xf32>
    %337 = tpu.matmul %330, %8, %cst_162 {dimension_numbers = #tpu.dot_dimension_numbers<[1], [0], [0], [1], [0, 0, 1, 1], [], []>} : vector<2x32xbf16>, vector<32x32xbf16>, vector<2x32xf32> -> vector<2x32xf32>
    %cst_163 = arith.constant dense<0.000000e+00> : vector<2x32xf32>
    %338 = tpu.matmul %330, %10, %cst_163 {dimension_numbers = #tpu.dot_dimension_numbers<[1], [0], [0], [1], [0, 0, 1, 1], [], []>} : vector<2x32xbf16>, vector<32x32xbf16>, vector<2x32xf32> -> vector<2x32xf32>
    %c0_164 = arith.constant 0 : index
    %339 = arith.index_cast %c7_i32 : i32 to index
    %c0_165 = arith.constant 0 : index
    %c0_166 = arith.constant 0 : index
    %340 = vector.load %arg2[%c0_164, %339, %c0_165, %c0_166] : memref<4x8x2x32xf32, #tpu.memory_space<vmem>>, vector<1x1x2x32xf32>
    %341 = vector.shape_cast %340 : vector<1x1x2x32xf32> to vector<2x32xf32>
    %342 = arith.addf %341, %335 : vector<2x32xf32>
    %343 = arith.negf %342 : vector<2x32xf32>
    %344 = math.exp %343 : vector<2x32xf32>
    %cst_167 = arith.constant 1.000000e+00 : f32
    %345 = vector.broadcast %cst_167 : f32 to vector<2x32xf32>
    %346 = arith.addf %345, %344 : vector<2x32xf32>
    %347 = arith.divf %345, %346 : vector<2x32xf32>
    %c1_168 = arith.constant 1 : index
    %348 = arith.index_cast %c7_i32 : i32 to index
    %c0_169 = arith.constant 0 : index
    %c0_170 = arith.constant 0 : index
    %349 = vector.load %arg2[%c1_168, %348, %c0_169, %c0_170] : memref<4x8x2x32xf32, #tpu.memory_space<vmem>>, vector<1x1x2x32xf32>
    %350 = vector.shape_cast %349 : vector<1x1x2x32xf32> to vector<2x32xf32>
    %351 = arith.addf %350, %336 : vector<2x32xf32>
    %352 = arith.negf %351 : vector<2x32xf32>
    %353 = math.exp %352 : vector<2x32xf32>
    %cst_171 = arith.constant 1.000000e+00 : f32
    %354 = vector.broadcast %cst_171 : f32 to vector<2x32xf32>
    %355 = arith.addf %354, %353 : vector<2x32xf32>
    %356 = arith.divf %354, %355 : vector<2x32xf32>
    %c2_172 = arith.constant 2 : index
    %357 = arith.index_cast %c7_i32 : i32 to index
    %c0_173 = arith.constant 0 : index
    %c0_174 = arith.constant 0 : index
    %358 = vector.load %arg2[%c2_172, %357, %c0_173, %c0_174] : memref<4x8x2x32xf32, #tpu.memory_space<vmem>>, vector<1x1x2x32xf32>
    %359 = vector.shape_cast %358 : vector<1x1x2x32xf32> to vector<2x32xf32>
    %360 = arith.addf %359, %337 : vector<2x32xf32>
    %361 = math.tanh %360 : vector<2x32xf32>
    %c3_175 = arith.constant 3 : index
    %362 = arith.index_cast %c7_i32 : i32 to index
    %c0_176 = arith.constant 0 : index
    %c0_177 = arith.constant 0 : index
    %363 = vector.load %arg2[%c3_175, %362, %c0_176, %c0_177] : memref<4x8x2x32xf32, #tpu.memory_space<vmem>>, vector<1x1x2x32xf32>
    %364 = vector.shape_cast %363 : vector<1x1x2x32xf32> to vector<2x32xf32>
    %365 = arith.addf %364, %338 : vector<2x32xf32>
    %366 = arith.negf %365 : vector<2x32xf32>
    %367 = math.exp %366 : vector<2x32xf32>
    %cst_178 = arith.constant 1.000000e+00 : f32
    %368 = vector.broadcast %cst_178 : f32 to vector<2x32xf32>
    %369 = arith.addf %368, %367 : vector<2x32xf32>
    %370 = arith.divf %368, %369 : vector<2x32xf32>
    %371 = arith.mulf %356, %327 : vector<2x32xf32>
    %372 = arith.mulf %347, %361 : vector<2x32xf32>
    %373 = arith.addf %371, %372 : vector<2x32xf32>
    %374 = math.tanh %373 : vector<2x32xf32>
    %375 = arith.mulf %370, %374 : vector<2x32xf32>
    %376 = arith.truncf %375 : vector<2x32xf32> to vector<2x32xbf16>
    %377 = arith.index_cast %c7_i32 : i32 to index
    %c0_179 = arith.constant 0 : index
    %c0_180 = arith.constant 0 : index
    %378 = vector.load %arg9[%377, %c0_179, %c0_180] : memref<8x2x32xbf16, #tpu.memory_space<vmem>>, vector<1x2x32xbf16>
    %379 = vector.shape_cast %378 : vector<1x2x32xbf16> to vector<2x32xbf16>
    %380 = vector.shape_cast %376 : vector<2x32xbf16> to vector<1x2x32xbf16>
    tpu.vector_store %arg9[%377, %c0_179, %c0_180], %380 {strides = array<i32>} : memref<8x2x32xbf16, #tpu.memory_space<vmem>>, vector<1x2x32xbf16>,
    %c8_i32 = arith.constant 8 : i32
    %c0_181 = arith.constant 0 : index
    %c0_182 = arith.constant 0 : index
    %381 = vector.load %arg7[%c0_181, %c0_182] : memref<2x32xbf16, #tpu.memory_space<vmem>>, vector<2x32xbf16>
    tpu.vector_store %arg7[%c0_181, %c0_182], %376 {strides = array<i32>} : memref<2x32xbf16, #tpu.memory_space<vmem>>, vector<2x32xbf16>,
    %c0_183 = arith.constant 0 : index
    %c0_184 = arith.constant 0 : index
    %382 = vector.load %arg8[%c0_183, %c0_184] : memref<2x32xf32, #tpu.memory_space<vmem>>, vector<2x32xf32>
    tpu.vector_store %arg8[%c0_183, %c0_184], %373 {strides = array<i32>} : memref<2x32xf32, #tpu.memory_space<vmem>>, vector<2x32xf32>,
    %c0_185 = arith.constant 0 : index
    %c0_186 = arith.constant 0 : index
    %c0_187 = arith.constant 0 : index
    %383 = vector.load %arg9[%c0_185, %c0_186, %c0_187] : memref<8x2x32xbf16, #tpu.memory_space<vmem>>, vector<8x2x32xbf16>
    %384 = vector.shape_cast %383 : vector<8x2x32xbf16> to vector<16x32xbf16>
    %c0_188 = arith.constant 0 : index
    %c0_189 = arith.constant 0 : index
    %385 = vector.load %arg4[%c0_188, %c0_189] : memref<32x8xbf16, #tpu.memory_space<vmem>>, vector<32x8xbf16>
    %cst_190 = arith.constant dense<0.000000e+00> : vector<16x8xf32>
    %386 = tpu.matmul %384, %385, %cst_190 {dimension_numbers = #tpu.dot_dimension_numbers<[1], [0], [0], [1], [0, 0, 1, 1], [], []>} : vector<16x32xbf16>, vector<32x8xbf16>, vector<16x8xf32> -> vector<16x8xf32>
    %c0_191 = arith.constant 0 : index
    %c0_192 = arith.constant 0 : index
    %387 = vector.load %arg5[%c0_191, %c0_192] : memref<1x8xf32, #tpu.memory_space<vmem>>, vector<1x8xf32>
    %388 = vector.broadcast %387 : vector<1x8xf32> to vector<16x8xf32>
    %389 = arith.addf %386, %388 : vector<16x8xf32>
    %390 = vector.shape_cast %389 : vector<16x8xf32> to vector<8x2x8xf32>
    %c0_193 = arith.constant 0 : index
    %c0_194 = arith.constant 0 : index
    %c0_195 = arith.constant 0 : index
    %391 = vector.load %arg6[%c0_193, %c0_194, %c0_195] : memref<8x2x8xf32, #tpu.memory_space<vmem>>, vector<8x2x8xf32>
    tpu.vector_store %arg6[%c0_193, %c0_194, %c0_195], %390 {strides = array<i32>} : memref<8x2x8xf32, #tpu.memory_space<vmem>>, vector<8x2x8xf32>,
    return
  }
  func.func @transform_0(%arg0: i32, %arg1: i32) -> (i32, i32, i32, i32) {
    %c0_i32 = arith.constant 0 : i32
    %c0_i32_0 = arith.constant 0 : i32
    %c0_i32_1 = arith.constant 0 : i32
    return %c0_i32, %arg1, %arg0, %c0_i32_0 : i32, i32, i32, i32
  }
  func.func @transform_1(%arg0: i32, %arg1: i32) -> (i32, i32, i32) {
    %c0_i32 = arith.constant 0 : i32
    %c0_i32_0 = arith.constant 0 : i32
    %c0_i32_1 = arith.constant 0 : i32
    %c0_i32_2 = arith.constant 0 : i32
    return %c0_i32, %c0_i32_0, %c0_i32_1 : i32, i32, i32
  }
  func.func @transform_2(%arg0: i32, %arg1: i32) -> (i32, i32) {
    %c0_i32 = arith.constant 0 : i32
    %c0_i32_0 = arith.constant 0 : i32
    %c0_i32_1 = arith.constant 0 : i32
    return %c0_i32, %c0_i32_0 : i32, i32
  }
  func.func @transform_3(%arg0: i32, %arg1: i32) -> (i32, i32) {
    %c0_i32 = arith.constant 0 : i32
    %c0_i32_0 = arith.constant 0 : i32
    %c0_i32_1 = arith.constant 0 : i32
    return %c0_i32, %c0_i32_0 : i32, i32
  }
  func.func @transform_4(%arg0: i32, %arg1: i32) -> (i32, i32, i32) {
    %c0_i32 = arith.constant 0 : i32
    %c0_i32_0 = arith.constant 0 : i32
    return %arg1, %arg0, %c0_i32 : i32, i32, i32
  }
}

</mosaic_0001>

<llo_original>
// kernel: lstm_model_forward.4
$region0: #{lstm_model_forward.4}
  #allocation0 [shape = 'u32[]', space=smem, size = 0x4, offset = 0x4, fixed_abs, tag = 'smem constant byte address 0x4 - core index']
  #allocation1 [shape = 'u32[144,128]{1,0:T(1,128)}', space=vmem, size = 0x12000, scoped, tag = 'internal scratch']
  %s0 = inlined_call_operand.vmem [shape: bf16[16,4], index: 0, kind: input, shape index: {}]
  %s1 = inlined_call_operand.vmem [shape: bf16[4,4,32], index: 1, kind: input, shape index: {}]
  %s2 = inlined_call_operand.vmem [shape: f32[4,1,32], index: 2, kind: input, shape index: {}]
  %s3 = inlined_call_operand.vmem [shape: f32[4,16,32], index: 3, kind: output, shape index: {}]
  %s4 = sld [smem:[#allocation0]]
  $region45: #{lstm_model_forward.4} parent=0
    _
  %s6 = ssub.s32 1, %s4
  %s7 = scalar_select 0, %s6, %s4
  loop: start=0, step=1, limit=6
  $region2: #{lstm_model_forward.4} parent=0 // loop_pre_header
    _
  $region3: #{lstm_model_forward.4} parent=0 // loop_header
    %s9 = sphi 0, %s13
    %p10 = scmp.ge.s32.totalorder %s9, 6
    %s16 = sphi 0, %s28
    %s17 = sphi 0, %s24
    %s18 = sphi 0, %s16
    %s19 = sphi 0, %s17
    %s20 = sphi 0, %s18
    %s21 = sphi 0, %s19
    %s31 = sphi 0, %s33
    %s34 = sphi 0, %s31
    %s35 = sphi 0, %s34
    %s51 = sphi 0, %s35
    %s57 = sphi 0, %s59
    %s60 = sphi 0, %s57
    %s61 = sphi 0, %s60
    %s77 = sphi 0, %s61
    %s83 = sphi 0, %s85
    %s86 = sphi 0, %s83
    %s87 = sphi 0, %s86
    %s103 = sphi 0, %s87
    %s111 = sphi 0, %s113
    %s114 = sphi 0, %s111
    %s115 = sphi 0, %s114
    %s131 = sphi 0, %s115
  $region4: #{lstm_model_forward.4} parent=0 // loop_header_branch
    %12 = sbr.rel (%p10) target = $region8
  $region5: #{lstm_model_forward.4} parent=0 // loop_body
    %s14 = ssub.s32 %s9, 1
    %s15 = ssub.s32 %s9, 2
    %s22 = sadd.s32 1, %s17
    %p23 = scmp.ge.s32.totalorder %s22, 4
    %s24 = scalar_select %p23, 0, %s22
    %s25 = sadd.s32 1, %s16
    %s26 = scalar_select %p23, %s25, %s16
    %p27 = scmp.ge.s32.totalorder %s26, 1
    %s28 = scalar_select %p27, 0, %s26
    %s29 = ssub.s32 %s16, %s28
    %p30 = scmp.eq.s32.totalorder %s29, 0
    %s32 = sadd.s32 %s31, 1
    %s33 = scalar_select %p30, %s31, %s32
    %p36 = pneg %p30
    %p37 = scmp.eq.s32.totalorder %s9, 3
    %p38 = por %p36, %p37
    %p39 = scmp.ne.s32.totalorder %s31, %s34
    %p40 = scmp.eq.s32.totalorder %s9, 0
    %p41 = por %p39, %p40
    %p42 = scmp.ne.s32.totalorder %s31, %s34
    %p43 = scmp.eq.s32.totalorder %s14, 3
    %p44 = por %p42, %p43
    %p45 = scmp.ne.s32.totalorder %s34, %s35
    %p46 = scmp.eq.s32.totalorder %s14, 0
    %p47 = por %p45, %p46
    %p48 = scmp.ne.s32.totalorder %s34, %s35
    %p49 = scmp.eq.s32.totalorder %s15, 3
    %p50 = por %p48, %p49
    %p52 = scmp.ne.s32.totalorder %s35, %s51
    %p53 = scmp.eq.s32.totalorder %s15, 0
    %p54 = por %p52, %p53
    %s55 = ssub.s32 %s17, %s24
    %p56 = scmp.eq.s32.totalorder %s55, 0
    %s58 = sadd.s32 %s57, 1
    %s59 = scalar_select %p56, %s57, %s58
    %p62 = pneg %p56
    %p63 = scmp.eq.s32.totalorder %s9, 3
    %p64 = por %p62, %p63
    %p65 = scmp.ne.s32.totalorder %s57, %s60
    %p66 = scmp.eq.s32.totalorder %s9, 0
    %p67 = por %p65, %p66
    %p68 = scmp.ne.s32.totalorder %s57, %s60
    %p69 = scmp.eq.s32.totalorder %s14, 3
    %p70 = por %p68, %p69
    %p71 = scmp.ne.s32.totalorder %s60, %s61
    %p72 = scmp.eq.s32.totalorder %s14, 0
    %p73 = por %p71, %p72
    %p74 = scmp.ne.s32.totalorder %s60, %s61
    %p75 = scmp.eq.s32.totalorder %s15, 3
    %p76 = por %p74, %p75
    %p78 = scmp.ne.s32.totalorder %s61, %s77
    %p79 = scmp.eq.s32.totalorder %s15, 0
    %p80 = por %p78, %p79
    %s81 = ssub.s32 %s17, %s24
    %p82 = scmp.eq.s32.totalorder %s81, 0
    %s84 = sadd.s32 %s83, 1
    %s85 = scalar_select %p82, %s83, %s84
    %p88 = pneg %p82
    %p89 = scmp.eq.s32.totalorder %s9, 3
    %p90 = por %p88, %p89
    %p91 = scmp.ne.s32.totalorder %s83, %s86
    %p92 = scmp.eq.s32.totalorder %s9, 0
    %p93 = por %p91, %p92
    %p94 = scmp.ne.s32.totalorder %s83, %s86
    %p95 = scmp.eq.s32.totalorder %s14, 3
    %p96 = por %p94, %p95
    %p97 = scmp.ne.s32.totalorder %s86, %s87
    %p98 = scmp.eq.s32.totalorder %s14, 0
    %p99 = por %p97, %p98
    %p100 = scmp.ne.s32.totalorder %s86, %s87
    %p101 = scmp.eq.s32.totalorder %s15, 3
    %p102 = por %p100, %p101
    %p104 = scmp.ne.s32.totalorder %s87, %s103
    %p105 = scmp.eq.s32.totalorder %s15, 0
    %p106 = por %p104, %p105
    %s107 = ssub.s32 %s17, %s24
    %s108 = ssub.s32 %s16, %s28
    %s109 = sor.u32 %s107, %s108
    %p110 = scmp.eq.s32.totalorder %s109, 0
    %s112 = sadd.s32 %s111, 1
    %s113 = scalar_select %p110, %s111, %s112
    %p116 = pneg %p110
    %p117 = scmp.eq.s32.totalorder %s9, 3
    %p118 = por %p116, %p117
    %p119 = scmp.ne.s32.totalorder %s111, %s114
    %p120 = scmp.eq.s32.totalorder %s9, 0
    %p121 = por %p119, %p120
    %p122 = scmp.ne.s32.totalorder %s111, %s114
    %p123 = scmp.eq.s32.totalorder %s14, 3
    %p124 = por %p122, %p123
    %p125 = scmp.ne.s32.totalorder %s114, %s115
    %p126 = scmp.eq.s32.totalorder %s14, 0
    %p127 = por %p125, %p126
    %p128 = scmp.ne.s32.totalorder %s114, %s115
    %p129 = scmp.eq.s32.totalorder %s15, 3
    %p130 = por %p128, %p129
    %p132 = scmp.ne.s32.totalorder %s115, %s131
    %p133 = scmp.eq.s32.totalorder %s15, 0
    %p134 = por %p132, %p133
    %p135 = scmp.le.s32.totalorder 1, %s9
    %p136 = scmp.lt.s32.totalorder %s9, 5
    %p137 = pnand %p135, %p136
    %p138 = pneg %p137
    // Predicated region
    $region9: #{lstm_model_forward.4} parent=5 // pred_check
      _
    $region10: #{lstm_model_forward.4} parent=5 // pred_check_branch
      %140 = sbr.rel (%p137) target = $region12
    $region11: #{lstm_model_forward.4} parent=5 // pred_region
      %s141 = ssub.s32 %s9, 1
      // Predicated region
      $region13: #{lstm_model_forward.4} parent=11 // pred_check
        %p142 = pneg %p47
      $region14: #{lstm_model_forward.4} parent=11 // pred_check_branch
        %144 = sbr.rel (%p142) target = $region16
      $region15: #{lstm_model_forward.4} parent=11 // pred_region
        %s145 = smul.u32 2, %s18
        %p146 = scmp.lt.s32.totalorder %s145, 1
        %s147 = scalar_select %p146, %s145, 1
        %s148 = smul.addr %s147, 4
        %s149 = scalar_lea.vmem %s0, %s148
        %s150 = smul.u32 2, %s18
      $region16: #{lstm_model_forward.4} parent=11 // pred_fallthru
        _
    $region12: #{lstm_model_forward.4} parent=5 // pred_fallthru
      _
    %p151 = scmp.lt.s32.totalorder %s9, 4
    // Predicated region
    $region17: #{lstm_model_forward.4} parent=5 // pred_check
      %p152 = pneg %p151
    $region18: #{lstm_model_forward.4} parent=5 // pred_check_branch
      %154 = sbr.rel (%p152) target = $region20
    $region19: #{lstm_model_forward.4} parent=5 // pred_region
      // Predicated region
      $region21: #{lstm_model_forward.4} parent=19 // pred_check
        %p155 = pneg %p67
      $region22: #{lstm_model_forward.4} parent=19 // pred_check_branch
        %157 = sbr.rel (%p155) target = $region24
      $region23: #{lstm_model_forward.4} parent=19 // pred_region
        %p158 = scmp.lt.s32.totalorder %s17, 3
        %s159 = scalar_select %p158, %s17, 3
        %s160 = smul.addr %s159, 2
        %s161 = scalar_lea.vmem %s1, %s160
      $region24: #{lstm_model_forward.4} parent=19 // pred_fallthru
        _
      // Predicated region
      $region25: #{lstm_model_forward.4} parent=19 // pred_check
        %p162 = pneg %p93
      $region26: #{lstm_model_forward.4} parent=19 // pred_check_branch
        %164 = sbr.rel (%p162) target = $region28
      $region27: #{lstm_model_forward.4} parent=19 // pred_region
        %p165 = scmp.lt.s32.totalorder %s17, 3
        %s166 = scalar_select %p165, %s17, 3
        %s167 = scalar_lea.vmem %s2, %s166
      $region28: #{lstm_model_forward.4} parent=19 // pred_fallthru
        _
    $region20: #{lstm_model_forward.4} parent=5 // pred_fallthru
      _
    %p168 = scmp.le.s32.totalorder 1, %s9
    %p169 = scmp.lt.s32.totalorder %s9, 5
    %p170 = pnand %p168, %p169
    %p171 = pneg %p170
    // Predicated region
    $region29: #{lstm_model_forward.4} parent=5 // pred_check
      _
    $region30: #{lstm_model_forward.4} parent=5 // pred_check_branch
      %173 = sbr.rel (%p170) target = $region32
    $region31: #{lstm_model_forward.4} parent=5 // pred_region
      %s174 = ssub.s32 %s9, 1
      %s175 = smul.u32 2, %s18
      %p176 = scmp.lt.s32.totalorder %s175, 1
      %s177 = scalar_select %p176, %s175, 1
      %s178 = smul.addr %s177, 4
      %s179 = scalar_lea.vmem %s0, %s178
      %p180 = pneg %p47
      %p181 = pneg %p44
      %p182 = scmp.lt.s32.totalorder %s19, 3
      %s183 = scalar_select %p182, %s19, 3
      %s184 = smul.addr %s183, 2
      %s185 = scalar_lea.vmem %s1, %s184
      %p186 = pneg %p73
      %p187 = pneg %p70
      %p188 = scmp.lt.s32.totalorder %s19, 3
      %s189 = scalar_select %p188, %s19, 3
      %s190 = scalar_lea.vmem %s2, %s189
      %p191 = pneg %p99
      %p192 = pneg %p96
      %p193 = pneg %p127
      %p194 = pneg %p124
      %s195 = smul.u32 2, %s18
      %p196 = scmp.lt.s32.totalorder %s19, 3
      %s197 = scalar_select %p196, %s19, 3
      %p198 = scmp.lt.s32.totalorder %s195, 1
      %s199 = scalar_select %p198, %s195, 1
      %s200 = smul.addr %s197, 2
      %s201 = sadd.s32 %s199, %s200
      %s202 = smul.addr %s201, 8
      %s203 = scalar_lea.vmem %s3, %s202
      %s204 = smul.u32 2, %s18
      %p205 = scmp.lt.s32.totalorder %s204, 1
      %s206 = scalar_select %p205, %s204, 1
      %s207 = smul.addr %s206, 4
      %s208 = scalar_lea.vmem %s0, %s207
      %s209 = smul.u32 2, %s18
      %p210 = scmp.lt.s32.totalorder %s19, 3
      %s211 = scalar_select %p210, %s19, 3
      %s212 = smul.addr %s211, 2
      %s213 = scalar_lea.vmem %s1, %s212
      %p214 = scmp.lt.s32.totalorder %s19, 3
      %s215 = scalar_select %p214, %s19, 3
      %s216 = scalar_lea.vmem %s2, %s215
      %s217 = smul.u32 2, %s18
      %p218 = scmp.lt.s32.totalorder %s19, 3
      %s219 = scalar_select %p218, %s19, 3
      %p220 = scmp.lt.s32.totalorder %s217, 1
      %s221 = scalar_select %p220, %s217, 1
      %s222 = smul.addr %s219, 2
      %s223 = sadd.s32 %s221, %s222
      %s224 = smul.addr %s223, 8
      %s225 = scalar_lea.vmem %s3, %s224
      %s226 = smul.u32 2, %s18
      %v228 = vld [vmem:[%s208] sm:$0xf]
      %v229 = vld [vmem:[%s208 + $0x4] sm:$0xf]
      %v230 = vld [vmem:[%s213] sm:$0x3]
      %v231 = vld [vmem:[%s216] sm:$0x1]
      %v233 = vlaneseq
      %v234 = vshrl.u32 %v233, 7
      %v235 = vsub.s32 0, %v234
      %v236 = vrot.slane %v231, %v235
      %v240 = vunpack.c.l.b16 %v228
      %v241 = vunpack.c.l.b16 %v229
      %v242 = vpack.c.b16 %v241, %v240
      %vm243 = vcmask 31744
      %v245 = vsel %vm243, %v242, 0
      %vm247 = vcmask 1041408
      %v249 = vsel %vm247, %v230, 0
      %251 = vmatprep.subr.bf16.mxu0 0
      %252 = vmatpush1.bf16.msra.mxu0 0
      %253 = vmatprep.subr.bf16.mxu0 0
      %254 = vmatpush1.bf16.msra.mxu0 0
      %255 = vmatprep.subr.bf16.mxu0 0
      %256 = vmatpush1.bf16.msra.mxu0 0
      %257 = vmatprep.subr.bf16.mxu0 0
      %258 = vmatpush1.bf16.msra.mxu0 0
      %259 = vmatprep.subr.bf16.mxu0 0
      %260 = vmatpush1.bf16.msra.mxu0 0
      %261 = vmatprep.subr.bf16.mxu0 0
      %262 = vmatpush1.bf16.msra.mxu0 0
      %263 = vmatprep.subr.bf16.mxu0 0
      %264 = vmatpush1.bf16.msra.mxu0 0
      %265 = vmatprep.subr.bf16.mxu0 0
      %266 = vmatpush1.bf16.msra.mxu0 %v249
      %267 = vmatprep.subr.bf16.mxu0 0
      %268 = vmatpush2.bf16.msra.mxu0 0
      %269 = vmatprep.subr.bf16.mxu0 0
      %270 = vmatpush2.bf16.msra.mxu0 0
      %271 = vmatprep.subr.bf16.mxu0 0
      %272 = vmatpush2.bf16.msra.mxu0 0
      %273 = vmatprep.subr.bf16.mxu0 0
      %274 = vmatpush2.bf16.msra.mxu0 0
      %275 = vmatprep.subr.bf16.mxu0 0
      %276 = vmatpush2.bf16.msra.mxu0 0
      %277 = vmatprep.subr.bf16.mxu0 0
      %278 = vmatpush2.bf16.msra.mxu0 0
      %279 = vmatprep.subr.bf16.mxu0 0
      %280 = vmatpush2.bf16.msra.mxu0 0
      %281 = vmatprep.subr.bf16.mxu0 0
      %282 = vmatpush2.bf16.msra.mxu0 0
      %283 = vmatprep.mubr.bf16.mxu0 0
      %284 = vmatmul.mubr.bf16.gmra.mxu0 %v245
      %v285 = vpop.f32.mrf.mxu0
      %v286 = vadd.f32 %v236, %v285
      %v287 = vpop.f32.mrf.mxu0
      %v288 = vpop.f32.mrf.mxu0
      %v289 = vadd.f32 %v236, %v288
      %v290 = vpop.f32.mrf.mxu0
      %291 = vdwg.mxu0
      %vm292 = vcmask 261120
      %293 = vst.msk [vmem:[%s225] sm:$0xff] %vm292, %v286
      %294 = vst.msk [vmem:[%s225 + $0x8] sm:$0xff] %vm292, %v289
      %s295 = smul.u32 2, %s18
      %p296 = scmp.lt.s32.totalorder %s19, 3
      %s297 = scalar_select %p296, %s19, 3
      %p298 = scmp.lt.s32.totalorder %s295, 1
      %s299 = scalar_select %p298, %s295, 1
      %s300 = smul.addr %s297, 2
      %s301 = sadd.s32 %s299, %s300
      %s302 = smul.addr %s301, 8
      %s303 = scalar_lea.vmem %s3, %s302
      // Predicated region
      $region33: #{lstm_model_forward.4} parent=31 // pred_check
        %p304 = pneg %p124
      $region34: #{lstm_model_forward.4} parent=31 // pred_check_branch
        %306 = sbr.rel (%p304) target = $region36
      $region35: #{lstm_model_forward.4} parent=31 // pred_region
        %s307 = smul.u32 2, %s18
      $region36: #{lstm_model_forward.4} parent=31 // pred_fallthru
        _
    $region32: #{lstm_model_forward.4} parent=5 // pred_fallthru
      _
    %p308 = scmp.le.s32.totalorder 2, %s9
    // Predicated region
    $region37: #{lstm_model_forward.4} parent=5 // pred_check
      %p309 = pneg %p308
    $region38: #{lstm_model_forward.4} parent=5 // pred_check_branch
      %311 = sbr.rel (%p309) target = $region40
    $region39: #{lstm_model_forward.4} parent=5 // pred_region
      %s312 = ssub.s32 %s9, 2
      // Predicated region
      $region41: #{lstm_model_forward.4} parent=39 // pred_check
        %p313 = pneg %p130
      $region42: #{lstm_model_forward.4} parent=39 // pred_check_branch
        %315 = sbr.rel (%p313) target = $region44
      $region43: #{lstm_model_forward.4} parent=39 // pred_region
        %s316 = smul.u32 2, %s20
        %p317 = scmp.lt.s32.totalorder %s21, 3
        %s318 = scalar_select %p317, %s21, 3
        %p319 = scmp.lt.s32.totalorder %s316, 1
        %s320 = scalar_select %p319, %s316, 1
        %s321 = smul.addr %s318, 2
        %s322 = sadd.s32 %s320, %s321
        %s323 = smul.addr %s322, 8
        %s324 = scalar_lea.vmem %s3, %s323
      $region44: #{lstm_model_forward.4} parent=39 // pred_fallthru
        _
    $region40: #{lstm_model_forward.4} parent=5 // pred_fallthru
      _
  $region6: #{lstm_model_forward.4} parent=0 // loop_footer
    %s13 = sadd.s32 1, %s9
  $region7: #{lstm_model_forward.4} parent=0 // loop_footer_branch
    %8 = sbr.rel target = $region3
  $region8: #{lstm_model_forward.4} parent=0 // loop_exit
    _

// kernel: lstm_model_forward.6
$region0: #{lstm_model_forward.6}
  #allocation0 [shape = 'u32[]', space=smem, size = 0x4, offset = 0x4, fixed_abs, tag = 'smem constant byte address 0x4 - core index']
  #allocation1 [shape = 'u32[144,128]{1,0:T(1,128)}', space=vmem, size = 0x12000, scoped, tag = 'internal scratch']
  %s0 = inlined_call_operand.vmem [shape: bf16[16,32], index: 0, kind: input, shape index: {}]
  %s1 = inlined_call_operand.vmem [shape: bf16[4,32,32], index: 1, kind: input, shape index: {}]
  %s2 = inlined_call_operand.vmem [shape: f32[4,1,32], index: 2, kind: input, shape index: {}]
  %s3 = inlined_call_operand.vmem [shape: f32[4,16,32], index: 3, kind: output, shape index: {}]
  %s4 = sld [smem:[#allocation0]]
  $region45: #{lstm_model_forward.6} parent=0
    _
  %s6 = ssub.s32 1, %s4
  %s7 = scalar_select 0, %s6, %s4
  loop: start=0, step=1, limit=6
  $region2: #{lstm_model_forward.6} parent=0 // loop_pre_header
    _
  $region3: #{lstm_model_forward.6} parent=0 // loop_header
    %s9 = sphi 0, %s13
    %p10 = scmp.ge.s32.totalorder %s9, 6
    %s16 = sphi 0, %s28
    %s17 = sphi 0, %s24
    %s18 = sphi 0, %s16
    %s19 = sphi 0, %s17
    %s20 = sphi 0, %s18
    %s21 = sphi 0, %s19
    %s31 = sphi 0, %s33
    %s34 = sphi 0, %s31
    %s35 = sphi 0, %s34
    %s51 = sphi 0, %s35
    %s57 = sphi 0, %s59
    %s60 = sphi 0, %s57
    %s61 = sphi 0, %s60
    %s77 = sphi 0, %s61
    %s83 = sphi 0, %s85
    %s86 = sphi 0, %s83
    %s87 = sphi 0, %s86
    %s103 = sphi 0, %s87
    %s111 = sphi 0, %s113
    %s114 = sphi 0, %s111
    %s115 = sphi 0, %s114
    %s131 = sphi 0, %s115
  $region4: #{lstm_model_forward.6} parent=0 // loop_header_branch
    %12 = sbr.rel (%p10) target = $region8
  $region5: #{lstm_model_forward.6} parent=0 // loop_body
    %s14 = ssub.s32 %s9, 1
    %s15 = ssub.s32 %s9, 2
    %s22 = sadd.s32 1, %s17
    %p23 = scmp.ge.s32.totalorder %s22, 4
    %s24 = scalar_select %p23, 0, %s22
    %s25 = sadd.s32 1, %s16
    %s26 = scalar_select %p23, %s25, %s16
    %p27 = scmp.ge.s32.totalorder %s26, 1
    %s28 = scalar_select %p27, 0, %s26
    %s29 = ssub.s32 %s16, %s28
    %p30 = scmp.eq.s32.totalorder %s29, 0
    %s32 = sadd.s32 %s31, 1
    %s33 = scalar_select %p30, %s31, %s32
    %p36 = pneg %p30
    %p37 = scmp.eq.s32.totalorder %s9, 3
    %p38 = por %p36, %p37
    %p39 = scmp.ne.s32.totalorder %s31, %s34
    %p40 = scmp.eq.s32.totalorder %s9, 0
    %p41 = por %p39, %p40
    %p42 = scmp.ne.s32.totalorder %s31, %s34
    %p43 = scmp.eq.s32.totalorder %s14, 3
    %p44 = por %p42, %p43
    %p45 = scmp.ne.s32.totalorder %s34, %s35
    %p46 = scmp.eq.s32.totalorder %s14, 0
    %p47 = por %p45, %p46
    %p48 = scmp.ne.s32.totalorder %s34, %s35
    %p49 = scmp.eq.s32.totalorder %s15, 3
    %p50 = por %p48, %p49
    %p52 = scmp.ne.s32.totalorder %s35, %s51
    %p53 = scmp.eq.s32.totalorder %s15, 0
    %p54 = por %p52, %p53
    %s55 = ssub.s32 %s17, %s24
    %p56 = scmp.eq.s32.totalorder %s55, 0
    %s58 = sadd.s32 %s57, 1
    %s59 = scalar_select %p56, %s57, %s58
    %p62 = pneg %p56
    %p63 = scmp.eq.s32.totalorder %s9, 3
    %p64 = por %p62, %p63
    %p65 = scmp.ne.s32.totalorder %s57, %s60
    %p66 = scmp.eq.s32.totalorder %s9, 0
    %p67 = por %p65, %p66
    %p68 = scmp.ne.s32.totalorder %s57, %s60
    %p69 = scmp.eq.s32.totalorder %s14, 3
    %p70 = por %p68, %p69
    %p71 = scmp.ne.s32.totalorder %s60, %s61
    %p72 = scmp.eq.s32.totalorder %s14, 0
    %p73 = por %p71, %p72
    %p74 = scmp.ne.s32.totalorder %s60, %s61
    %p75 = scmp.eq.s32.totalorder %s15, 3
    %p76 = por %p74, %p75
    %p78 = scmp.ne.s32.totalorder %s61, %s77
    %p79 = scmp.eq.s32.totalorder %s15, 0
    %p80 = por %p78, %p79
    %s81 = ssub.s32 %s17, %s24
    %p82 = scmp.eq.s32.totalorder %s81, 0
    %s84 = sadd.s32 %s83, 1
    %s85 = scalar_select %p82, %s83, %s84
    %p88 = pneg %p82
    %p89 = scmp.eq.s32.totalorder %s9, 3
    %p90 = por %p88, %p89
    %p91 = scmp.ne.s32.totalorder %s83, %s86
    %p92 = scmp.eq.s32.totalorder %s9, 0
    %p93 = por %p91, %p92
    %p94 = scmp.ne.s32.totalorder %s83, %s86
    %p95 = scmp.eq.s32.totalorder %s14, 3
    %p96 = por %p94, %p95
    %p97 = scmp.ne.s32.totalorder %s86, %s87
    %p98 = scmp.eq.s32.totalorder %s14, 0
    %p99 = por %p97, %p98
    %p100 = scmp.ne.s32.totalorder %s86, %s87
    %p101 = scmp.eq.s32.totalorder %s15, 3
    %p102 = por %p100, %p101
    %p104 = scmp.ne.s32.totalorder %s87, %s103
    %p105 = scmp.eq.s32.totalorder %s15, 0
    %p106 = por %p104, %p105
    %s107 = ssub.s32 %s17, %s24
    %s108 = ssub.s32 %s16, %s28
    %s109 = sor.u32 %s107, %s108
    %p110 = scmp.eq.s32.totalorder %s109, 0
    %s112 = sadd.s32 %s111, 1
    %s113 = scalar_select %p110, %s111, %s112
    %p116 = pneg %p110
    %p117 = scmp.eq.s32.totalorder %s9, 3
    %p118 = por %p116, %p117
    %p119 = scmp.ne.s32.totalorder %s111, %s114
    %p120 = scmp.eq.s32.totalorder %s9, 0
    %p121 = por %p119, %p120
    %p122 = scmp.ne.s32.totalorder %s111, %s114
    %p123 = scmp.eq.s32.totalorder %s14, 3
    %p124 = por %p122, %p123
    %p125 = scmp.ne.s32.totalorder %s114, %s115
    %p126 = scmp.eq.s32.totalorder %s14, 0
    %p127 = por %p125, %p126
    %p128 = scmp.ne.s32.totalorder %s114, %s115
    %p129 = scmp.eq.s32.totalorder %s15, 3
    %p130 = por %p128, %p129
    %p132 = scmp.ne.s32.totalorder %s115, %s131
    %p133 = scmp.eq.s32.totalorder %s15, 0
    %p134 = por %p132, %p133
    %p135 = scmp.le.s32.totalorder 1, %s9
    %p136 = scmp.lt.s32.totalorder %s9, 5
    %p137 = pnand %p135, %p136
    %p138 = pneg %p137
    // Predicated region
    $region9: #{lstm_model_forward.6} parent=5 // pred_check
      _
    $region10: #{lstm_model_forward.6} parent=5 // pred_check_branch
      %140 = sbr.rel (%p137) target = $region12
    $region11: #{lstm_model_forward.6} parent=5 // pred_region
      %s141 = ssub.s32 %s9, 1
      // Predicated region
      $region13: #{lstm_model_forward.6} parent=11 // pred_check
        %p142 = pneg %p47
      $region14: #{lstm_model_forward.6} parent=11 // pred_check_branch
        %144 = sbr.rel (%p142) target = $region16
      $region15: #{lstm_model_forward.6} parent=11 // pred_region
        %s145 = smul.u32 2, %s18
        %p146 = scmp.lt.s32.totalorder %s145, 1
        %s147 = scalar_select %p146, %s145, 1
        %s148 = smul.addr %s147, 4
        %s149 = scalar_lea.vmem %s0, %s148
        %s150 = smul.u32 2, %s18
      $region16: #{lstm_model_forward.6} parent=11 // pred_fallthru
        _
    $region12: #{lstm_model_forward.6} parent=5 // pred_fallthru
      _
    %p151 = scmp.lt.s32.totalorder %s9, 4
    // Predicated region
    $region17: #{lstm_model_forward.6} parent=5 // pred_check
      %p152 = pneg %p151
    $region18: #{lstm_model_forward.6} parent=5 // pred_check_branch
      %154 = sbr.rel (%p152) target = $region20
    $region19: #{lstm_model_forward.6} parent=5 // pred_region
      // Predicated region
      $region21: #{lstm_model_forward.6} parent=19 // pred_check
        %p155 = pneg %p67
      $region22: #{lstm_model_forward.6} parent=19 // pred_check_branch
        %157 = sbr.rel (%p155) target = $region24
      $region23: #{lstm_model_forward.6} parent=19 // pred_region
        %p158 = scmp.lt.s32.totalorder %s17, 3
        %s159 = scalar_select %p158, %s17, 3
        %s160 = smul.addr %s159, 4
        %s161 = smul.addr %s160, 4
        %s162 = scalar_lea.vmem %s1, %s161
      $region24: #{lstm_model_forward.6} parent=19 // pred_fallthru
        _
      // Predicated region
      $region25: #{lstm_model_forward.6} parent=19 // pred_check
        %p163 = pneg %p93
      $region26: #{lstm_model_forward.6} parent=19 // pred_check_branch
        %165 = sbr.rel (%p163) target = $region28
      $region27: #{lstm_model_forward.6} parent=19 // pred_region
        %p166 = scmp.lt.s32.totalorder %s17, 3
        %s167 = scalar_select %p166, %s17, 3
        %s168 = scalar_lea.vmem %s2, %s167
      $region28: #{lstm_model_forward.6} parent=19 // pred_fallthru
        _
    $region20: #{lstm_model_forward.6} parent=5 // pred_fallthru
      _
    %p169 = scmp.le.s32.totalorder 1, %s9
    %p170 = scmp.lt.s32.totalorder %s9, 5
    %p171 = pnand %p169, %p170
    %p172 = pneg %p171
    // Predicated region
    $region29: #{lstm_model_forward.6} parent=5 // pred_check
      _
    $region30: #{lstm_model_forward.6} parent=5 // pred_check_branch
      %174 = sbr.rel (%p171) target = $region32
    $region31: #{lstm_model_forward.6} parent=5 // pred_region
      %s175 = ssub.s32 %s9, 1
      %s176 = smul.u32 2, %s18
      %p177 = scmp.lt.s32.totalorder %s176, 1
      %s178 = scalar_select %p177, %s176, 1
      %s179 = smul.addr %s178, 4
      %s180 = scalar_lea.vmem %s0, %s179
      %p181 = pneg %p47
      %p182 = pneg %p44
      %p183 = scmp.lt.s32.totalorder %s19, 3
      %s184 = scalar_select %p183, %s19, 3
      %s185 = smul.addr %s184, 4
      %s186 = smul.addr %s185, 4
      %s187 = scalar_lea.vmem %s1, %s186
      %p188 = pneg %p73
      %p189 = pneg %p70
      %p190 = scmp.lt.s32.totalorder %s19, 3
      %s191 = scalar_select %p190, %s19, 3
      %s192 = scalar_lea.vmem %s2, %s191
      %p193 = pneg %p99
      %p194 = pneg %p96
      %p195 = pneg %p127
      %p196 = pneg %p124
      %s197 = smul.u32 2, %s18
      %p198 = scmp.lt.s32.totalorder %s19, 3
      %s199 = scalar_select %p198, %s19, 3
      %p200 = scmp.lt.s32.totalorder %s197, 1
      %s201 = scalar_select %p200, %s197, 1
      %s202 = smul.addr %s199, 2
      %s203 = sadd.s32 %s201, %s202
      %s204 = smul.addr %s203, 8
      %s205 = scalar_lea.vmem %s3, %s204
      %s206 = smul.u32 2, %s18
      %p207 = scmp.lt.s32.totalorder %s206, 1
      %s208 = scalar_select %p207, %s206, 1
      %s209 = smul.addr %s208, 4
      %s210 = scalar_lea.vmem %s0, %s209
      %s211 = smul.u32 2, %s18
      %p212 = scmp.lt.s32.totalorder %s19, 3
      %s213 = scalar_select %p212, %s19, 3
      %s214 = smul.addr %s213, 4
      %s215 = smul.addr %s214, 4
      %s216 = scalar_lea.vmem %s1, %s215
      %p217 = scmp.lt.s32.totalorder %s19, 3
      %s218 = scalar_select %p217, %s19, 3
      %s219 = scalar_lea.vmem %s2, %s218
      %s220 = smul.u32 2, %s18
      %p221 = scmp.lt.s32.totalorder %s19, 3
      %s222 = scalar_select %p221, %s19, 3
      %p223 = scmp.lt.s32.totalorder %s220, 1
      %s224 = scalar_select %p223, %s220, 1
      %s225 = smul.addr %s222, 2
      %s226 = sadd.s32 %s224, %s225
      %s227 = smul.addr %s226, 8
      %s228 = scalar_lea.vmem %s3, %s227
      %s229 = smul.u32 2, %s18
      %v231 = vld [vmem:[%s210] sm:$0xf]
      %v232 = vld [vmem:[%s210 + $0x4] sm:$0xf]
      %v233 = vld [vmem:[%s216] sm:$0xf]
      %v234 = vld [vmem:[%s216 + $0x4] sm:$0xf]
      %v235 = vld [vmem:[%s216 + $0x8] sm:$0xf]
      %v236 = vld [vmem:[%s216 + $0xc] sm:$0xf]
      %v237 = vld [vmem:[%s219] sm:$0x1]
      %v239 = vlaneseq
      %v240 = vshrl.u32 %v239, 7
      %v241 = vsub.s32 0, %v240
      %v242 = vrot.slane %v237, %v241
      %v246 = vunpack.c.l.b16 %v231
      %v247 = vunpack.c.l.b16 %v232
      %v248 = vpack.c.b16 %v247, %v246
      %v253 = vunpack.c.l.b16 %v233
      %v254 = vunpack.c.l.b16 %v234
      %v255 = vunpack.c.l.b16 %v235
      %v256 = vunpack.c.l.b16 %v236
      %v257 = vpack.c.b16 %v254, %v253
      %v258 = vpack.c.b16 %v256, %v255
      %vm261 = vcmask 261120
      %v263 = vsel %vm261, %v248, 0
      %265 = vmatprep.subr.bf16.mxu0 0
      %266 = vmatpush1.bf16.msra.mxu0 0
      %267 = vmatprep.subr.bf16.mxu0 0
      %268 = vmatpush1.bf16.msra.mxu0 0
      %269 = vmatprep.subr.bf16.mxu0 0
      %270 = vmatpush1.bf16.msra.mxu0 0
      %271 = vmatprep.subr.bf16.mxu0 0
      %272 = vmatpush1.bf16.msra.mxu0 0
      %273 = vmatprep.subr.bf16.mxu0 0
      %274 = vmatpush1.bf16.msra.mxu0 0
      %275 = vmatprep.subr.bf16.mxu0 0
      %276 = vmatpush1.bf16.msra.mxu0 0
      %277 = vmatprep.subr.bf16.mxu0 0
      %278 = vmatpush1.bf16.msra.mxu0 %v258
      %279 = vmatprep.subr.bf16.mxu0 0
      %280 = vmatpush1.bf16.msra.mxu0 %v257
      %281 = vmatprep.subr.bf16.mxu0 0
      %282 = vmatpush2.bf16.msra.mxu0 0
      %283 = vmatprep.subr.bf16.mxu0 0
      %284 = vmatpush2.bf16.msra.mxu0 0
      %285 = vmatprep.subr.bf16.mxu0 0
      %286 = vmatpush2.bf16.msra.mxu0 0
      %287 = vmatprep.subr.bf16.mxu0 0
      %288 = vmatpush2.bf16.msra.mxu0 0
      %289 = vmatprep.subr.bf16.mxu0 0
      %290 = vmatpush2.bf16.msra.mxu0 0
      %291 = vmatprep.subr.bf16.mxu0 0
      %292 = vmatpush2.bf16.msra.mxu0 0
      %293 = vmatprep.subr.bf16.mxu0 0
      %294 = vmatpush2.bf16.msra.mxu0 0
      %295 = vmatprep.subr.bf16.mxu0 0
      %296 = vmatpush2.bf16.msra.mxu0 0
      %297 = vmatprep.mubr.bf16.mxu0 0
      %298 = vmatmul.mubr.bf16.gmra.mxu0 %v263
      %v299 = vpop.f32.mrf.mxu0
      %v300 = vadd.f32 %v242, %v299
      %v301 = vpop.f32.mrf.mxu0
      %v302 = vpop.f32.mrf.mxu0
      %v303 = vadd.f32 %v242, %v302
      %v304 = vpop.f32.mrf.mxu0
      %305 = vdwg.mxu0
      %306 = vst.msk [vmem:[%s228] sm:$0xff] %vm261, %v300
      %307 = vst.msk [vmem:[%s228 + $0x8] sm:$0xff] %vm261, %v303
      %s308 = smul.u32 2, %s18
      %p309 = scmp.lt.s32.totalorder %s19, 3
      %s310 = scalar_select %p309, %s19, 3
      %p311 = scmp.lt.s32.totalorder %s308, 1
      %s312 = scalar_select %p311, %s308, 1
      %s313 = smul.addr %s310, 2
      %s314 = sadd.s32 %s312, %s313
      %s315 = smul.addr %s314, 8
      %s316 = scalar_lea.vmem %s3, %s315
      // Predicated region
      $region33: #{lstm_model_forward.6} parent=31 // pred_check
        %p317 = pneg %p124
      $region34: #{lstm_model_forward.6} parent=31 // pred_check_branch
        %319 = sbr.rel (%p317) target = $region36
      $region35: #{lstm_model_forward.6} parent=31 // pred_region
        %s320 = smul.u32 2, %s18
      $region36: #{lstm_model_forward.6} parent=31 // pred_fallthru
        _
    $region32: #{lstm_model_forward.6} parent=5 // pred_fallthru
      _
    %p321 = scmp.le.s32.totalorder 2, %s9
    // Predicated region
    $region37: #{lstm_model_forward.6} parent=5 // pred_check
      %p322 = pneg %p321
    $region38: #{lstm_model_forward.6} parent=5 // pred_check_branch
      %324 = sbr.rel (%p322) target = $region40
    $region39: #{lstm_model_forward.6} parent=5 // pred_region
      %s325 = ssub.s32 %s9, 2
      // Predicated region
      $region41: #{lstm_model_forward.6} parent=39 // pred_check
        %p326 = pneg %p130
      $region42: #{lstm_model_forward.6} parent=39 // pred_check_branch
        %328 = sbr.rel (%p326) target = $region44
      $region43: #{lstm_model_forward.6} parent=39 // pred_region
        %s329 = smul.u32 2, %s20
        %p330 = scmp.lt.s32.totalorder %s21, 3
        %s331 = scalar_select %p330, %s21, 3
        %p332 = scmp.lt.s32.totalorder %s329, 1
        %s333 = scalar_select %p332, %s329, 1
        %s334 = smul.addr %s331, 2
        %s335 = sadd.s32 %s333, %s334
        %s336 = smul.addr %s335, 8
        %s337 = scalar_lea.vmem %s3, %s336
      $region44: #{lstm_model_forward.6} parent=39 // pred_fallthru
        _
    $region40: #{lstm_model_forward.6} parent=5 // pred_fallthru
      _
  $region6: #{lstm_model_forward.6} parent=0 // loop_footer
    %s13 = sadd.s32 1, %s9
  $region7: #{lstm_model_forward.6} parent=0 // loop_footer_branch
    %8 = sbr.rel target = $region3
  $region8: #{lstm_model_forward.6} parent=0 // loop_exit
    _

// kernel: lstm_model_forward.5
$region0: #{lstm_model_forward.5}
  #allocation0 [shape = 'u32[]', space=smem, size = 0x4, offset = 0x4, fixed_abs, tag = 'smem constant byte address 0x4 - core index']
  #allocation1 [shape = 'u32[144,128]{1,0:T(1,128)}', space=vmem, size = 0x12000, scoped, tag = 'internal scratch']
  #allocation2 [shape = 'bf16[2,32]{1,0:T(2,128)(2,1)}', space=vmem, size = 0x200, scoped, tag = 'scratch operand']
  #allocation3 [shape = 'f32[2,32]{1,0:T(2,128)}', space=vmem, size = 0x400, scoped, tag = 'scratch operand']
  %s0 = inlined_call_operand.vmem [shape: f32[4,8,2,32], index: 0, kind: input, shape index: {}]
  %s1 = inlined_call_operand.vmem [shape: bf16[4,32,32], index: 1, kind: input, shape index: {}]
  %s2 = inlined_call_operand.vmem [shape: bf16[8,2,32], index: 2, kind: output, shape index: {}]
  %s3 = sld [smem:[#allocation0]]
  $region22: #{lstm_model_forward.5} parent=0
    _
  %s5 = ssub.s32 1, %s3
  %s6 = scalar_select 0, %s5, %s3
  // Predicated region
  $region2: #{lstm_model_forward.5} parent=0 // pred_check
    _
  $region3: #{lstm_model_forward.5} parent=0 // pred_check_branch
    %8 = sbr.rel (0) target = $region5
  $region4: #{lstm_model_forward.5} parent=0 // pred_region
    _
  $region5: #{lstm_model_forward.5} parent=0 // pred_fallthru
    _
  // Predicated region
  $region6: #{lstm_model_forward.5} parent=0 // pred_check
    _
  $region7: #{lstm_model_forward.5} parent=0 // pred_check_branch
    %10 = sbr.rel (0) target = $region9
  $region8: #{lstm_model_forward.5} parent=0 // pred_region
    _
  $region9: #{lstm_model_forward.5} parent=0 // pred_fallthru
    _
  %p12 = scmp.eq.s32.totalorder 0, 0
  // Predicated region
  $region10: #{lstm_model_forward.5} parent=0 // pred_check
    %p13 = pneg %p12
  $region11: #{lstm_model_forward.5} parent=0 // pred_check_branch
    %15 = sbr.rel (%p13) target = $region13
  $region12: #{lstm_model_forward.5} parent=0 // pred_region
    %vm16 = vcmask 253952
    %17 = vst.msk [vmem:[#allocation2] sm:$0x1] %vm16, 0
    %vm18 = vcmask 254976
    %19 = vst.msk [vmem:[#allocation3] sm:$0x3] %vm18, 0.0
  $region13: #{lstm_model_forward.5} parent=0 // pred_fallthru
    _
  %v20 = vld [vmem:[%s1] sm:$0xf]
  %v21 = vld [vmem:[%s1 + $0x4] sm:$0xf]
  %v22 = vld [vmem:[%s1 + $0x8] sm:$0xf]
  %v23 = vld [vmem:[%s1 + $0xc] sm:$0xf]
  %s24 = scalar_lea.vmem %s1, 16
  %v25 = vld [vmem:[%s24] sm:$0xf]
  %v26 = vld [vmem:[%s24 + $0x4] sm:$0xf]
  %v27 = vld [vmem:[%s24 + $0x8] sm:$0xf]
  %v28 = vld [vmem:[%s24 + $0xc] sm:$0xf]
  %s29 = scalar_lea.vmem %s1, 32
  %v30 = vld [vmem:[%s29] sm:$0xf]
  %v31 = vld [vmem:[%s29 + $0x4] sm:$0xf]
  %v32 = vld [vmem:[%s29 + $0x8] sm:$0xf]
  %v33 = vld [vmem:[%s29 + $0xc] sm:$0xf]
  %s34 = scalar_lea.vmem %s1, 48
  %v35 = vld [vmem:[%s34] sm:$0xf]
  %v36 = vld [vmem:[%s34 + $0x4] sm:$0xf]
  %v37 = vld [vmem:[%s34 + $0x8] sm:$0xf]
  %v38 = vld [vmem:[%s34 + $0xc] sm:$0xf]
  %v39 = vld [vmem:[#allocation2] sm:$0x1]
  %v40 = vld [vmem:[#allocation3] sm:$0x3]
  %v45 = vunpack.c.l.b16 %v20
  %v46 = vunpack.c.l.b16 %v21
  %v47 = vunpack.c.l.b16 %v22
  %v48 = vunpack.c.l.b16 %v23
  %v49 = vpack.c.b16 %v46, %v45
  %v50 = vpack.c.b16 %v48, %v47
  %vm53 = vcmask 261120
  %v55 = vsel %vm53, %v39, 0
  %57 = vmatprep.subr.bf16.mxu0 0
  %58 = vmatpush1.bf16.msra.mxu0 0
  %59 = vmatprep.subr.bf16.mxu0 0
  %60 = vmatpush1.bf16.msra.mxu0 0
  %61 = vmatprep.subr.bf16.mxu0 0
  %62 = vmatpush1.bf16.msra.mxu0 0
  %63 = vmatprep.subr.bf16.mxu0 0
  %64 = vmatpush1.bf16.msra.mxu0 0
  %65 = vmatprep.subr.bf16.mxu0 0
  %66 = vmatpush1.bf16.msra.mxu0 0
  %67 = vmatprep.subr.bf16.mxu0 0
  %68 = vmatpush1.bf16.msra.mxu0 0
  %69 = vmatprep.subr.bf16.mxu0 0
  %70 = vmatpush1.bf16.msra.mxu0 %v50
  %71 = vmatprep.subr.bf16.mxu0 0
  %72 = vmatpush1.bf16.msra.mxu0 %v49
  %73 = vmatprep.subr.bf16.mxu0 0
  %74 = vmatpush2.bf16.msra.mxu0 0
  %75 = vmatprep.subr.bf16.mxu0 0
  %76 = vmatpush2.bf16.msra.mxu0 0
  %77 = vmatprep.subr.bf16.mxu0 0
  %78 = vmatpush2.bf16.msra.mxu0 0
  %79 = vmatprep.subr.bf16.mxu0 0
  %80 = vmatpush2.bf16.msra.mxu0 0
  %81 = vmatprep.subr.bf16.mxu0 0
  %82 = vmatpush2.bf16.msra.mxu0 0
  %83 = vmatprep.subr.bf16.mxu0 0
  %84 = vmatpush2.bf16.msra.mxu0 0
  %85 = vmatprep.subr.bf16.mxu0 0
  %86 = vmatpush2.bf16.msra.mxu0 0
  %87 = vmatprep.subr.bf16.mxu0 0
  %88 = vmatpush2.bf16.msra.mxu0 0
  %89 = vmatprep.mubr.bf16.mxu0 0
  %90 = vmatmul.mubr.bf16.gmra.mxu0 %v55
  %v91 = vpop.f32.mrf.mxu0
  %v92 = vadd.f32 0.0, %v91
  %v93 = vpop.f32.mrf.mxu0
  %v94 = vpop.f32.mrf.mxu0
  %v95 = vpop.f32.mrf.mxu0
  %96 = vdwg.mxu0
  %v101 = vunpack.c.l.b16 %v25
  %v102 = vunpack.c.l.b16 %v26
  %v103 = vunpack.c.l.b16 %v27
  %v104 = vunpack.c.l.b16 %v28
  %v105 = vpack.c.b16 %v102, %v101
  %v106 = vpack.c.b16 %v104, %v103
  %109 = vmatprep.subr.bf16.mxu0 0
  %110 = vmatpush1.bf16.msra.mxu0 0
  %111 = vmatprep.subr.bf16.mxu0 0
  %112 = vmatpush1.bf16.msra.mxu0 0
  %113 = vmatprep.subr.bf16.mxu0 0
  %114 = vmatpush1.bf16.msra.mxu0 0
  %115 = vmatprep.subr.bf16.mxu0 0
  %116 = vmatpush1.bf16.msra.mxu0 0
  %117 = vmatprep.subr.bf16.mxu0 0
  %118 = vmatpush1.bf16.msra.mxu0 0
  %119 = vmatprep.subr.bf16.mxu0 0
  %120 = vmatpush1.bf16.msra.mxu0 0
  %121 = vmatprep.subr.bf16.mxu0 0
  %122 = vmatpush1.bf16.msra.mxu0 %v106
  %123 = vmatprep.subr.bf16.mxu0 0
  %124 = vmatpush1.bf16.msra.mxu0 %v105
  %125 = vmatprep.subr.bf16.mxu0 0
  %126 = vmatpush2.bf16.msra.mxu0 0
  %127 = vmatprep.subr.bf16.mxu0 0
  %128 = vmatpush2.bf16.msra.mxu0 0
  %129 = vmatprep.subr.bf16.mxu0 0
  %130 = vmatpush2.bf16.msra.mxu0 0
  %131 = vmatprep.subr.bf16.mxu0 0
  %132 = vmatpush2.bf16.msra.mxu0 0
  %133 = vmatprep.subr.bf16.mxu0 0
  %134 = vmatpush2.bf16.msra.mxu0 0
  %135 = vmatprep.subr.bf16.mxu0 0
  %136 = vmatpush2.bf16.msra.mxu0 0
  %137 = vmatprep.subr.bf16.mxu0 0
  %138 = vmatpush2.bf16.msra.mxu0 0
  %139 = vmatprep.subr.bf16.mxu0 0
  %140 = vmatpush2.bf16.msra.mxu0 0
  %141 = vmatprep.mubr.bf16.mxu0 0
  %142 = vmatmul.mubr.bf16.gmra.mxu0 %v55
  %v143 = vpop.f32.mrf.mxu0
  %v144 = vadd.f32 0.0, %v143
  %v145 = vpop.f32.mrf.mxu0
  %v146 = vpop.f32.mrf.mxu0
  %v147 = vpop.f32.mrf.mxu0
  %148 = vdwg.mxu0
  %v153 = vunpack.c.l.b16 %v30
  %v154 = vunpack.c.l.b16 %v31
  %v155 = vunpack.c.l.b16 %v32
  %v156 = vunpack.c.l.b16 %v33
  %v157 = vpack.c.b16 %v154, %v153
  %v158 = vpack.c.b16 %v156, %v155
  %161 = vmatprep.subr.bf16.mxu0 0
  %162 = vmatpush1.bf16.msra.mxu0 0
  %163 = vmatprep.subr.bf16.mxu0 0
  %164 = vmatpush1.bf16.msra.mxu0 0
  %165 = vmatprep.subr.bf16.mxu0 0
  %166 = vmatpush1.bf16.msra.mxu0 0
  %167 = vmatprep.subr.bf16.mxu0 0
  %168 = vmatpush1.bf16.msra.mxu0 0
  %169 = vmatprep.subr.bf16.mxu0 0
  %170 = vmatpush1.bf16.msra.mxu0 0
  %171 = vmatprep.subr.bf16.mxu0 0
  %172 = vmatpush1.bf16.msra.mxu0 0
  %173 = vmatprep.subr.bf16.mxu0 0
  %174 = vmatpush1.bf16.msra.mxu0 %v158
  %175 = vmatprep.subr.bf16.mxu0 0
  %176 = vmatpush1.bf16.msra.mxu0 %v157
  %177 = vmatprep.subr.bf16.mxu0 0
  %178 = vmatpush2.bf16.msra.mxu0 0
  %179 = vmatprep.subr.bf16.mxu0 0
  %180 = vmatpush2.bf16.msra.mxu0 0
  %181 = vmatprep.subr.bf16.mxu0 0
  %182 = vmatpush2.bf16.msra.mxu0 0
  %183 = vmatprep.subr.bf16.mxu0 0
  %184 = vmatpush2.bf16.msra.mxu0 0
  %185 = vmatprep.subr.bf16.mxu0 0
  %186 = vmatpush2.bf16.msra.mxu0 0
  %187 = vmatprep.subr.bf16.mxu0 0
  %188 = vmatpush2.bf16.msra.mxu0 0
  %189 = vmatprep.subr.bf16.mxu0 0
  %190 = vmatpush2.bf16.msra.mxu0 0
  %191 = vmatprep.subr.bf16.mxu0 0
  %192 = vmatpush2.bf16.msra.mxu0 0
  %193 = vmatprep.mubr.bf16.mxu0 0
  %194 = vmatmul.mubr.bf16.gmra.mxu0 %v55
  %v195 = vpop.f32.mrf.mxu0
  %v196 = vadd.f32 0.0, %v195
  %v197 = vpop.f32.mrf.mxu0
  %v198 = vpop.f32.mrf.mxu0
  %v199 = vpop.f32.mrf.mxu0
  %200 = vdwg.mxu0
  %v205 = vunpack.c.l.b16 %v35
  %v206 = vunpack.c.l.b16 %v36
  %v207 = vunpack.c.l.b16 %v37
  %v208 = vunpack.c.l.b16 %v38
  %v209 = vpack.c.b16 %v206, %v205
  %v210 = vpack.c.b16 %v208, %v207
  %213 = vmatprep.subr.bf16.mxu0 0
  %214 = vmatpush1.bf16.msra.mxu0 0
  %215 = vmatprep.subr.bf16.mxu0 0
  %216 = vmatpush1.bf16.msra.mxu0 0
  %217 = vmatprep.subr.bf16.mxu0 0
  %218 = vmatpush1.bf16.msra.mxu0 0
  %219 = vmatprep.subr.bf16.mxu0 0
  %220 = vmatpush1.bf16.msra.mxu0 0
  %221 = vmatprep.subr.bf16.mxu0 0
  %222 = vmatpush1.bf16.msra.mxu0 0
  %223 = vmatprep.subr.bf16.mxu0 0
  %224 = vmatpush1.bf16.msra.mxu0 0
  %225 = vmatprep.subr.bf16.mxu0 0
  %226 = vmatpush1.bf16.msra.mxu0 %v210
  %227 = vmatprep.subr.bf16.mxu0 0
  %228 = vmatpush1.bf16.msra.mxu0 %v209
  %229 = vmatprep.subr.bf16.mxu0 0
  %230 = vmatpush2.bf16.msra.mxu0 0
  %231 = vmatprep.subr.bf16.mxu0 0
  %232 = vmatpush2.bf16.msra.mxu0 0
  %233 = vmatprep.subr.bf16.mxu0 0
  %234 = vmatpush2.bf16.msra.mxu0 0
  %235 = vmatprep.subr.bf16.mxu0 0
  %236 = vmatpush2.bf16.msra.mxu0 0
  %237 = vmatprep.subr.bf16.mxu0 0
  %238 = vmatpush2.bf16.msra.mxu0 0
  %239 = vmatprep.subr.bf16.mxu0 0
  %240 = vmatpush2.bf16.msra.mxu0 0
  %241 = vmatprep.subr.bf16.mxu0 0
  %242 = vmatpush2.bf16.msra.mxu0 0
  %243 = vmatprep.subr.bf16.mxu0 0
  %244 = vmatpush2.bf16.msra.mxu0 0
  %245 = vmatprep.mubr.bf16.mxu0 0
  %246 = vmatmul.mubr.bf16.gmra.mxu0 %v55
  %v247 = vpop.f32.mrf.mxu0
  %v248 = vadd.f32 0.0, %v247
  %v249 = vpop.f32.mrf.mxu0
  %v250 = vpop.f32.mrf.mxu0
  %v251 = vpop.f32.mrf.mxu0
  %252 = vdwg.mxu0
  %v253 = vld [vmem:[%s0] sm:$0x3]
  %v254 = vadd.f32 %v253, %v92
  %v255 = vxor.u32 %v254, 2147483648
  %v256 = vmul.f32 %v255, 1.442695
  %v257 = vpow.pop %v256
  %v258 = vadd.f32 %v257, 1.0
  %v259 = vrcp.pop %v258
  %v260 = vmul.f32 1.0, %v259
  %s261 = scalar_lea.vmem %s0, 16
  %v262 = vld [vmem:[%s261] sm:$0x3]
  %v263 = vadd.f32 %v262, %v144
  %v264 = vxor.u32 %v263, 2147483648
  %v265 = vmul.f32 %v264, 1.442695
  %v266 = vpow.pop %v265
  %v267 = vadd.f32 %v266, 1.0
  %v268 = vrcp.pop %v267
  %v269 = vmul.f32 1.0, %v268
  %s270 = scalar_lea.vmem %s0, 32
  %v271 = vld [vmem:[%s270] sm:$0x3]
  %v272 = vadd.f32 %v271, %v196
  %v273 = vtanh.pop %v272
  %s274 = scalar_lea.vmem %s0, 48
  %v275 = vld [vmem:[%s274] sm:$0x3]
  %v276 = vadd.f32 %v275, %v248
  %v277 = vxor.u32 %v276, 2147483648
  %v278 = vmul.f32 %v277, 1.442695
  %v279 = vpow.pop %v278
  %v280 = vadd.f32 %v279, 1.0
  %v281 = vrcp.pop %v280
  %v282 = vmul.f32 1.0, %v281
  %v283 = vmul.f32 %v269, %v40
  %v284 = vmul.f32 %v260, %v273
  %v285 = vadd.f32 %v283, %v284
  %v286 = vtanh.pop %v285
  %v287 = vmul.f32 %v282, %v286
  %v288 = vpack.c.bf16 %v287, %v287
  %vm289 = vcmask 253952
  %290 = vst.msk [vmem:[%s2] sm:$0x1] %vm289, %v288
  %v292 = vsel %vm53, %v288, 0
  %294 = vmatprep.subr.bf16.mxu0 0
  %295 = vmatpush1.bf16.msra.mxu0 0
  %296 = vmatprep.subr.bf16.mxu0 0
  %297 = vmatpush1.bf16.msra.mxu0 0
  %298 = vmatprep.subr.bf16.mxu0 0
  %299 = vmatpush1.bf16.msra.mxu0 0
  %300 = vmatprep.subr.bf16.mxu0 0
  %301 = vmatpush1.bf16.msra.mxu0 0
  %302 = vmatprep.subr.bf16.mxu0 0
  %303 = vmatpush1.bf16.msra.mxu0 0
  %304 = vmatprep.subr.bf16.mxu0 0
  %305 = vmatpush1.bf16.msra.mxu0 0
  %306 = vmatprep.subr.bf16.mxu0 0
  %307 = vmatpush1.bf16.msra.mxu0 %v50
  %308 = vmatprep.subr.bf16.mxu0 0
  %309 = vmatpush1.bf16.msra.mxu0 %v49
  %310 = vmatprep.subr.bf16.mxu0 0
  %311 = vmatpush2.bf16.msra.mxu0 0
  %312 = vmatprep.subr.bf16.mxu0 0
  %313 = vmatpush2.bf16.msra.mxu0 0
  %314 = vmatprep.subr.bf16.mxu0 0
  %315 = vmatpush2.bf16.msra.mxu0 0
  %316 = vmatprep.subr.bf16.mxu0 0
  %317 = vmatpush2.bf16.msra.mxu0 0
  %318 = vmatprep.subr.bf16.mxu0 0
  %319 = vmatpush2.bf16.msra.mxu0 0
  %320 = vmatprep.subr.bf16.mxu0 0
  %321 = vmatpush2.bf16.msra.mxu0 0
  %322 = vmatprep.subr.bf16.mxu0 0
  %323 = vmatpush2.bf16.msra.mxu0 0
  %324 = vmatprep.subr.bf16.mxu0 0
  %325 = vmatpush2.bf16.msra.mxu0 0
  %326 = vmatprep.mubr.bf16.mxu0 0
  %327 = vmatmul.mubr.bf16.gmra.mxu0 %v292
  %v328 = vpop.f32.mrf.mxu0
  %v329 = vadd.f32 0.0, %v328
  %v330 = vpop.f32.mrf.mxu0
  %v331 = vpop.f32.mrf.mxu0
  %v332 = vpop.f32.mrf.mxu0
  %333 = vdwg.mxu0
  %334 = vmatprep.subr.bf16.mxu0 0
  %335 = vmatpush1.bf16.msra.mxu0 0
  %336 = vmatprep.subr.bf16.mxu0 0
  %337 = vmatpush1.bf16.msra.mxu0 0
  %338 = vmatprep.subr.bf16.mxu0 0
  %339 = vmatpush1.bf16.msra.mxu0 0
  %340 = vmatprep.subr.bf16.mxu0 0
  %341 = vmatpush1.bf16.msra.mxu0 0
  %342 = vmatprep.subr.bf16.mxu0 0
  %343 = vmatpush1.bf16.msra.mxu0 0
  %344 = vmatprep.subr.bf16.mxu0 0
  %345 = vmatpush1.bf16.msra.mxu0 0
  %346 = vmatprep.subr.bf16.mxu0 0
  %347 = vmatpush1.bf16.msra.mxu0 %v106
  %348 = vmatprep.subr.bf16.mxu0 0
  %349 = vmatpush1.bf16.msra.mxu0 %v105
  %350 = vmatprep.subr.bf16.mxu0 0
  %351 = vmatpush2.bf16.msra.mxu0 0
  %352 = vmatprep.subr.bf16.mxu0 0
  %353 = vmatpush2.bf16.msra.mxu0 0
  %354 = vmatprep.subr.bf16.mxu0 0
  %355 = vmatpush2.bf16.msra.mxu0 0
  %356 = vmatprep.subr.bf16.mxu0 0
  %357 = vmatpush2.bf16.msra.mxu0 0
  %358 = vmatprep.subr.bf16.mxu0 0
  %359 = vmatpush2.bf16.msra.mxu0 0
  %360 = vmatprep.subr.bf16.mxu0 0
  %361 = vmatpush2.bf16.msra.mxu0 0
  %362 = vmatprep.subr.bf16.mxu0 0
  %363 = vmatpush2.bf16.msra.mxu0 0
  %364 = vmatprep.subr.bf16.mxu0 0
  %365 = vmatpush2.bf16.msra.mxu0 0
  %366 = vmatprep.mubr.bf16.mxu0 0
  %367 = vmatmul.mubr.bf16.gmra.mxu0 %v292
  %v368 = vpop.f32.mrf.mxu0
  %v369 = vadd.f32 0.0, %v368
  %v370 = vpop.f32.mrf.mxu0
  %v371 = vpop.f32.mrf.mxu0
  %v372 = vpop.f32.mrf.mxu0
  %373 = vdwg.mxu0
  %374 = vmatprep.subr.bf16.mxu0 0
  %375 = vmatpush1.bf16.msra.mxu0 0
  %376 = vmatprep.subr.bf16.mxu0 0
  %377 = vmatpush1.bf16.msra.mxu0 0
  %378 = vmatprep.subr.bf16.mxu0 0
  %379 = vmatpush1.bf16.msra.mxu0 0
  %380 = vmatprep.subr.bf16.mxu0 0
  %381 = vmatpush1.bf16.msra.mxu0 0
  %382 = vmatprep.subr.bf16.mxu0 0
  %383 = vmatpush1.bf16.msra.mxu0 0
  %384 = vmatprep.subr.bf16.mxu0 0
  %385 = vmatpush1.bf16.msra.mxu0 0
  %386 = vmatprep.subr.bf16.mxu0 0
  %387 = vmatpush1.bf16.msra.mxu0 %v158
  %388 = vmatprep.subr.bf16.mxu0 0
  %389 = vmatpush1.bf16.msra.mxu0 %v157
  %390 = vmatprep.subr.bf16.mxu0 0
  %391 = vmatpush2.bf16.msra.mxu0 0
  %392 = vmatprep.subr.bf16.mxu0 0
  %393 = vmatpush2.bf16.msra.mxu0 0
  %394 = vmatprep.subr.bf16.mxu0 0
  %395 = vmatpush2.bf16.msra.mxu0 0
  %396 = vmatprep.subr.bf16.mxu0 0
  %397 = vmatpush2.bf16.msra.mxu0 0
  %398 = vmatprep.subr.bf16.mxu0 0
  %399 = vmatpush2.bf16.msra.mxu0 0
  %400 = vmatprep.subr.bf16.mxu0 0
  %401 = vmatpush2.bf16.msra.mxu0 0
  %402 = vmatprep.subr.bf16.mxu0 0
  %403 = vmatpush2.bf16.msra.mxu0 0
  %404 = vmatprep.subr.bf16.mxu0 0
  %405 = vmatpush2.bf16.msra.mxu0 0
  %406 = vmatprep.mubr.bf16.mxu0 0
  %407 = vmatmul.mubr.bf16.gmra.mxu0 %v292
  %v408 = vpop.f32.mrf.mxu0
  %v409 = vadd.f32 0.0, %v408
  %v410 = vpop.f32.mrf.mxu0
  %v411 = vpop.f32.mrf.mxu0
  %v412 = vpop.f32.mrf.mxu0
  %413 = vdwg.mxu0
  %414 = vmatprep.subr.bf16.mxu0 0
  %415 = vmatpush1.bf16.msra.mxu0 0
  %416 = vmatprep.subr.bf16.mxu0 0
  %417 = vmatpush1.bf16.msra.mxu0 0
  %418 = vmatprep.subr.bf16.mxu0 0
  %419 = vmatpush1.bf16.msra.mxu0 0
  %420 = vmatprep.subr.bf16.mxu0 0
  %421 = vmatpush1.bf16.msra.mxu0 0
  %422 = vmatprep.subr.bf16.mxu0 0
  %423 = vmatpush1.bf16.msra.mxu0 0
  %424 = vmatprep.subr.bf16.mxu0 0
  %425 = vmatpush1.bf16.msra.mxu0 0
  %426 = vmatprep.subr.bf16.mxu0 0
  %427 = vmatpush1.bf16.msra.mxu0 %v210
  %428 = vmatprep.subr.bf16.mxu0 0
  %429 = vmatpush1.bf16.msra.mxu0 %v209
  %430 = vmatprep.subr.bf16.mxu0 0
  %431 = vmatpush2.bf16.msra.mxu0 0
  %432 = vmatprep.subr.bf16.mxu0 0
  %433 = vmatpush2.bf16.msra.mxu0 0
  %434 = vmatprep.subr.bf16.mxu0 0
  %435 = vmatpush2.bf16.msra.mxu0 0
  %436 = vmatprep.subr.bf16.mxu0 0
  %437 = vmatpush2.bf16.msra.mxu0 0
  %438 = vmatprep.subr.bf16.mxu0 0
  %439 = vmatpush2.bf16.msra.mxu0 0
  %440 = vmatprep.subr.bf16.mxu0 0
  %441 = vmatpush2.bf16.msra.mxu0 0
  %442 = vmatprep.subr.bf16.mxu0 0
  %443 = vmatpush2.bf16.msra.mxu0 0
  %444 = vmatprep.subr.bf16.mxu0 0
  %445 = vmatpush2.bf16.msra.mxu0 0
  %446 = vmatprep.mubr.bf16.mxu0 0
  %447 = vmatmul.mubr.bf16.gmra.mxu0 %v292
  %v448 = vpop.f32.mrf.mxu0
  %v449 = vadd.f32 0.0, %v448
  %v450 = vpop.f32.mrf.mxu0
  %v451 = vpop.f32.mrf.mxu0
  %v452 = vpop.f32.mrf.mxu0
  %453 = vdwg.mxu0
  %s454 = scalar_lea.vmem %s0, 2
  %v455 = vld [vmem:[%s454] sm:$0x3]
  %v456 = vadd.f32 %v455, %v329
  %v457 = vxor.u32 %v456, 2147483648
  %v458 = vmul.f32 %v457, 1.442695
  %v459 = vpow.pop %v458
  %v460 = vadd.f32 %v459, 1.0
  %v461 = vrcp.pop %v460
  %v462 = vmul.f32 1.0, %v461
  %s463 = scalar_lea.vmem %s0, 18
  %v464 = vld [vmem:[%s463] sm:$0x3]
  %v465 = vadd.f32 %v464, %v369
  %v466 = vxor.u32 %v465, 2147483648
  %v467 = vmul.f32 %v466, 1.442695
  %v468 = vpow.pop %v467
  %v469 = vadd.f32 %v468, 1.0
  %v470 = vrcp.pop %v469
  %v471 = vmul.f32 1.0, %v470
  %s472 = scalar_lea.vmem %s0, 34
  %v473 = vld [vmem:[%s472] sm:$0x3]
  %v474 = vadd.f32 %v473, %v409
  %v475 = vtanh.pop %v474
  %s476 = scalar_lea.vmem %s0, 50
  %v477 = vld [vmem:[%s476] sm:$0x3]
  %v478 = vadd.f32 %v477, %v449
  %v479 = vxor.u32 %v478, 2147483648
  %v480 = vmul.f32 %v479, 1.442695
  %v481 = vpow.pop %v480
  %v482 = vadd.f32 %v481, 1.0
  %v483 = vrcp.pop %v482
  %v484 = vmul.f32 1.0, %v483
  %v485 = vmul.f32 %v471, %v285
  %v486 = vmul.f32 %v462, %v475
  %v487 = vadd.f32 %v485, %v486
  %v488 = vtanh.pop %v487
  %v489 = vmul.f32 %v484, %v488
  %v490 = vpack.c.bf16 %v489, %v489
  %s491 = scalar_lea.vmem %s2, 1
  %492 = vst.msk [vmem:[%s491] sm:$0x1] %vm289, %v490
  %v494 = vsel %vm53, %v490, 0
  %496 = vmatprep.subr.bf16.mxu0 0
  %497 = vmatpush1.bf16.msra.mxu0 0
  %498 = vmatprep.subr.bf16.mxu0 0
  %499 = vmatpush1.bf16.msra.mxu0 0
  %500 = vmatprep.subr.bf16.mxu0 0
  %501 = vmatpush1.bf16.msra.mxu0 0
  %502 = vmatprep.subr.bf16.mxu0 0
  %503 = vmatpush1.bf16.msra.mxu0 0
  %504 = vmatprep.subr.bf16.mxu0 0
  %505 = vmatpush1.bf16.msra.mxu0 0
  %506 = vmatprep.subr.bf16.mxu0 0
  %507 = vmatpush1.bf16.msra.mxu0 0
  %508 = vmatprep.subr.bf16.mxu0 0
  %509 = vmatpush1.bf16.msra.mxu0 %v50
  %510 = vmatprep.subr.bf16.mxu0 0
  %511 = vmatpush1.bf16.msra.mxu0 %v49
  %512 = vmatprep.subr.bf16.mxu0 0
  %513 = vmatpush2.bf16.msra.mxu0 0
  %514 = vmatprep.subr.bf16.mxu0 0
  %515 = vmatpush2.bf16.msra.mxu0 0
  %516 = vmatprep.subr.bf16.mxu0 0
  %517 = vmatpush2.bf16.msra.mxu0 0
  %518 = vmatprep.subr.bf16.mxu0 0
  %519 = vmatpush2.bf16.msra.mxu0 0
  %520 = vmatprep.subr.bf16.mxu0 0
  %521 = vmatpush2.bf16.msra.mxu0 0
  %522 = vmatprep.subr.bf16.mxu0 0
  %523 = vmatpush2.bf16.msra.mxu0 0
  %524 = vmatprep.subr.bf16.mxu0 0
  %525 = vmatpush2.bf16.msra.mxu0 0
  %526 = vmatprep.subr.bf16.mxu0 0
  %527 = vmatpush2.bf16.msra.mxu0 0
  %528 = vmatprep.mubr.bf16.mxu0 0
  %529 = vmatmul.mubr.bf16.gmra.mxu0 %v494
  %v530 = vpop.f32.mrf.mxu0
  %v531 = vadd.f32 0.0, %v530
  %v532 = vpop.f32.mrf.mxu0
  %v533 = vpop.f32.mrf.mxu0
  %v534 = vpop.f32.mrf.mxu0
  %535 = vdwg.mxu0
  %536 = vmatprep.subr.bf16.mxu0 0
  %537 = vmatpush1.bf16.msra.mxu0 0
  %538 = vmatprep.subr.bf16.mxu0 0
  %539 = vmatpush1.bf16.msra.mxu0 0
  %540 = vmatprep.subr.bf16.mxu0 0
  %541 = vmatpush1.bf16.msra.mxu0 0
  %542 = vmatprep.subr.bf16.mxu0 0
  %543 = vmatpush1.bf16.msra.mxu0 0
  %544 = vmatprep.subr.bf16.mxu0 0
  %545 = vmatpush1.bf16.msra.mxu0 0
  %546 = vmatprep.subr.bf16.mxu0 0
  %547 = vmatpush1.bf16.msra.mxu0 0
  %548 = vmatprep.subr.bf16.mxu0 0
  %549 = vmatpush1.bf16.msra.mxu0 %v106
  %550 = vmatprep.subr.bf16.mxu0 0
  %551 = vmatpush1.bf16.msra.mxu0 %v105
  %552 = vmatprep.subr.bf16.mxu0 0
  %553 = vmatpush2.bf16.msra.mxu0 0
  %554 = vmatprep.subr.bf16.mxu0 0
  %555 = vmatpush2.bf16.msra.mxu0 0
  %556 = vmatprep.subr.bf16.mxu0 0
  %557 = vmatpush2.bf16.msra.mxu0 0
  %558 = vmatprep.subr.bf16.mxu0 0
  %559 = vmatpush2.bf16.msra.mxu0 0
  %560 = vmatprep.subr.bf16.mxu0 0
  %561 = vmatpush2.bf16.msra.mxu0 0
  %562 = vmatprep.subr.bf16.mxu0 0
  %563 = vmatpush2.bf16.msra.mxu0 0
  %564 = vmatprep.subr.bf16.mxu0 0
  %565 = vmatpush2.bf16.msra.mxu0 0
  %566 = vmatprep.subr.bf16.mxu0 0
  %567 = vmatpush2.bf16.msra.mxu0 0
  %568 = vmatprep.mubr.bf16.mxu0 0
  %569 = vmatmul.mubr.bf16.gmra.mxu0 %v494
  %v570 = vpop.f32.mrf.mxu0
  %v571 = vadd.f32 0.0, %v570
  %v572 = vpop.f32.mrf.mxu0
  %v573 = vpop.f32.mrf.mxu0
  %v574 = vpop.f32.mrf.mxu0
  %575 = vdwg.mxu0
  %576 = vmatprep.subr.bf16.mxu0 0
  %577 = vmatpush1.bf16.msra.mxu0 0
  %578 = vmatprep.subr.bf16.mxu0 0
  %579 = vmatpush1.bf16.msra.mxu0 0
  %580 = vmatprep.subr.bf16.mxu0 0
  %581 = vmatpush1.bf16.msra.mxu0 0
  %582 = vmatprep.subr.bf16.mxu0 0
  %583 = vmatpush1.bf16.msra.mxu0 0
  %584 = vmatprep.subr.bf16.mxu0 0
  %585 = vmatpush1.bf16.msra.mxu0 0
  %586 = vmatprep.subr.bf16.mxu0 0
  %587 = vmatpush1.bf16.msra.mxu0 0
  %588 = vmatprep.subr.bf16.mxu0 0
  %589 = vmatpush1.bf16.msra.mxu0 %v158
  %590 = vmatprep.subr.bf16.mxu0 0
  %591 = vmatpush1.bf16.msra.mxu0 %v157
  %592 = vmatprep.subr.bf16.mxu0 0
  %593 = vmatpush2.bf16.msra.mxu0 0
  %594 = vmatprep.subr.bf16.mxu0 0
  %595 = vmatpush2.bf16.msra.mxu0 0
  %596 = vmatprep.subr.bf16.mxu0 0
  %597 = vmatpush2.bf16.msra.mxu0 0
  %598 = vmatprep.subr.bf16.mxu0 0
  %599 = vmatpush2.bf16.msra.mxu0 0
  %600 = vmatprep.subr.bf16.mxu0 0
  %601 = vmatpush2.bf16.msra.mxu0 0
  %602 = vmatprep.subr.bf16.mxu0 0
  %603 = vmatpush2.bf16.msra.mxu0 0
  %604 = vmatprep.subr.bf16.mxu0 0
  %605 = vmatpush2.bf16.msra.mxu0 0
  %606 = vmatprep.subr.bf16.mxu0 0
  %607 = vmatpush2.bf16.msra.mxu0 0
  %608 = vmatprep.mubr.bf16.mxu0 0
  %609 = vmatmul.mubr.bf16.gmra.mxu0 %v494
  %v610 = vpop.f32.mrf.mxu0
  %v611 = vadd.f32 0.0, %v610
  %v612 = vpop.f32.mrf.mxu0
  %v613 = vpop.f32.mrf.mxu0
  %v614 = vpop.f32.mrf.mxu0
  %615 = vdwg.mxu0
  %616 = vmatprep.subr.bf16.mxu0 0
  %617 = vmatpush1.bf16.msra.mxu0 0
  %618 = vmatprep.subr.bf16.mxu0 0
  %619 = vmatpush1.bf16.msra.mxu0 0
  %620 = vmatprep.subr.bf16.mxu0 0
  %621 = vmatpush1.bf16.msra.mxu0 0
  %622 = vmatprep.subr.bf16.mxu0 0
  %623 = vmatpush1.bf16.msra.mxu0 0
  %624 = vmatprep.subr.bf16.mxu0 0
  %625 = vmatpush1.bf16.msra.mxu0 0
  %626 = vmatprep.subr.bf16.mxu0 0
  %627 = vmatpush1.bf16.msra.mxu0 0
  %628 = vmatprep.subr.bf16.mxu0 0
  %629 = vmatpush1.bf16.msra.mxu0 %v210
  %630 = vmatprep.subr.bf16.mxu0 0
  %631 = vmatpush1.bf16.msra.mxu0 %v209
  %632 = vmatprep.subr.bf16.mxu0 0
  %633 = vmatpush2.bf16.msra.mxu0 0
  %634 = vmatprep.subr.bf16.mxu0 0
  %635 = vmatpush2.bf16.msra.mxu0 0
  %636 = vmatprep.subr.bf16.mxu0 0
  %637 = vmatpush2.bf16.msra.mxu0 0
  %638 = vmatprep.subr.bf16.mxu0 0
  %639 = vmatpush2.bf16.msra.mxu0 0
  %640 = vmatprep.subr.bf16.mxu0 0
  %641 = vmatpush2.bf16.msra.mxu0 0
  %642 = vmatprep.subr.bf16.mxu0 0
  %643 = vmatpush2.bf16.msra.mxu0 0
  %644 = vmatprep.subr.bf16.mxu0 0
  %645 = vmatpush2.bf16.msra.mxu0 0
  %646 = vmatprep.subr.bf16.mxu0 0
  %647 = vmatpush2.bf16.msra.mxu0 0
  %648 = vmatprep.mubr.bf16.mxu0 0
  %649 = vmatmul.mubr.bf16.gmra.mxu0 %v494
  %v650 = vpop.f32.mrf.mxu0
  %v651 = vadd.f32 0.0, %v650
  %v652 = vpop.f32.mrf.mxu0
  %v653 = vpop.f32.mrf.mxu0
  %v654 = vpop.f32.mrf.mxu0
  %655 = vdwg.mxu0
  %s656 = scalar_lea.vmem %s0, 4
  %v657 = vld [vmem:[%s656] sm:$0x3]
  %v658 = vadd.f32 %v657, %v531
  %v659 = vxor.u32 %v658, 2147483648
  %v660 = vmul.f32 %v659, 1.442695
  %v661 = vpow.pop %v660
  %v662 = vadd.f32 %v661, 1.0
  %v663 = vrcp.pop %v662
  %v664 = vmul.f32 1.0, %v663
  %s665 = scalar_lea.vmem %s0, 20
  %v666 = vld [vmem:[%s665] sm:$0x3]
  %v667 = vadd.f32 %v666, %v571
  %v668 = vxor.u32 %v667, 2147483648
  %v669 = vmul.f32 %v668, 1.442695
  %v670 = vpow.pop %v669
  %v671 = vadd.f32 %v670, 1.0
  %v672 = vrcp.pop %v671
  %v673 = vmul.f32 1.0, %v672
  %s674 = scalar_lea.vmem %s0, 36
  %v675 = vld [vmem:[%s674] sm:$0x3]
  %v676 = vadd.f32 %v675, %v611
  %v677 = vtanh.pop %v676
  %s678 = scalar_lea.vmem %s0, 52
  %v679 = vld [vmem:[%s678] sm:$0x3]
  %v680 = vadd.f32 %v679, %v651
  %v681 = vxor.u32 %v680, 2147483648
  %v682 = vmul.f32 %v681, 1.442695
  %v683 = vpow.pop %v682
  %v684 = vadd.f32 %v683, 1.0
  %v685 = vrcp.pop %v684
  %v686 = vmul.f32 1.0, %v685
  %v687 = vmul.f32 %v673, %v487
  %v688 = vmul.f32 %v664, %v677
  %v689 = vadd.f32 %v687, %v688
  %v690 = vtanh.pop %v689
  %v691 = vmul.f32 %v686, %v690
  %v692 = vpack.c.bf16 %v691, %v691
  %s693 = scalar_lea.vmem %s2, 2
  %694 = vst.msk [vmem:[%s693] sm:$0x1] %vm289, %v692
  %v696 = vsel %vm53, %v692, 0
  %698 = vmatprep.subr.bf16.mxu0 0
  %699 = vmatpush1.bf16.msra.mxu0 0
  %700 = vmatprep.subr.bf16.mxu0 0
  %701 = vmatpush1.bf16.msra.mxu0 0
  %702 = vmatprep.subr.bf16.mxu0 0
  %703 = vmatpush1.bf16.msra.mxu0 0
  %704 = vmatprep.subr.bf16.mxu0 0
  %705 = vmatpush1.bf16.msra.mxu0 0
  %706 = vmatprep.subr.bf16.mxu0 0
  %707 = vmatpush1.bf16.msra.mxu0 0
  %708 = vmatprep.subr.bf16.mxu0 0
  %709 = vmatpush1.bf16.msra.mxu0 0
  %710 = vmatprep.subr.bf16.mxu0 0
  %711 = vmatpush1.bf16.msra.mxu0 %v50
  %712 = vmatprep.subr.bf16.mxu0 0
  %713 = vmatpush1.bf16.msra.mxu0 %v49
  %714 = vmatprep.subr.bf16.mxu0 0
  %715 = vmatpush2.bf16.msra.mxu0 0
  %716 = vmatprep.subr.bf16.mxu0 0
  %717 = vmatpush2.bf16.msra.mxu0 0
  %718 = vmatprep.subr.bf16.mxu0 0
  %719 = vmatpush2.bf16.msra.mxu0 0
  %720 = vmatprep.subr.bf16.mxu0 0
  %721 = vmatpush2.bf16.msra.mxu0 0
  %722 = vmatprep.subr.bf16.mxu0 0
  %723 = vmatpush2.bf16.msra.mxu0 0
  %724 = vmatprep.subr.bf16.mxu0 0
  %725 = vmatpush2.bf16.msra.mxu0 0
  %726 = vmatprep.subr.bf16.mxu0 0
  %727 = vmatpush2.bf16.msra.mxu0 0
  %728 = vmatprep.subr.bf16.mxu0 0
  %729 = vmatpush2.bf16.msra.mxu0 0
  %730 = vmatprep.mubr.bf16.mxu0 0
  %731 = vmatmul.mubr.bf16.gmra.mxu0 %v696
  %v732 = vpop.f32.mrf.mxu0
  %v733 = vadd.f32 0.0, %v732
  %v734 = vpop.f32.mrf.mxu0
  %v735 = vpop.f32.mrf.mxu0
  %v736 = vpop.f32.mrf.mxu0
  %737 = vdwg.mxu0
  %738 = vmatprep.subr.bf16.mxu0 0
  %739 = vmatpush1.bf16.msra.mxu0 0
  %740 = vmatprep.subr.bf16.mxu0 0
  %741 = vmatpush1.bf16.msra.mxu0 0
  %742 = vmatprep.subr.bf16.mxu0 0
  %743 = vmatpush1.bf16.msra.mxu0 0
  %744 = vmatprep.subr.bf16.mxu0 0
  %745 = vmatpush1.bf16.msra.mxu0 0
  %746 = vmatprep.subr.bf16.mxu0 0
  %747 = vmatpush1.bf16.msra.mxu0 0
  %748 = vmatprep.subr.bf16.mxu0 0
  %749 = vmatpush1.bf16.msra.mxu0 0
  %750 = vmatprep.subr.bf16.mxu0 0
  %751 = vmatpush1.bf16.msra.mxu0 %v106
  %752 = vmatprep.subr.bf16.mxu0 0
  %753 = vmatpush1.bf16.msra.mxu0 %v105
  %754 = vmatprep.subr.bf16.mxu0 0
  %755 = vmatpush2.bf16.msra.mxu0 0
  %756 = vmatprep.subr.bf16.mxu0 0
  %757 = vmatpush2.bf16.msra.mxu0 0
  %758 = vmatprep.subr.bf16.mxu0 0
  %759 = vmatpush2.bf16.msra.mxu0 0
  %760 = vmatprep.subr.bf16.mxu0 0
  %761 = vmatpush2.bf16.msra.mxu0 0
  %762 = vmatprep.subr.bf16.mxu0 0
  %763 = vmatpush2.bf16.msra.mxu0 0
  %764 = vmatprep.subr.bf16.mxu0 0
  %765 = vmatpush2.bf16.msra.mxu0 0
  %766 = vmatprep.subr.bf16.mxu0 0
  %767 = vmatpush2.bf16.msra.mxu0 0
  %768 = vmatprep.subr.bf16.mxu0 0
  %769 = vmatpush2.bf16.msra.mxu0 0
  %770 = vmatprep.mubr.bf16.mxu0 0
  %771 = vmatmul.mubr.bf16.gmra.mxu0 %v696
  %v772 = vpop.f32.mrf.mxu0
  %v773 = vadd.f32 0.0, %v772
  %v774 = vpop.f32.mrf.mxu0
  %v775 = vpop.f32.mrf.mxu0
  %v776 = vpop.f32.mrf.mxu0
  %777 = vdwg.mxu0
  %778 = vmatprep.subr.bf16.mxu0 0
  %779 = vmatpush1.bf16.msra.mxu0 0
  %780 = vmatprep.subr.bf16.mxu0 0
  %781 = vmatpush1.bf16.msra.mxu0 0
  %782 = vmatprep.subr.bf16.mxu0 0
  %783 = vmatpush1.bf16.msra.mxu0 0
  %784 = vmatprep.subr.bf16.mxu0 0
  %785 = vmatpush1.bf16.msra.mxu0 0
  %786 = vmatprep.subr.bf16.mxu0 0
  %787 = vmatpush1.bf16.msra.mxu0 0
  %788 = vmatprep.subr.bf16.mxu0 0
  %789 = vmatpush1.bf16.msra.mxu0 0
  %790 = vmatprep.subr.bf16.mxu0 0
  %791 = vmatpush1.bf16.msra.mxu0 %v158
  %792 = vmatprep.subr.bf16.mxu0 0
  %793 = vmatpush1.bf16.msra.mxu0 %v157
  %794 = vmatprep.subr.bf16.mxu0 0
  %795 = vmatpush2.bf16.msra.mxu0 0
  %796 = vmatprep.subr.bf16.mxu0 0
  %797 = vmatpush2.bf16.msra.mxu0 0
  %798 = vmatprep.subr.bf16.mxu0 0
  %799 = vmatpush2.bf16.msra.mxu0 0
  %800 = vmatprep.subr.bf16.mxu0 0
  %801 = vmatpush2.bf16.msra.mxu0 0
  %802 = vmatprep.subr.bf16.mxu0 0
  %803 = vmatpush2.bf16.msra.mxu0 0
  %804 = vmatprep.subr.bf16.mxu0 0
  %805 = vmatpush2.bf16.msra.mxu0 0
  %806 = vmatprep.subr.bf16.mxu0 0
  %807 = vmatpush2.bf16.msra.mxu0 0
  %808 = vmatprep.subr.bf16.mxu0 0
  %809 = vmatpush2.bf16.msra.mxu0 0
  %810 = vmatprep.mubr.bf16.mxu0 0
  %811 = vmatmul.mubr.bf16.gmra.mxu0 %v696
  %v812 = vpop.f32.mrf.mxu0
  %v813 = vadd.f32 0.0, %v812
  %v814 = vpop.f32.mrf.mxu0
  %v815 = vpop.f32.mrf.mxu0
  %v816 = vpop.f32.mrf.mxu0
  %817 = vdwg.mxu0
  %818 = vmatprep.subr.bf16.mxu0 0
  %819 = vmatpush1.bf16.msra.mxu0 0
  %820 = vmatprep.subr.bf16.mxu0 0
  %821 = vmatpush1.bf16.msra.mxu0 0
  %822 = vmatprep.subr.bf16.mxu0 0
  %823 = vmatpush1.bf16.msra.mxu0 0
  %824 = vmatprep.subr.bf16.mxu0 0
  %825 = vmatpush1.bf16.msra.mxu0 0
  %826 = vmatprep.subr.bf16.mxu0 0
  %827 = vmatpush1.bf16.msra.mxu0 0
  %828 = vmatprep.subr.bf16.mxu0 0
  %829 = vmatpush1.bf16.msra.mxu0 0
  %830 = vmatprep.subr.bf16.mxu0 0
  %831 = vmatpush1.bf16.msra.mxu0 %v210
  %832 = vmatprep.subr.bf16.mxu0 0
  %833 = vmatpush1.bf16.msra.mxu0 %v209
  %834 = vmatprep.subr.bf16.mxu0 0
  %835 = vmatpush2.bf16.msra.mxu0 0
  %836 = vmatprep.subr.bf16.mxu0 0
  %837 = vmatpush2.bf16.msra.mxu0 0
  %838 = vmatprep.subr.bf16.mxu0 0
  %839 = vmatpush2.bf16.msra.mxu0 0
  %840 = vmatprep.subr.bf16.mxu0 0
  %841 = vmatpush2.bf16.msra.mxu0 0
  %842 = vmatprep.subr.bf16.mxu0 0
  %843 = vmatpush2.bf16.msra.mxu0 0
  %844 = vmatprep.subr.bf16.mxu0 0
  %845 = vmatpush2.bf16.msra.mxu0 0
  %846 = vmatprep.subr.bf16.mxu0 0
  %847 = vmatpush2.bf16.msra.mxu0 0
  %848 = vmatprep.subr.bf16.mxu0 0
  %849 = vmatpush2.bf16.msra.mxu0 0
  %850 = vmatprep.mubr.bf16.mxu0 0
  %851 = vmatmul.mubr.bf16.gmra.mxu0 %v696
  %v852 = vpop.f32.mrf.mxu0
  %v853 = vadd.f32 0.0, %v852
  %v854 = vpop.f32.mrf.mxu0
  %v855 = vpop.f32.mrf.mxu0
  %v856 = vpop.f32.mrf.mxu0
  %857 = vdwg.mxu0
  %s858 = scalar_lea.vmem %s0, 6
  %v859 = vld [vmem:[%s858] sm:$0x3]
  %v860 = vadd.f32 %v859, %v733
  %v861 = vxor.u32 %v860, 2147483648
  %v862 = vmul.f32 %v861, 1.442695
  %v863 = vpow.pop %v862
  %v864 = vadd.f32 %v863, 1.0
  %v865 = vrcp.pop %v864
  %v866 = vmul.f32 1.0, %v865
  %s867 = scalar_lea.vmem %s0, 22
  %v868 = vld [vmem:[%s867] sm:$0x3]
  %v869 = vadd.f32 %v868, %v773
  %v870 = vxor.u32 %v869, 2147483648
  %v871 = vmul.f32 %v870, 1.442695
  %v872 = vpow.pop %v871
  %v873 = vadd.f32 %v872, 1.0
  %v874 = vrcp.pop %v873
  %v875 = vmul.f32 1.0, %v874
  %s876 = scalar_lea.vmem %s0, 38
  %v877 = vld [vmem:[%s876] sm:$0x3]
  %v878 = vadd.f32 %v877, %v813
  %v879 = vtanh.pop %v878
  %s880 = scalar_lea.vmem %s0, 54
  %v881 = vld [vmem:[%s880] sm:$0x3]
  %v882 = vadd.f32 %v881, %v853
  %v883 = vxor.u32 %v882, 2147483648
  %v884 = vmul.f32 %v883, 1.442695
  %v885 = vpow.pop %v884
  %v886 = vadd.f32 %v885, 1.0
  %v887 = vrcp.pop %v886
  %v888 = vmul.f32 1.0, %v887
  %v889 = vmul.f32 %v875, %v689
  %v890 = vmul.f32 %v866, %v879
  %v891 = vadd.f32 %v889, %v890
  %v892 = vtanh.pop %v891
  %v893 = vmul.f32 %v888, %v892
  %v894 = vpack.c.bf16 %v893, %v893
  %s895 = scalar_lea.vmem %s2, 3
  %896 = vst.msk [vmem:[%s895] sm:$0x1] %vm289, %v894
  %v898 = vsel %vm53, %v894, 0
  %900 = vmatprep.subr.bf16.mxu0 0
  %901 = vmatpush1.bf16.msra.mxu0 0
  %902 = vmatprep.subr.bf16.mxu0 0
  %903 = vmatpush1.bf16.msra.mxu0 0
  %904 = vmatprep.subr.bf16.mxu0 0
  %905 = vmatpush1.bf16.msra.mxu0 0
  %906 = vmatprep.subr.bf16.mxu0 0
  %907 = vmatpush1.bf16.msra.mxu0 0
  %908 = vmatprep.subr.bf16.mxu0 0
  %909 = vmatpush1.bf16.msra.mxu0 0
  %910 = vmatprep.subr.bf16.mxu0 0
  %911 = vmatpush1.bf16.msra.mxu0 0
  %912 = vmatprep.subr.bf16.mxu0 0
  %913 = vmatpush1.bf16.msra.mxu0 %v50
  %914 = vmatprep.subr.bf16.mxu0 0
  %915 = vmatpush1.bf16.msra.mxu0 %v49
  %916 = vmatprep.subr.bf16.mxu0 0
  %917 = vmatpush2.bf16.msra.mxu0 0
  %918 = vmatprep.subr.bf16.mxu0 0
  %919 = vmatpush2.bf16.msra.mxu0 0
  %920 = vmatprep.subr.bf16.mxu0 0
  %921 = vmatpush2.bf16.msra.mxu0 0
  %922 = vmatprep.subr.bf16.mxu0 0
  %923 = vmatpush2.bf16.msra.mxu0 0
  %924 = vmatprep.subr.bf16.mxu0 0
  %925 = vmatpush2.bf16.msra.mxu0 0
  %926 = vmatprep.subr.bf16.mxu0 0
  %927 = vmatpush2.bf16.msra.mxu0 0
  %928 = vmatprep.subr.bf16.mxu0 0
  %929 = vmatpush2.bf16.msra.mxu0 0
  %930 = vmatprep.subr.bf16.mxu0 0
  %931 = vmatpush2.bf16.msra.mxu0 0
  %932 = vmatprep.mubr.bf16.mxu0 0
  %933 = vmatmul.mubr.bf16.gmra.mxu0 %v898
  %v934 = vpop.f32.mrf.mxu0
  %v935 = vadd.f32 0.0, %v934
  %v936 = vpop.f32.mrf.mxu0
  %v937 = vpop.f32.mrf.mxu0
  %v938 = vpop.f32.mrf.mxu0
  %939 = vdwg.mxu0
  %940 = vmatprep.subr.bf16.mxu0 0
  %941 = vmatpush1.bf16.msra.mxu0 0
  %942 = vmatprep.subr.bf16.mxu0 0
  %943 = vmatpush1.bf16.msra.mxu0 0
  %944 = vmatprep.subr.bf16.mxu0 0
  %945 = vmatpush1.bf16.msra.mxu0 0
  %946 = vmatprep.subr.bf16.mxu0 0
  %947 = vmatpush1.bf16.msra.mxu0 0
  %948 = vmatprep.subr.bf16.mxu0 0
  %949 = vmatpush1.bf16.msra.mxu0 0
  %950 = vmatprep.subr.bf16.mxu0 0
  %951 = vmatpush1.bf16.msra.mxu0 0
  %952 = vmatprep.subr.bf16.mxu0 0
  %953 = vmatpush1.bf16.msra.mxu0 %v106
  %954 = vmatprep.subr.bf16.mxu0 0
  %955 = vmatpush1.bf16.msra.mxu0 %v105
  %956 = vmatprep.subr.bf16.mxu0 0
  %957 = vmatpush2.bf16.msra.mxu0 0
  %958 = vmatprep.subr.bf16.mxu0 0
  %959 = vmatpush2.bf16.msra.mxu0 0
  %960 = vmatprep.subr.bf16.mxu0 0
  %961 = vmatpush2.bf16.msra.mxu0 0
  %962 = vmatprep.subr.bf16.mxu0 0
  %963 = vmatpush2.bf16.msra.mxu0 0
  %964 = vmatprep.subr.bf16.mxu0 0
  %965 = vmatpush2.bf16.msra.mxu0 0
  %966 = vmatprep.subr.bf16.mxu0 0
  %967 = vmatpush2.bf16.msra.mxu0 0
  %968 = vmatprep.subr.bf16.mxu0 0
  %969 = vmatpush2.bf16.msra.mxu0 0
  %970 = vmatprep.subr.bf16.mxu0 0
  %971 = vmatpush2.bf16.msra.mxu0 0
  %972 = vmatprep.mubr.bf16.mxu0 0
  %973 = vmatmul.mubr.bf16.gmra.mxu0 %v898
  %v974 = vpop.f32.mrf.mxu0
  %v975 = vadd.f32 0.0, %v974
  %v976 = vpop.f32.mrf.mxu0
  %v977 = vpop.f32.mrf.mxu0
  %v978 = vpop.f32.mrf.mxu0
  %979 = vdwg.mxu0
  %980 = vmatprep.subr.bf16.mxu0 0
  %981 = vmatpush1.bf16.msra.mxu0 0
  %982 = vmatprep.subr.bf16.mxu0 0
  %983 = vmatpush1.bf16.msra.mxu0 0
  %984 = vmatprep.subr.bf16.mxu0 0
  %985 = vmatpush1.bf16.msra.mxu0 0
  %986 = vmatprep.subr.bf16.mxu0 0
  %987 = vmatpush1.bf16.msra.mxu0 0
  %988 = vmatprep.subr.bf16.mxu0 0
  %989 = vmatpush1.bf16.msra.mxu0 0
  %990 = vmatprep.subr.bf16.mxu0 0
  %991 = vmatpush1.bf16.msra.mxu0 0
  %992 = vmatprep.subr.bf16.mxu0 0
  %993 = vmatpush1.bf16.msra.mxu0 %v158
  %994 = vmatprep.subr.bf16.mxu0 0
  %995 = vmatpush1.bf16.msra.mxu0 %v157
  %996 = vmatprep.subr.bf16.mxu0 0
  %997 = vmatpush2.bf16.msra.mxu0 0
  %998 = vmatprep.subr.bf16.mxu0 0
  %999 = vmatpush2.bf16.msra.mxu0 0
  %1000 = vmatprep.subr.bf16.mxu0 0
  %1001 = vmatpush2.bf16.msra.mxu0 0
  %1002 = vmatprep.subr.bf16.mxu0 0
  %1003 = vmatpush2.bf16.msra.mxu0 0
  %1004 = vmatprep.subr.bf16.mxu0 0
  %1005 = vmatpush2.bf16.msra.mxu0 0
  %1006 = vmatprep.subr.bf16.mxu0 0
  %1007 = vmatpush2.bf16.msra.mxu0 0
  %1008 = vmatprep.subr.bf16.mxu0 0
  %1009 = vmatpush2.bf16.msra.mxu0 0
  %1010 = vmatprep.subr.bf16.mxu0 0
  %1011 = vmatpush2.bf16.msra.mxu0 0
  %1012 = vmatprep.mubr.bf16.mxu0 0
  %1013 = vmatmul.mubr.bf16.gmra.mxu0 %v898
  %v1014 = vpop.f32.mrf.mxu0
  %v1015 = vadd.f32 0.0, %v1014
  %v1016 = vpop.f32.mrf.mxu0
  %v1017 = vpop.f32.mrf.mxu0
  %v1018 = vpop.f32.mrf.mxu0
  %1019 = vdwg.mxu0
  %1020 = vmatprep.subr.bf16.mxu0 0
  %1021 = vmatpush1.bf16.msra.mxu0 0
  %1022 = vmatprep.subr.bf16.mxu0 0
  %1023 = vmatpush1.bf16.msra.mxu0 0
  %1024 = vmatprep.subr.bf16.mxu0 0
  %1025 = vmatpush1.bf16.msra.mxu0 0
  %1026 = vmatprep.subr.bf16.mxu0 0
  %1027 = vmatpush1.bf16.msra.mxu0 0
  %1028 = vmatprep.subr.bf16.mxu0 0
  %1029 = vmatpush1.bf16.msra.mxu0 0
  %1030 = vmatprep.subr.bf16.mxu0 0
  %1031 = vmatpush1.bf16.msra.mxu0 0
  %1032 = vmatprep.subr.bf16.mxu0 0
  %1033 = vmatpush1.bf16.msra.mxu0 %v210
  %1034 = vmatprep.subr.bf16.mxu0 0
  %1035 = vmatpush1.bf16.msra.mxu0 %v209
  %1036 = vmatprep.subr.bf16.mxu0 0
  %1037 = vmatpush2.bf16.msra.mxu0 0
  %1038 = vmatprep.subr.bf16.mxu0 0
  %1039 = vmatpush2.bf16.msra.mxu0 0
  %1040 = vmatprep.subr.bf16.mxu0 0
  %1041 = vmatpush2.bf16.msra.mxu0 0
  %1042 = vmatprep.subr.bf16.mxu0 0
  %1043 = vmatpush2.bf16.msra.mxu0 0
  %1044 = vmatprep.subr.bf16.mxu0 0
  %1045 = vmatpush2.bf16.msra.mxu0 0
  %1046 = vmatprep.subr.bf16.mxu0 0
  %1047 = vmatpush2.bf16.msra.mxu0 0
  %1048 = vmatprep.subr.bf16.mxu0 0
  %1049 = vmatpush2.bf16.msra.mxu0 0
  %1050 = vmatprep.subr.bf16.mxu0 0
  %1051 = vmatpush2.bf16.msra.mxu0 0
  %1052 = vmatprep.mubr.bf16.mxu0 0
  %1053 = vmatmul.mubr.bf16.gmra.mxu0 %v898
  %v1054 = vpop.f32.mrf.mxu0
  %v1055 = vadd.f32 0.0, %v1054
  %v1056 = vpop.f32.mrf.mxu0
  %v1057 = vpop.f32.mrf.mxu0
  %v1058 = vpop.f32.mrf.mxu0
  %1059 = vdwg.mxu0
  %s1060 = scalar_lea.vmem %s0, 8
  %v1061 = vld [vmem:[%s1060] sm:$0x3]
  %v1062 = vadd.f32 %v1061, %v935
  %v1063 = vxor.u32 %v1062, 2147483648
  %v1064 = vmul.f32 %v1063, 1.442695
  %v1065 = vpow.pop %v1064
  %v1066 = vadd.f32 %v1065, 1.0
  %v1067 = vrcp.pop %v1066
  %v1068 = vmul.f32 1.0, %v1067
  %s1069 = scalar_lea.vmem %s0, 24
  %v1070 = vld [vmem:[%s1069] sm:$0x3]
  %v1071 = vadd.f32 %v1070, %v975
  %v1072 = vxor.u32 %v1071, 2147483648
  %v1073 = vmul.f32 %v1072, 1.442695
  %v1074 = vpow.pop %v1073
  %v1075 = vadd.f32 %v1074, 1.0
  %v1076 = vrcp.pop %v1075
  %v1077 = vmul.f32 1.0, %v1076
  %s1078 = scalar_lea.vmem %s0, 40
  %v1079 = vld [vmem:[%s1078] sm:$0x3]
  %v1080 = vadd.f32 %v1079, %v1015
  %v1081 = vtanh.pop %v1080
  %s1082 = scalar_lea.vmem %s0, 56
  %v1083 = vld [vmem:[%s1082] sm:$0x3]
  %v1084 = vadd.f32 %v1083, %v1055
  %v1085 = vxor.u32 %v1084, 2147483648
  %v1086 = vmul.f32 %v1085, 1.442695
  %v1087 = vpow.pop %v1086
  %v1088 = vadd.f32 %v1087, 1.0
  %v1089 = vrcp.pop %v1088
  %v1090 = vmul.f32 1.0, %v1089
  %v1091 = vmul.f32 %v1077, %v891
  %v1092 = vmul.f32 %v1068, %v1081
  %v1093 = vadd.f32 %v1091, %v1092
  %v1094 = vtanh.pop %v1093
  %v1095 = vmul.f32 %v1090, %v1094
  %v1096 = vpack.c.bf16 %v1095, %v1095
  %s1097 = scalar_lea.vmem %s2, 4
  %1098 = vst.msk [vmem:[%s1097] sm:$0x1] %vm289, %v1096
  %v1100 = vsel %vm53, %v1096, 0
  %1102 = vmatprep.subr.bf16.mxu0 0
  %1103 = vmatpush1.bf16.msra.mxu0 0
  %1104 = vmatprep.subr.bf16.mxu0 0
  %1105 = vmatpush1.bf16.msra.mxu0 0
  %1106 = vmatprep.subr.bf16.mxu0 0
  %1107 = vmatpush1.bf16.msra.mxu0 0
  %1108 = vmatprep.subr.bf16.mxu0 0
  %1109 = vmatpush1.bf16.msra.mxu0 0
  %1110 = vmatprep.subr.bf16.mxu0 0
  %1111 = vmatpush1.bf16.msra.mxu0 0
  %1112 = vmatprep.subr.bf16.mxu0 0
  %1113 = vmatpush1.bf16.msra.mxu0 0
  %1114 = vmatprep.subr.bf16.mxu0 0
  %1115 = vmatpush1.bf16.msra.mxu0 %v50
  %1116 = vmatprep.subr.bf16.mxu0 0
  %1117 = vmatpush1.bf16.msra.mxu0 %v49
  %1118 = vmatprep.subr.bf16.mxu0 0
  %1119 = vmatpush2.bf16.msra.mxu0 0
  %1120 = vmatprep.subr.bf16.mxu0 0
  %1121 = vmatpush2.bf16.msra.mxu0 0
  %1122 = vmatprep.subr.bf16.mxu0 0
  %1123 = vmatpush2.bf16.msra.mxu0 0
  %1124 = vmatprep.subr.bf16.mxu0 0
  %1125 = vmatpush2.bf16.msra.mxu0 0
  %1126 = vmatprep.subr.bf16.mxu0 0
  %1127 = vmatpush2.bf16.msra.mxu0 0
  %1128 = vmatprep.subr.bf16.mxu0 0
  %1129 = vmatpush2.bf16.msra.mxu0 0
  %1130 = vmatprep.subr.bf16.mxu0 0
  %1131 = vmatpush2.bf16.msra.mxu0 0
  %1132 = vmatprep.subr.bf16.mxu0 0
  %1133 = vmatpush2.bf16.msra.mxu0 0
  %1134 = vmatprep.mubr.bf16.mxu0 0
  %1135 = vmatmul.mubr.bf16.gmra.mxu0 %v1100
  %v1136 = vpop.f32.mrf.mxu0
  %v1137 = vadd.f32 0.0, %v1136
  %v1138 = vpop.f32.mrf.mxu0
  %v1139 = vpop.f32.mrf.mxu0
  %v1140 = vpop.f32.mrf.mxu0
  %1141 = vdwg.mxu0
  %1142 = vmatprep.subr.bf16.mxu0 0
  %1143 = vmatpush1.bf16.msra.mxu0 0
  %1144 = vmatprep.subr.bf16.mxu0 0
  %1145 = vmatpush1.bf16.msra.mxu0 0
  %1146 = vmatprep.subr.bf16.mxu0 0
  %1147 = vmatpush1.bf16.msra.mxu0 0
  %1148 = vmatprep.subr.bf16.mxu0 0
  %1149 = vmatpush1.bf16.msra.mxu0 0
  %1150 = vmatprep.subr.bf16.mxu0 0
  %1151 = vmatpush1.bf16.msra.mxu0 0
  %1152 = vmatprep.subr.bf16.mxu0 0
  %1153 = vmatpush1.bf16.msra.mxu0 0
  %1154 = vmatprep.subr.bf16.mxu0 0
  %1155 = vmatpush1.bf16.msra.mxu0 %v106
  %1156 = vmatprep.subr.bf16.mxu0 0
  %1157 = vmatpush1.bf16.msra.mxu0 %v105
  %1158 = vmatprep.subr.bf16.mxu0 0
  %1159 = vmatpush2.bf16.msra.mxu0 0
  %1160 = vmatprep.subr.bf16.mxu0 0
  %1161 = vmatpush2.bf16.msra.mxu0 0
  %1162 = vmatprep.subr.bf16.mxu0 0
  %1163 = vmatpush2.bf16.msra.mxu0 0
  %1164 = vmatprep.subr.bf16.mxu0 0
  %1165 = vmatpush2.bf16.msra.mxu0 0
  %1166 = vmatprep.subr.bf16.mxu0 0
  %1167 = vmatpush2.bf16.msra.mxu0 0
  %1168 = vmatprep.subr.bf16.mxu0 0
  %1169 = vmatpush2.bf16.msra.mxu0 0
  %1170 = vmatprep.subr.bf16.mxu0 0
  %1171 = vmatpush2.bf16.msra.mxu0 0
  %1172 = vmatprep.subr.bf16.mxu0 0
  %1173 = vmatpush2.bf16.msra.mxu0 0
  %1174 = vmatprep.mubr.bf16.mxu0 0
  %1175 = vmatmul.mubr.bf16.gmra.mxu0 %v1100
  %v1176 = vpop.f32.mrf.mxu0
  %v1177 = vadd.f32 0.0, %v1176
  %v1178 = vpop.f32.mrf.mxu0
  %v1179 = vpop.f32.mrf.mxu0
  %v1180 = vpop.f32.mrf.mxu0
  %1181 = vdwg.mxu0
  %1182 = vmatprep.subr.bf16.mxu0 0
  %1183 = vmatpush1.bf16.msra.mxu0 0
  %1184 = vmatprep.subr.bf16.mxu0 0
  %1185 = vmatpush1.bf16.msra.mxu0 0
  %1186 = vmatprep.subr.bf16.mxu0 0
  %1187 = vmatpush1.bf16.msra.mxu0 0
  %1188 = vmatprep.subr.bf16.mxu0 0
  %1189 = vmatpush1.bf16.msra.mxu0 0
  %1190 = vmatprep.subr.bf16.mxu0 0
  %1191 = vmatpush1.bf16.msra.mxu0 0
  %1192 = vmatprep.subr.bf16.mxu0 0
  %1193 = vmatpush1.bf16.msra.mxu0 0
  %1194 = vmatprep.subr.bf16.mxu0 0
  %1195 = vmatpush1.bf16.msra.mxu0 %v158
  %1196 = vmatprep.subr.bf16.mxu0 0
  %1197 = vmatpush1.bf16.msra.mxu0 %v157
  %1198 = vmatprep.subr.bf16.mxu0 0
  %1199 = vmatpush2.bf16.msra.mxu0 0
  %1200 = vmatprep.subr.bf16.mxu0 0
  %1201 = vmatpush2.bf16.msra.mxu0 0
  %1202 = vmatprep.subr.bf16.mxu0 0
  %1203 = vmatpush2.bf16.msra.mxu0 0
  %1204 = vmatprep.subr.bf16.mxu0 0
  %1205 = vmatpush2.bf16.msra.mxu0 0
  %1206 = vmatprep.subr.bf16.mxu0 0
  %1207 = vmatpush2.bf16.msra.mxu0 0
  %1208 = vmatprep.subr.bf16.mxu0 0
  %1209 = vmatpush2.bf16.msra.mxu0 0
  %1210 = vmatprep.subr.bf16.mxu0 0
  %1211 = vmatpush2.bf16.msra.mxu0 0
  %1212 = vmatprep.subr.bf16.mxu0 0
  %1213 = vmatpush2.bf16.msra.mxu0 0
  %1214 = vmatprep.mubr.bf16.mxu0 0
  %1215 = vmatmul.mubr.bf16.gmra.mxu0 %v1100
  %v1216 = vpop.f32.mrf.mxu0
  %v1217 = vadd.f32 0.0, %v1216
  %v1218 = vpop.f32.mrf.mxu0
  %v1219 = vpop.f32.mrf.mxu0
  %v1220 = vpop.f32.mrf.mxu0
  %1221 = vdwg.mxu0
  %1222 = vmatprep.subr.bf16.mxu0 0
  %1223 = vmatpush1.bf16.msra.mxu0 0
  %1224 = vmatprep.subr.bf16.mxu0 0
  %1225 = vmatpush1.bf16.msra.mxu0 0
  %1226 = vmatprep.subr.bf16.mxu0 0
  %1227 = vmatpush1.bf16.msra.mxu0 0
  %1228 = vmatprep.subr.bf16.mxu0 0
  %1229 = vmatpush1.bf16.msra.mxu0 0
  %1230 = vmatprep.subr.bf16.mxu0 0
  %1231 = vmatpush1.bf16.msra.mxu0 0
  %1232 = vmatprep.subr.bf16.mxu0 0
  %1233 = vmatpush1.bf16.msra.mxu0 0
  %1234 = vmatprep.subr.bf16.mxu0 0
  %1235 = vmatpush1.bf16.msra.mxu0 %v210
  %1236 = vmatprep.subr.bf16.mxu0 0
  %1237 = vmatpush1.bf16.msra.mxu0 %v209
  %1238 = vmatprep.subr.bf16.mxu0 0
  %1239 = vmatpush2.bf16.msra.mxu0 0
  %1240 = vmatprep.subr.bf16.mxu0 0
  %1241 = vmatpush2.bf16.msra.mxu0 0
  %1242 = vmatprep.subr.bf16.mxu0 0
  %1243 = vmatpush2.bf16.msra.mxu0 0
  %1244 = vmatprep.subr.bf16.mxu0 0
  %1245 = vmatpush2.bf16.msra.mxu0 0
  %1246 = vmatprep.subr.bf16.mxu0 0
  %1247 = vmatpush2.bf16.msra.mxu0 0
  %1248 = vmatprep.subr.bf16.mxu0 0
  %1249 = vmatpush2.bf16.msra.mxu0 0
  %1250 = vmatprep.subr.bf16.mxu0 0
  %1251 = vmatpush2.bf16.msra.mxu0 0
  %1252 = vmatprep.subr.bf16.mxu0 0
  %1253 = vmatpush2.bf16.msra.mxu0 0
  %1254 = vmatprep.mubr.bf16.mxu0 0
  %1255 = vmatmul.mubr.bf16.gmra.mxu0 %v1100
  %v1256 = vpop.f32.mrf.mxu0
  %v1257 = vadd.f32 0.0, %v1256
  %v1258 = vpop.f32.mrf.mxu0
  %v1259 = vpop.f32.mrf.mxu0
  %v1260 = vpop.f32.mrf.mxu0
  %1261 = vdwg.mxu0
  %s1262 = scalar_lea.vmem %s0, 10
  %v1263 = vld [vmem:[%s1262] sm:$0x3]
  %v1264 = vadd.f32 %v1263, %v1137
  %v1265 = vxor.u32 %v1264, 2147483648
  %v1266 = vmul.f32 %v1265, 1.442695
  %v1267 = vpow.pop %v1266
  %v1268 = vadd.f32 %v1267, 1.0
  %v1269 = vrcp.pop %v1268
  %v1270 = vmul.f32 1.0, %v1269
  %s1271 = scalar_lea.vmem %s0, 26
  %v1272 = vld [vmem:[%s1271] sm:$0x3]
  %v1273 = vadd.f32 %v1272, %v1177
  %v1274 = vxor.u32 %v1273, 2147483648
  %v1275 = vmul.f32 %v1274, 1.442695
  %v1276 = vpow.pop %v1275
  %v1277 = vadd.f32 %v1276, 1.0
  %v1278 = vrcp.pop %v1277
  %v1279 = vmul.f32 1.0, %v1278
  %s1280 = scalar_lea.vmem %s0, 42
  %v1281 = vld [vmem:[%s1280] sm:$0x3]
  %v1282 = vadd.f32 %v1281, %v1217
  %v1283 = vtanh.pop %v1282
  %s1284 = scalar_lea.vmem %s0, 58
  %v1285 = vld [vmem:[%s1284] sm:$0x3]
  %v1286 = vadd.f32 %v1285, %v1257
  %v1287 = vxor.u32 %v1286, 2147483648
  %v1288 = vmul.f32 %v1287, 1.442695
  %v1289 = vpow.pop %v1288
  %v1290 = vadd.f32 %v1289, 1.0
  %v1291 = vrcp.pop %v1290
  %v1292 = vmul.f32 1.0, %v1291
  %v1293 = vmul.f32 %v1279, %v1093
  %v1294 = vmul.f32 %v1270, %v1283
  %v1295 = vadd.f32 %v1293, %v1294
  %v1296 = vtanh.pop %v1295
  %v1297 = vmul.f32 %v1292, %v1296
  %v1298 = vpack.c.bf16 %v1297, %v1297
  %s1299 = scalar_lea.vmem %s2, 5
  %1300 = vst.msk [vmem:[%s1299] sm:$0x1] %vm289, %v1298
  %v1302 = vsel %vm53, %v1298, 0
  %1304 = vmatprep.subr.bf16.mxu0 0
  %1305 = vmatpush1.bf16.msra.mxu0 0
  %1306 = vmatprep.subr.bf16.mxu0 0
  %1307 = vmatpush1.bf16.msra.mxu0 0
  %1308 = vmatprep.subr.bf16.mxu0 0
  %1309 = vmatpush1.bf16.msra.mxu0 0
  %1310 = vmatprep.subr.bf16.mxu0 0
  %1311 = vmatpush1.bf16.msra.mxu0 0
  %1312 = vmatprep.subr.bf16.mxu0 0
  %1313 = vmatpush1.bf16.msra.mxu0 0
  %1314 = vmatprep.subr.bf16.mxu0 0
  %1315 = vmatpush1.bf16.msra.mxu0 0
  %1316 = vmatprep.subr.bf16.mxu0 0
  %1317 = vmatpush1.bf16.msra.mxu0 %v50
  %1318 = vmatprep.subr.bf16.mxu0 0
  %1319 = vmatpush1.bf16.msra.mxu0 %v49
  %1320 = vmatprep.subr.bf16.mxu0 0
  %1321 = vmatpush2.bf16.msra.mxu0 0
  %1322 = vmatprep.subr.bf16.mxu0 0
  %1323 = vmatpush2.bf16.msra.mxu0 0
  %1324 = vmatprep.subr.bf16.mxu0 0
  %1325 = vmatpush2.bf16.msra.mxu0 0
  %1326 = vmatprep.subr.bf16.mxu0 0
  %1327 = vmatpush2.bf16.msra.mxu0 0
  %1328 = vmatprep.subr.bf16.mxu0 0
  %1329 = vmatpush2.bf16.msra.mxu0 0
  %1330 = vmatprep.subr.bf16.mxu0 0
  %1331 = vmatpush2.bf16.msra.mxu0 0
  %1332 = vmatprep.subr.bf16.mxu0 0
  %1333 = vmatpush2.bf16.msra.mxu0 0
  %1334 = vmatprep.subr.bf16.mxu0 0
  %1335 = vmatpush2.bf16.msra.mxu0 0
  %1336 = vmatprep.mubr.bf16.mxu0 0
  %1337 = vmatmul.mubr.bf16.gmra.mxu0 %v1302
  %v1338 = vpop.f32.mrf.mxu0
  %v1339 = vadd.f32 0.0, %v1338
  %v1340 = vpop.f32.mrf.mxu0
  %v1341 = vpop.f32.mrf.mxu0
  %v1342 = vpop.f32.mrf.mxu0
  %1343 = vdwg.mxu0
  %1344 = vmatprep.subr.bf16.mxu0 0
  %1345 = vmatpush1.bf16.msra.mxu0 0
  %1346 = vmatprep.subr.bf16.mxu0 0
  %1347 = vmatpush1.bf16.msra.mxu0 0
  %1348 = vmatprep.subr.bf16.mxu0 0
  %1349 = vmatpush1.bf16.msra.mxu0 0
  %1350 = vmatprep.subr.bf16.mxu0 0
  %1351 = vmatpush1.bf16.msra.mxu0 0
  %1352 = vmatprep.subr.bf16.mxu0 0
  %1353 = vmatpush1.bf16.msra.mxu0 0
  %1354 = vmatprep.subr.bf16.mxu0 0
  %1355 = vmatpush1.bf16.msra.mxu0 0
  %1356 = vmatprep.subr.bf16.mxu0 0
  %1357 = vmatpush1.bf16.msra.mxu0 %v106
  %1358 = vmatprep.subr.bf16.mxu0 0
  %1359 = vmatpush1.bf16.msra.mxu0 %v105
  %1360 = vmatprep.subr.bf16.mxu0 0
  %1361 = vmatpush2.bf16.msra.mxu0 0
  %1362 = vmatprep.subr.bf16.mxu0 0
  %1363 = vmatpush2.bf16.msra.mxu0 0
  %1364 = vmatprep.subr.bf16.mxu0 0
  %1365 = vmatpush2.bf16.msra.mxu0 0
  %1366 = vmatprep.subr.bf16.mxu0 0
  %1367 = vmatpush2.bf16.msra.mxu0 0
  %1368 = vmatprep.subr.bf16.mxu0 0
  %1369 = vmatpush2.bf16.msra.mxu0 0
  %1370 = vmatprep.subr.bf16.mxu0 0
  %1371 = vmatpush2.bf16.msra.mxu0 0
  %1372 = vmatprep.subr.bf16.mxu0 0
  %1373 = vmatpush2.bf16.msra.mxu0 0
  %1374 = vmatprep.subr.bf16.mxu0 0
  %1375 = vmatpush2.bf16.msra.mxu0 0
  %1376 = vmatprep.mubr.bf16.mxu0 0
  %1377 = vmatmul.mubr.bf16.gmra.mxu0 %v1302
  %v1378 = vpop.f32.mrf.mxu0
  %v1379 = vadd.f32 0.0, %v1378
  %v1380 = vpop.f32.mrf.mxu0
  %v1381 = vpop.f32.mrf.mxu0
  %v1382 = vpop.f32.mrf.mxu0
  %1383 = vdwg.mxu0
  %1384 = vmatprep.subr.bf16.mxu0 0
  %1385 = vmatpush1.bf16.msra.mxu0 0
  %1386 = vmatprep.subr.bf16.mxu0 0
  %1387 = vmatpush1.bf16.msra.mxu0 0
  %1388 = vmatprep.subr.bf16.mxu0 0
  %1389 = vmatpush1.bf16.msra.mxu0 0
  %1390 = vmatprep.subr.bf16.mxu0 0
  %1391 = vmatpush1.bf16.msra.mxu0 0
  %1392 = vmatprep.subr.bf16.mxu0 0
  %1393 = vmatpush1.bf16.msra.mxu0 0
  %1394 = vmatprep.subr.bf16.mxu0 0
  %1395 = vmatpush1.bf16.msra.mxu0 0
  %1396 = vmatprep.subr.bf16.mxu0 0
  %1397 = vmatpush1.bf16.msra.mxu0 %v158
  %1398 = vmatprep.subr.bf16.mxu0 0
  %1399 = vmatpush1.bf16.msra.mxu0 %v157
  %1400 = vmatprep.subr.bf16.mxu0 0
  %1401 = vmatpush2.bf16.msra.mxu0 0
  %1402 = vmatprep.subr.bf16.mxu0 0
  %1403 = vmatpush2.bf16.msra.mxu0 0
  %1404 = vmatprep.subr.bf16.mxu0 0
  %1405 = vmatpush2.bf16.msra.mxu0 0
  %1406 = vmatprep.subr.bf16.mxu0 0
  %1407 = vmatpush2.bf16.msra.mxu0 0
  %1408 = vmatprep.subr.bf16.mxu0 0
  %1409 = vmatpush2.bf16.msra.mxu0 0
  %1410 = vmatprep.subr.bf16.mxu0 0
  %1411 = vmatpush2.bf16.msra.mxu0 0
  %1412 = vmatprep.subr.bf16.mxu0 0
  %1413 = vmatpush2.bf16.msra.mxu0 0
  %1414 = vmatprep.subr.bf16.mxu0 0
  %1415 = vmatpush2.bf16.msra.mxu0 0
  %1416 = vmatprep.mubr.bf16.mxu0 0
  %1417 = vmatmul.mubr.bf16.gmra.mxu0 %v1302
  %v1418 = vpop.f32.mrf.mxu0
  %v1419 = vadd.f32 0.0, %v1418
  %v1420 = vpop.f32.mrf.mxu0
  %v1421 = vpop.f32.mrf.mxu0
  %v1422 = vpop.f32.mrf.mxu0
  %1423 = vdwg.mxu0
  %1424 = vmatprep.subr.bf16.mxu0 0
  %1425 = vmatpush1.bf16.msra.mxu0 0
  %1426 = vmatprep.subr.bf16.mxu0 0
  %1427 = vmatpush1.bf16.msra.mxu0 0
  %1428 = vmatprep.subr.bf16.mxu0 0
  %1429 = vmatpush1.bf16.msra.mxu0 0
  %1430 = vmatprep.subr.bf16.mxu0 0
  %1431 = vmatpush1.bf16.msra.mxu0 0
  %1432 = vmatprep.subr.bf16.mxu0 0
  %1433 = vmatpush1.bf16.msra.mxu0 0
  %1434 = vmatprep.subr.bf16.mxu0 0
  %1435 = vmatpush1.bf16.msra.mxu0 0
  %1436 = vmatprep.subr.bf16.mxu0 0
  %1437 = vmatpush1.bf16.msra.mxu0 %v210
  %1438 = vmatprep.subr.bf16.mxu0 0
  %1439 = vmatpush1.bf16.msra.mxu0 %v209
  %1440 = vmatprep.subr.bf16.mxu0 0
  %1441 = vmatpush2.bf16.msra.mxu0 0
  %1442 = vmatprep.subr.bf16.mxu0 0
  %1443 = vmatpush2.bf16.msra.mxu0 0
  %1444 = vmatprep.subr.bf16.mxu0 0
  %1445 = vmatpush2.bf16.msra.mxu0 0
  %1446 = vmatprep.subr.bf16.mxu0 0
  %1447 = vmatpush2.bf16.msra.mxu0 0
  %1448 = vmatprep.subr.bf16.mxu0 0
  %1449 = vmatpush2.bf16.msra.mxu0 0
  %1450 = vmatprep.subr.bf16.mxu0 0
  %1451 = vmatpush2.bf16.msra.mxu0 0
  %1452 = vmatprep.subr.bf16.mxu0 0
  %1453 = vmatpush2.bf16.msra.mxu0 0
  %1454 = vmatprep.subr.bf16.mxu0 0
  %1455 = vmatpush2.bf16.msra.mxu0 0
  %1456 = vmatprep.mubr.bf16.mxu0 0
  %1457 = vmatmul.mubr.bf16.gmra.mxu0 %v1302
  %v1458 = vpop.f32.mrf.mxu0
  %v1459 = vadd.f32 0.0, %v1458
  %v1460 = vpop.f32.mrf.mxu0
  %v1461 = vpop.f32.mrf.mxu0
  %v1462 = vpop.f32.mrf.mxu0
  %1463 = vdwg.mxu0
  %s1464 = scalar_lea.vmem %s0, 12
  %v1465 = vld [vmem:[%s1464] sm:$0x3]
  %v1466 = vadd.f32 %v1465, %v1339
  %v1467 = vxor.u32 %v1466, 2147483648
  %v1468 = vmul.f32 %v1467, 1.442695
  %v1469 = vpow.pop %v1468
  %v1470 = vadd.f32 %v1469, 1.0
  %v1471 = vrcp.pop %v1470
  %v1472 = vmul.f32 1.0, %v1471
  %s1473 = scalar_lea.vmem %s0, 28
  %v1474 = vld [vmem:[%s1473] sm:$0x3]
  %v1475 = vadd.f32 %v1474, %v1379
  %v1476 = vxor.u32 %v1475, 2147483648
  %v1477 = vmul.f32 %v1476, 1.442695
  %v1478 = vpow.pop %v1477
  %v1479 = vadd.f32 %v1478, 1.0
  %v1480 = vrcp.pop %v1479
  %v1481 = vmul.f32 1.0, %v1480
  %s1482 = scalar_lea.vmem %s0, 44
  %v1483 = vld [vmem:[%s1482] sm:$0x3]
  %v1484 = vadd.f32 %v1483, %v1419
  %v1485 = vtanh.pop %v1484
  %s1486 = scalar_lea.vmem %s0, 60
  %v1487 = vld [vmem:[%s1486] sm:$0x3]
  %v1488 = vadd.f32 %v1487, %v1459
  %v1489 = vxor.u32 %v1488, 2147483648
  %v1490 = vmul.f32 %v1489, 1.442695
  %v1491 = vpow.pop %v1490
  %v1492 = vadd.f32 %v1491, 1.0
  %v1493 = vrcp.pop %v1492
  %v1494 = vmul.f32 1.0, %v1493
  %v1495 = vmul.f32 %v1481, %v1295
  %v1496 = vmul.f32 %v1472, %v1485
  %v1497 = vadd.f32 %v1495, %v1496
  %v1498 = vtanh.pop %v1497
  %v1499 = vmul.f32 %v1494, %v1498
  %v1500 = vpack.c.bf16 %v1499, %v1499
  %s1501 = scalar_lea.vmem %s2, 6
  %1502 = vst.msk [vmem:[%s1501] sm:$0x1] %vm289, %v1500
  %v1504 = vsel %vm53, %v1500, 0
  %1506 = vmatprep.subr.bf16.mxu0 0
  %1507 = vmatpush1.bf16.msra.mxu0 0
  %1508 = vmatprep.subr.bf16.mxu0 0
  %1509 = vmatpush1.bf16.msra.mxu0 0
  %1510 = vmatprep.subr.bf16.mxu0 0
  %1511 = vmatpush1.bf16.msra.mxu0 0
  %1512 = vmatprep.subr.bf16.mxu0 0
  %1513 = vmatpush1.bf16.msra.mxu0 0
  %1514 = vmatprep.subr.bf16.mxu0 0
  %1515 = vmatpush1.bf16.msra.mxu0 0
  %1516 = vmatprep.subr.bf16.mxu0 0
  %1517 = vmatpush1.bf16.msra.mxu0 0
  %1518 = vmatprep.subr.bf16.mxu0 0
  %1519 = vmatpush1.bf16.msra.mxu0 %v50
  %1520 = vmatprep.subr.bf16.mxu0 0
  %1521 = vmatpush1.bf16.msra.mxu0 %v49
  %1522 = vmatprep.subr.bf16.mxu0 0
  %1523 = vmatpush2.bf16.msra.mxu0 0
  %1524 = vmatprep.subr.bf16.mxu0 0
  %1525 = vmatpush2.bf16.msra.mxu0 0
  %1526 = vmatprep.subr.bf16.mxu0 0
  %1527 = vmatpush2.bf16.msra.mxu0 0
  %1528 = vmatprep.subr.bf16.mxu0 0
  %1529 = vmatpush2.bf16.msra.mxu0 0
  %1530 = vmatprep.subr.bf16.mxu0 0
  %1531 = vmatpush2.bf16.msra.mxu0 0
  %1532 = vmatprep.subr.bf16.mxu0 0
  %1533 = vmatpush2.bf16.msra.mxu0 0
  %1534 = vmatprep.subr.bf16.mxu0 0
  %1535 = vmatpush2.bf16.msra.mxu0 0
  %1536 = vmatprep.subr.bf16.mxu0 0
  %1537 = vmatpush2.bf16.msra.mxu0 0
  %1538 = vmatprep.mubr.bf16.mxu0 0
  %1539 = vmatmul.mubr.bf16.gmra.mxu0 %v1504
  %v1540 = vpop.f32.mrf.mxu0
  %v1541 = vadd.f32 0.0, %v1540
  %v1542 = vpop.f32.mrf.mxu0
  %v1543 = vpop.f32.mrf.mxu0
  %v1544 = vpop.f32.mrf.mxu0
  %1545 = vdwg.mxu0
  %1546 = vmatprep.subr.bf16.mxu0 0
  %1547 = vmatpush1.bf16.msra.mxu0 0
  %1548 = vmatprep.subr.bf16.mxu0 0
  %1549 = vmatpush1.bf16.msra.mxu0 0
  %1550 = vmatprep.subr.bf16.mxu0 0
  %1551 = vmatpush1.bf16.msra.mxu0 0
  %1552 = vmatprep.subr.bf16.mxu0 0
  %1553 = vmatpush1.bf16.msra.mxu0 0
  %1554 = vmatprep.subr.bf16.mxu0 0
  %1555 = vmatpush1.bf16.msra.mxu0 0
  %1556 = vmatprep.subr.bf16.mxu0 0
  %1557 = vmatpush1.bf16.msra.mxu0 0
  %1558 = vmatprep.subr.bf16.mxu0 0
  %1559 = vmatpush1.bf16.msra.mxu0 %v106
  %1560 = vmatprep.subr.bf16.mxu0 0
  %1561 = vmatpush1.bf16.msra.mxu0 %v105
  %1562 = vmatprep.subr.bf16.mxu0 0
  %1563 = vmatpush2.bf16.msra.mxu0 0
  %1564 = vmatprep.subr.bf16.mxu0 0
  %1565 = vmatpush2.bf16.msra.mxu0 0
  %1566 = vmatprep.subr.bf16.mxu0 0
  %1567 = vmatpush2.bf16.msra.mxu0 0
  %1568 = vmatprep.subr.bf16.mxu0 0
  %1569 = vmatpush2.bf16.msra.mxu0 0
  %1570 = vmatprep.subr.bf16.mxu0 0
  %1571 = vmatpush2.bf16.msra.mxu0 0
  %1572 = vmatprep.subr.bf16.mxu0 0
  %1573 = vmatpush2.bf16.msra.mxu0 0
  %1574 = vmatprep.subr.bf16.mxu0 0
  %1575 = vmatpush2.bf16.msra.mxu0 0
  %1576 = vmatprep.subr.bf16.mxu0 0
  %1577 = vmatpush2.bf16.msra.mxu0 0
  %1578 = vmatprep.mubr.bf16.mxu0 0
  %1579 = vmatmul.mubr.bf16.gmra.mxu0 %v1504
  %v1580 = vpop.f32.mrf.mxu0
  %v1581 = vadd.f32 0.0, %v1580
  %v1582 = vpop.f32.mrf.mxu0
  %v1583 = vpop.f32.mrf.mxu0
  %v1584 = vpop.f32.mrf.mxu0
  %1585 = vdwg.mxu0
  %1586 = vmatprep.subr.bf16.mxu0 0
  %1587 = vmatpush1.bf16.msra.mxu0 0
  %1588 = vmatprep.subr.bf16.mxu0 0
  %1589 = vmatpush1.bf16.msra.mxu0 0
  %1590 = vmatprep.subr.bf16.mxu0 0
  %1591 = vmatpush1.bf16.msra.mxu0 0
  %1592 = vmatprep.subr.bf16.mxu0 0
  %1593 = vmatpush1.bf16.msra.mxu0 0
  %1594 = vmatprep.subr.bf16.mxu0 0
  %1595 = vmatpush1.bf16.msra.mxu0 0
  %1596 = vmatprep.subr.bf16.mxu0 0
  %1597 = vmatpush1.bf16.msra.mxu0 0
  %1598 = vmatprep.subr.bf16.mxu0 0
  %1599 = vmatpush1.bf16.msra.mxu0 %v158
  %1600 = vmatprep.subr.bf16.mxu0 0
  %1601 = vmatpush1.bf16.msra.mxu0 %v157
  %1602 = vmatprep.subr.bf16.mxu0 0
  %1603 = vmatpush2.bf16.msra.mxu0 0
  %1604 = vmatprep.subr.bf16.mxu0 0
  %1605 = vmatpush2.bf16.msra.mxu0 0
  %1606 = vmatprep.subr.bf16.mxu0 0
  %1607 = vmatpush2.bf16.msra.mxu0 0
  %1608 = vmatprep.subr.bf16.mxu0 0
  %1609 = vmatpush2.bf16.msra.mxu0 0
  %1610 = vmatprep.subr.bf16.mxu0 0
  %1611 = vmatpush2.bf16.msra.mxu0 0
  %1612 = vmatprep.subr.bf16.mxu0 0
  %1613 = vmatpush2.bf16.msra.mxu0 0
  %1614 = vmatprep.subr.bf16.mxu0 0
  %1615 = vmatpush2.bf16.msra.mxu0 0
  %1616 = vmatprep.subr.bf16.mxu0 0
  %1617 = vmatpush2.bf16.msra.mxu0 0
  %1618 = vmatprep.mubr.bf16.mxu0 0
  %1619 = vmatmul.mubr.bf16.gmra.mxu0 %v1504
  %v1620 = vpop.f32.mrf.mxu0
  %v1621 = vadd.f32 0.0, %v1620
  %v1622 = vpop.f32.mrf.mxu0
  %v1623 = vpop.f32.mrf.mxu0
  %v1624 = vpop.f32.mrf.mxu0
  %1625 = vdwg.mxu0
  %1626 = vmatprep.subr.bf16.mxu0 0
  %1627 = vmatpush1.bf16.msra.mxu0 0
  %1628 = vmatprep.subr.bf16.mxu0 0
  %1629 = vmatpush1.bf16.msra.mxu0 0
  %1630 = vmatprep.subr.bf16.mxu0 0
  %1631 = vmatpush1.bf16.msra.mxu0 0
  %1632 = vmatprep.subr.bf16.mxu0 0
  %1633 = vmatpush1.bf16.msra.mxu0 0
  %1634 = vmatprep.subr.bf16.mxu0 0
  %1635 = vmatpush1.bf16.msra.mxu0 0
  %1636 = vmatprep.subr.bf16.mxu0 0
  %1637 = vmatpush1.bf16.msra.mxu0 0
  %1638 = vmatprep.subr.bf16.mxu0 0
  %1639 = vmatpush1.bf16.msra.mxu0 %v210
  %1640 = vmatprep.subr.bf16.mxu0 0
  %1641 = vmatpush1.bf16.msra.mxu0 %v209
  %1642 = vmatprep.subr.bf16.mxu0 0
  %1643 = vmatpush2.bf16.msra.mxu0 0
  %1644 = vmatprep.subr.bf16.mxu0 0
  %1645 = vmatpush2.bf16.msra.mxu0 0
  %1646 = vmatprep.subr.bf16.mxu0 0
  %1647 = vmatpush2.bf16.msra.mxu0 0
  %1648 = vmatprep.subr.bf16.mxu0 0
  %1649 = vmatpush2.bf16.msra.mxu0 0
  %1650 = vmatprep.subr.bf16.mxu0 0
  %1651 = vmatpush2.bf16.msra.mxu0 0
  %1652 = vmatprep.subr.bf16.mxu0 0
  %1653 = vmatpush2.bf16.msra.mxu0 0
  %1654 = vmatprep.subr.bf16.mxu0 0
  %1655 = vmatpush2.bf16.msra.mxu0 0
  %1656 = vmatprep.subr.bf16.mxu0 0
  %1657 = vmatpush2.bf16.msra.mxu0 0
  %1658 = vmatprep.mubr.bf16.mxu0 0
  %1659 = vmatmul.mubr.bf16.gmra.mxu0 %v1504
  %v1660 = vpop.f32.mrf.mxu0
  %v1661 = vadd.f32 0.0, %v1660
  %v1662 = vpop.f32.mrf.mxu0
  %v1663 = vpop.f32.mrf.mxu0
  %v1664 = vpop.f32.mrf.mxu0
  %1665 = vdwg.mxu0
  %s1666 = scalar_lea.vmem %s0, 14
  %v1667 = vld [vmem:[%s1666] sm:$0x3]
  %v1668 = vadd.f32 %v1667, %v1541
  %v1669 = vxor.u32 %v1668, 2147483648
  %v1670 = vmul.f32 %v1669, 1.442695
  %v1671 = vpow.pop %v1670
  %v1672 = vadd.f32 %v1671, 1.0
  %v1673 = vrcp.pop %v1672
  %v1674 = vmul.f32 1.0, %v1673
  %s1675 = scalar_lea.vmem %s0, 30
  %v1676 = vld [vmem:[%s1675] sm:$0x3]
  %v1677 = vadd.f32 %v1676, %v1581
  %v1678 = vxor.u32 %v1677, 2147483648
  %v1679 = vmul.f32 %v1678, 1.442695
  %v1680 = vpow.pop %v1679
  %v1681 = vadd.f32 %v1680, 1.0
  %v1682 = vrcp.pop %v1681
  %v1683 = vmul.f32 1.0, %v1682
  %s1684 = scalar_lea.vmem %s0, 46
  %v1685 = vld [vmem:[%s1684] sm:$0x3]
  %v1686 = vadd.f32 %v1685, %v1621
  %v1687 = vtanh.pop %v1686
  %s1688 = scalar_lea.vmem %s0, 62
  %v1689 = vld [vmem:[%s1688] sm:$0x3]
  %v1690 = vadd.f32 %v1689, %v1661
  %v1691 = vxor.u32 %v1690, 2147483648
  %v1692 = vmul.f32 %v1691, 1.442695
  %v1693 = vpow.pop %v1692
  %v1694 = vadd.f32 %v1693, 1.0
  %v1695 = vrcp.pop %v1694
  %v1696 = vmul.f32 1.0, %v1695
  %v1697 = vmul.f32 %v1683, %v1497
  %v1698 = vmul.f32 %v1674, %v1687
  %v1699 = vadd.f32 %v1697, %v1698
  %v1700 = vtanh.pop %v1699
  %v1701 = vmul.f32 %v1696, %v1700
  %v1702 = vpack.c.bf16 %v1701, %v1701
  %s1703 = scalar_lea.vmem %s2, 7
  %1704 = vst.msk [vmem:[%s1703] sm:$0x1] %vm289, %v1702
  %1705 = vst.msk [vmem:[#allocation2] sm:$0x1] %vm289, %v1702
  %vm1706 = vcmask 254976
  %1707 = vst.msk [vmem:[#allocation3] sm:$0x3] %vm1706, %v1699
  // Predicated region
  $region14: #{lstm_model_forward.5} parent=0 // pred_check
    _
  $region15: #{lstm_model_forward.5} parent=0 // pred_check_branch
    %1709 = sbr.rel (0) target = $region17
  $region16: #{lstm_model_forward.5} parent=0 // pred_region
    _
  $region17: #{lstm_model_forward.5} parent=0 // pred_fallthru
    _
  // Predicated region
  $region18: #{lstm_model_forward.5} parent=0 // pred_check
    _
  $region19: #{lstm_model_forward.5} parent=0 // pred_check_branch
    %1711 = sbr.rel (0) target = $region21
  $region20: #{lstm_model_forward.5} parent=0 // pred_region
    _
  $region21: #{lstm_model_forward.5} parent=0 // pred_fallthru
    _

// kernel: lstm_model_forward.7
$region0: #{lstm_model_forward.7}
  #allocation0 [shape = 'u32[]', space=smem, size = 0x4, offset = 0x4, fixed_abs, tag = 'smem constant byte address 0x4 - core index']
  #allocation1 [shape = 'u32[144,128]{1,0:T(1,128)}', space=vmem, size = 0x12000, scoped, tag = 'internal scratch']
  #allocation2 [shape = 'bf16[2,32]{1,0:T(2,128)(2,1)}', space=vmem, size = 0x200, scoped, tag = 'scratch operand']
  #allocation3 [shape = 'f32[2,32]{1,0:T(2,128)}', space=vmem, size = 0x400, scoped, tag = 'scratch operand']
  #allocation4 [shape = 'bf16[8,2,32]{2,1,0:T(2,128)(2,1)}', space=vmem, size = 0x1000, scoped, tag = 'scratch operand']
  %s0 = inlined_call_operand.vmem [shape: f32[4,8,2,32], index: 0, kind: input, shape index: {}]
  %s1 = inlined_call_operand.vmem [shape: bf16[4,32,32], index: 1, kind: input, shape index: {}]
  %s2 = inlined_call_operand.vmem [shape: bf16[32,8], index: 2, kind: input, shape index: {}]
  %s3 = inlined_call_operand.vmem [shape: f32[1,8], index: 3, kind: input, shape index: {}]
  %s4 = inlined_call_operand.hbm [shape: f32[8,2,8], index: 4, kind: output, shape index: {}]
  %s5 = sld [smem:[#allocation0]]
  $region30: #{lstm_model_forward.7} parent=0
    _
  %s7 = ssub.s32 1, %s5
  %s8 = scalar_select 0, %s7, %s5
  $region1: #{lstm_model_forward.7} parent=0
    #allocation5 [shape = 'u8[8192]{0}', space=vmem, size = 0x2000, scoped, tag = 'output window, operand 0, single buffered']
    #allocation6 [shape = 's32[1]{0}', space=sflag, size = 0x4, scoped, tag = 'scoped memory for lstm_model_forward.7']
    %9 = vsyncpa [#allocation6], 0
    // Predicated region
    $region2: #{lstm_model_forward.7} parent=1 // pred_check
      _
    $region3: #{lstm_model_forward.7} parent=1 // pred_check_branch
      %11 = sbr.rel (0) target = $region5
    $region4: #{lstm_model_forward.7} parent=1 // pred_region
      _
    $region5: #{lstm_model_forward.7} parent=1 // pred_fallthru
      _
    // Predicated region
    $region6: #{lstm_model_forward.7} parent=1 // pred_check
      _
    $region7: #{lstm_model_forward.7} parent=1 // pred_check_branch
      %13 = sbr.rel (0) target = $region9
    $region8: #{lstm_model_forward.7} parent=1 // pred_region
      _
    $region9: #{lstm_model_forward.7} parent=1 // pred_fallthru
      _
    // Predicated region
    $region10: #{lstm_model_forward.7} parent=1 // pred_check
      _
    $region11: #{lstm_model_forward.7} parent=1 // pred_check_branch
      %15 = sbr.rel (0) target = $region13
    $region12: #{lstm_model_forward.7} parent=1 // pred_region
      _
    $region13: #{lstm_model_forward.7} parent=1 // pred_fallthru
      _
    // Predicated region
    $region14: #{lstm_model_forward.7} parent=1 // pred_check
      _
    $region15: #{lstm_model_forward.7} parent=1 // pred_check_branch
      %17 = sbr.rel (0) target = $region17
    $region16: #{lstm_model_forward.7} parent=1 // pred_region
      _
    $region17: #{lstm_model_forward.7} parent=1 // pred_fallthru
      _
    %p19 = scmp.eq.s32.totalorder 0, 0
    // Predicated region
    $region18: #{lstm_model_forward.7} parent=1 // pred_check
      %p20 = pneg %p19
    $region19: #{lstm_model_forward.7} parent=1 // pred_check_branch
      %22 = sbr.rel (%p20) target = $region21
    $region20: #{lstm_model_forward.7} parent=1 // pred_region
      %vm23 = vcmask 253952
      %24 = vst.msk [vmem:[#allocation2] sm:$0x1] %vm23, 0
      %vm25 = vcmask 254976
      %26 = vst.msk [vmem:[#allocation3] sm:$0x3] %vm25, 0.0
    $region21: #{lstm_model_forward.7} parent=1 // pred_fallthru
      _
    %v27 = vld [vmem:[%s1] sm:$0xf]
    %v28 = vld [vmem:[%s1 + $0x4] sm:$0xf]
    %v29 = vld [vmem:[%s1 + $0x8] sm:$0xf]
    %v30 = vld [vmem:[%s1 + $0xc] sm:$0xf]
    %s31 = scalar_lea.vmem %s1, 16
    %v32 = vld [vmem:[%s31] sm:$0xf]
    %v33 = vld [vmem:[%s31 + $0x4] sm:$0xf]
    %v34 = vld [vmem:[%s31 + $0x8] sm:$0xf]
    %v35 = vld [vmem:[%s31 + $0xc] sm:$0xf]
    %s36 = scalar_lea.vmem %s1, 32
    %v37 = vld [vmem:[%s36] sm:$0xf]
    %v38 = vld [vmem:[%s36 + $0x4] sm:$0xf]
    %v39 = vld [vmem:[%s36 + $0x8] sm:$0xf]
    %v40 = vld [vmem:[%s36 + $0xc] sm:$0xf]
    %s41 = scalar_lea.vmem %s1, 48
    %v42 = vld [vmem:[%s41] sm:$0xf]
    %v43 = vld [vmem:[%s41 + $0x4] sm:$0xf]
    %v44 = vld [vmem:[%s41 + $0x8] sm:$0xf]
    %v45 = vld [vmem:[%s41 + $0xc] sm:$0xf]
    %v46 = vld [vmem:[#allocation2] sm:$0x1]
    %v47 = vld [vmem:[#allocation3] sm:$0x3]
    %v52 = vunpack.c.l.b16 %v27
    %v53 = vunpack.c.l.b16 %v28
    %v54 = vunpack.c.l.b16 %v29
    %v55 = vunpack.c.l.b16 %v30
    %v56 = vpack.c.b16 %v53, %v52
    %v57 = vpack.c.b16 %v55, %v54
    %vm60 = vcmask 261120
    %v62 = vsel %vm60, %v46, 0
    %64 = vmatprep.subr.bf16.mxu0 0
    %65 = vmatpush1.bf16.msra.mxu0 0
    %66 = vmatprep.subr.bf16.mxu0 0
    %67 = vmatpush1.bf16.msra.mxu0 0
    %68 = vmatprep.subr.bf16.mxu0 0
    %69 = vmatpush1.bf16.msra.mxu0 0
    %70 = vmatprep.subr.bf16.mxu0 0
    %71 = vmatpush1.bf16.msra.mxu0 0
    %72 = vmatprep.subr.bf16.mxu0 0
    %73 = vmatpush1.bf16.msra.mxu0 0
    %74 = vmatprep.subr.bf16.mxu0 0
    %75 = vmatpush1.bf16.msra.mxu0 0
    %76 = vmatprep.subr.bf16.mxu0 0
    %77 = vmatpush1.bf16.msra.mxu0 %v57
    %78 = vmatprep.subr.bf16.mxu0 0
    %79 = vmatpush1.bf16.msra.mxu0 %v56
    %80 = vmatprep.subr.bf16.mxu0 0
    %81 = vmatpush2.bf16.msra.mxu0 0
    %82 = vmatprep.subr.bf16.mxu0 0
    %83 = vmatpush2.bf16.msra.mxu0 0
    %84 = vmatprep.subr.bf16.mxu0 0
    %85 = vmatpush2.bf16.msra.mxu0 0
    %86 = vmatprep.subr.bf16.mxu0 0
    %87 = vmatpush2.bf16.msra.mxu0 0
    %88 = vmatprep.subr.bf16.mxu0 0
    %89 = vmatpush2.bf16.msra.mxu0 0
    %90 = vmatprep.subr.bf16.mxu0 0
    %91 = vmatpush2.bf16.msra.mxu0 0
    %92 = vmatprep.subr.bf16.mxu0 0
    %93 = vmatpush2.bf16.msra.mxu0 0
    %94 = vmatprep.subr.bf16.mxu0 0
    %95 = vmatpush2.bf16.msra.mxu0 0
    %96 = vmatprep.mubr.bf16.mxu0 0
    %97 = vmatmul.mubr.bf16.gmra.mxu0 %v62
    %v98 = vpop.f32.mrf.mxu0
    %v99 = vadd.f32 0.0, %v98
    %v100 = vpop.f32.mrf.mxu0
    %v101 = vpop.f32.mrf.mxu0
    %v102 = vpop.f32.mrf.mxu0
    %103 = vdwg.mxu0
    %v108 = vunpack.c.l.b16 %v32
    %v109 = vunpack.c.l.b16 %v33
    %v110 = vunpack.c.l.b16 %v34
    %v111 = vunpack.c.l.b16 %v35
    %v112 = vpack.c.b16 %v109, %v108
    %v113 = vpack.c.b16 %v111, %v110
    %116 = vmatprep.subr.bf16.mxu0 0
    %117 = vmatpush1.bf16.msra.mxu0 0
    %118 = vmatprep.subr.bf16.mxu0 0
    %119 = vmatpush1.bf16.msra.mxu0 0
    %120 = vmatprep.subr.bf16.mxu0 0
    %121 = vmatpush1.bf16.msra.mxu0 0
    %122 = vmatprep.subr.bf16.mxu0 0
    %123 = vmatpush1.bf16.msra.mxu0 0
    %124 = vmatprep.subr.bf16.mxu0 0
    %125 = vmatpush1.bf16.msra.mxu0 0
    %126 = vmatprep.subr.bf16.mxu0 0
    %127 = vmatpush1.bf16.msra.mxu0 0
    %128 = vmatprep.subr.bf16.mxu0 0
    %129 = vmatpush1.bf16.msra.mxu0 %v113
    %130 = vmatprep.subr.bf16.mxu0 0
    %131 = vmatpush1.bf16.msra.mxu0 %v112
    %132 = vmatprep.subr.bf16.mxu0 0
    %133 = vmatpush2.bf16.msra.mxu0 0
    %134 = vmatprep.subr.bf16.mxu0 0
    %135 = vmatpush2.bf16.msra.mxu0 0
    %136 = vmatprep.subr.bf16.mxu0 0
    %137 = vmatpush2.bf16.msra.mxu0 0
    %138 = vmatprep.subr.bf16.mxu0 0
    %139 = vmatpush2.bf16.msra.mxu0 0
    %140 = vmatprep.subr.bf16.mxu0 0
    %141 = vmatpush2.bf16.msra.mxu0 0
    %142 = vmatprep.subr.bf16.mxu0 0
    %143 = vmatpush2.bf16.msra.mxu0 0
    %144 = vmatprep.subr.bf16.mxu0 0
    %145 = vmatpush2.bf16.msra.mxu0 0
    %146 = vmatprep.subr.bf16.mxu0 0
    %147 = vmatpush2.bf16.msra.mxu0 0
    %148 = vmatprep.mubr.bf16.mxu0 0
    %149 = vmatmul.mubr.bf16.gmra.mxu0 %v62
    %v150 = vpop.f32.mrf.mxu0
    %v151 = vadd.f32 0.0, %v150
    %v152 = vpop.f32.mrf.mxu0
    %v153 = vpop.f32.mrf.mxu0
    %v154 = vpop.f32.mrf.mxu0
    %155 = vdwg.mxu0
    %v160 = vunpack.c.l.b16 %v37
    %v161 = vunpack.c.l.b16 %v38
    %v162 = vunpack.c.l.b16 %v39
    %v163 = vunpack.c.l.b16 %v40
    %v164 = vpack.c.b16 %v161, %v160
    %v165 = vpack.c.b16 %v163, %v162
    %168 = vmatprep.subr.bf16.mxu0 0
    %169 = vmatpush1.bf16.msra.mxu0 0
    %170 = vmatprep.subr.bf16.mxu0 0
    %171 = vmatpush1.bf16.msra.mxu0 0
    %172 = vmatprep.subr.bf16.mxu0 0
    %173 = vmatpush1.bf16.msra.mxu0 0
    %174 = vmatprep.subr.bf16.mxu0 0
    %175 = vmatpush1.bf16.msra.mxu0 0
    %176 = vmatprep.subr.bf16.mxu0 0
    %177 = vmatpush1.bf16.msra.mxu0 0
    %178 = vmatprep.subr.bf16.mxu0 0
    %179 = vmatpush1.bf16.msra.mxu0 0
    %180 = vmatprep.subr.bf16.mxu0 0
    %181 = vmatpush1.bf16.msra.mxu0 %v165
    %182 = vmatprep.subr.bf16.mxu0 0
    %183 = vmatpush1.bf16.msra.mxu0 %v164
    %184 = vmatprep.subr.bf16.mxu0 0
    %185 = vmatpush2.bf16.msra.mxu0 0
    %186 = vmatprep.subr.bf16.mxu0 0
    %187 = vmatpush2.bf16.msra.mxu0 0
    %188 = vmatprep.subr.bf16.mxu0 0
    %189 = vmatpush2.bf16.msra.mxu0 0
    %190 = vmatprep.subr.bf16.mxu0 0
    %191 = vmatpush2.bf16.msra.mxu0 0
    %192 = vmatprep.subr.bf16.mxu0 0
    %193 = vmatpush2.bf16.msra.mxu0 0
    %194 = vmatprep.subr.bf16.mxu0 0
    %195 = vmatpush2.bf16.msra.mxu0 0
    %196 = vmatprep.subr.bf16.mxu0 0
    %197 = vmatpush2.bf16.msra.mxu0 0
    %198 = vmatprep.subr.bf16.mxu0 0
    %199 = vmatpush2.bf16.msra.mxu0 0
    %200 = vmatprep.mubr.bf16.mxu0 0
    %201 = vmatmul.mubr.bf16.gmra.mxu0 %v62
    %v202 = vpop.f32.mrf.mxu0
    %v203 = vadd.f32 0.0, %v202
    %v204 = vpop.f32.mrf.mxu0
    %v205 = vpop.f32.mrf.mxu0
    %v206 = vpop.f32.mrf.mxu0
    %207 = vdwg.mxu0
    %v212 = vunpack.c.l.b16 %v42
    %v213 = vunpack.c.l.b16 %v43
    %v214 = vunpack.c.l.b16 %v44
    %v215 = vunpack.c.l.b16 %v45
    %v216 = vpack.c.b16 %v213, %v212
    %v217 = vpack.c.b16 %v215, %v214
    %220 = vmatprep.subr.bf16.mxu0 0
    %221 = vmatpush1.bf16.msra.mxu0 0
    %222 = vmatprep.subr.bf16.mxu0 0
    %223 = vmatpush1.bf16.msra.mxu0 0
    %224 = vmatprep.subr.bf16.mxu0 0
    %225 = vmatpush1.bf16.msra.mxu0 0
    %226 = vmatprep.subr.bf16.mxu0 0
    %227 = vmatpush1.bf16.msra.mxu0 0
    %228 = vmatprep.subr.bf16.mxu0 0
    %229 = vmatpush1.bf16.msra.mxu0 0
    %230 = vmatprep.subr.bf16.mxu0 0
    %231 = vmatpush1.bf16.msra.mxu0 0
    %232 = vmatprep.subr.bf16.mxu0 0
    %233 = vmatpush1.bf16.msra.mxu0 %v217
    %234 = vmatprep.subr.bf16.mxu0 0
    %235 = vmatpush1.bf16.msra.mxu0 %v216
    %236 = vmatprep.subr.bf16.mxu0 0
    %237 = vmatpush2.bf16.msra.mxu0 0
    %238 = vmatprep.subr.bf16.mxu0 0
    %239 = vmatpush2.bf16.msra.mxu0 0
    %240 = vmatprep.subr.bf16.mxu0 0
    %241 = vmatpush2.bf16.msra.mxu0 0
    %242 = vmatprep.subr.bf16.mxu0 0
    %243 = vmatpush2.bf16.msra.mxu0 0
    %244 = vmatprep.subr.bf16.mxu0 0
    %245 = vmatpush2.bf16.msra.mxu0 0
    %246 = vmatprep.subr.bf16.mxu0 0
    %247 = vmatpush2.bf16.msra.mxu0 0
    %248 = vmatprep.subr.bf16.mxu0 0
    %249 = vmatpush2.bf16.msra.mxu0 0
    %250 = vmatprep.subr.bf16.mxu0 0
    %251 = vmatpush2.bf16.msra.mxu0 0
    %252 = vmatprep.mubr.bf16.mxu0 0
    %253 = vmatmul.mubr.bf16.gmra.mxu0 %v62
    %v254 = vpop.f32.mrf.mxu0
    %v255 = vadd.f32 0.0, %v254
    %v256 = vpop.f32.mrf.mxu0
    %v257 = vpop.f32.mrf.mxu0
    %v258 = vpop.f32.mrf.mxu0
    %259 = vdwg.mxu0
    %v260 = vld [vmem:[%s0] sm:$0x3]
    %v261 = vadd.f32 %v260, %v99
    %v262 = vxor.u32 %v261, 2147483648
    %v263 = vmul.f32 %v262, 1.442695
    %v264 = vpow.pop %v263
    %v265 = vadd.f32 %v264, 1.0
    %v266 = vrcp.pop %v265
    %v267 = vmul.f32 1.0, %v266
    %s268 = scalar_lea.vmem %s0, 16
    %v269 = vld [vmem:[%s268] sm:$0x3]
    %v270 = vadd.f32 %v269, %v151
    %v271 = vxor.u32 %v270, 2147483648
    %v272 = vmul.f32 %v271, 1.442695
    %v273 = vpow.pop %v272
    %v274 = vadd.f32 %v273, 1.0
    %v275 = vrcp.pop %v274
    %v276 = vmul.f32 1.0, %v275
    %s277 = scalar_lea.vmem %s0, 32
    %v278 = vld [vmem:[%s277] sm:$0x3]
    %v279 = vadd.f32 %v278, %v203
    %v280 = vtanh.pop %v279
    %s281 = scalar_lea.vmem %s0, 48
    %v282 = vld [vmem:[%s281] sm:$0x3]
    %v283 = vadd.f32 %v282, %v255
    %v284 = vxor.u32 %v283, 2147483648
    %v285 = vmul.f32 %v284, 1.442695
    %v286 = vpow.pop %v285
    %v287 = vadd.f32 %v286, 1.0
    %v288 = vrcp.pop %v287
    %v289 = vmul.f32 1.0, %v288
    %v290 = vmul.f32 %v276, %v47
    %v291 = vmul.f32 %v267, %v280
    %v292 = vadd.f32 %v290, %v291
    %v293 = vtanh.pop %v292
    %v294 = vmul.f32 %v289, %v293
    %v295 = vpack.c.bf16 %v294, %v294
    %vm296 = vcmask 253952
    %297 = vst.msk [vmem:[#allocation4] sm:$0x1] %vm296, %v295
    %v299 = vsel %vm60, %v295, 0
    %301 = vmatprep.subr.bf16.mxu0 0
    %302 = vmatpush1.bf16.msra.mxu0 0
    %303 = vmatprep.subr.bf16.mxu0 0
    %304 = vmatpush1.bf16.msra.mxu0 0
    %305 = vmatprep.subr.bf16.mxu0 0
    %306 = vmatpush1.bf16.msra.mxu0 0
    %307 = vmatprep.subr.bf16.mxu0 0
    %308 = vmatpush1.bf16.msra.mxu0 0
    %309 = vmatprep.subr.bf16.mxu0 0
    %310 = vmatpush1.bf16.msra.mxu0 0
    %311 = vmatprep.subr.bf16.mxu0 0
    %312 = vmatpush1.bf16.msra.mxu0 0
    %313 = vmatprep.subr.bf16.mxu0 0
    %314 = vmatpush1.bf16.msra.mxu0 %v57
    %315 = vmatprep.subr.bf16.mxu0 0
    %316 = vmatpush1.bf16.msra.mxu0 %v56
    %317 = vmatprep.subr.bf16.mxu0 0
    %318 = vmatpush2.bf16.msra.mxu0 0
    %319 = vmatprep.subr.bf16.mxu0 0
    %320 = vmatpush2.bf16.msra.mxu0 0
    %321 = vmatprep.subr.bf16.mxu0 0
    %322 = vmatpush2.bf16.msra.mxu0 0
    %323 = vmatprep.subr.bf16.mxu0 0
    %324 = vmatpush2.bf16.msra.mxu0 0
    %325 = vmatprep.subr.bf16.mxu0 0
    %326 = vmatpush2.bf16.msra.mxu0 0
    %327 = vmatprep.subr.bf16.mxu0 0
    %328 = vmatpush2.bf16.msra.mxu0 0
    %329 = vmatprep.subr.bf16.mxu0 0
    %330 = vmatpush2.bf16.msra.mxu0 0
    %331 = vmatprep.subr.bf16.mxu0 0
    %332 = vmatpush2.bf16.msra.mxu0 0
    %333 = vmatprep.mubr.bf16.mxu0 0
    %334 = vmatmul.mubr.bf16.gmra.mxu0 %v299
    %v335 = vpop.f32.mrf.mxu0
    %v336 = vadd.f32 0.0, %v335
    %v337 = vpop.f32.mrf.mxu0
    %v338 = vpop.f32.mrf.mxu0
    %v339 = vpop.f32.mrf.mxu0
    %340 = vdwg.mxu0
    %341 = vmatprep.subr.bf16.mxu0 0
    %342 = vmatpush1.bf16.msra.mxu0 0
    %343 = vmatprep.subr.bf16.mxu0 0
    %344 = vmatpush1.bf16.msra.mxu0 0
    %345 = vmatprep.subr.bf16.mxu0 0
    %346 = vmatpush1.bf16.msra.mxu0 0
    %347 = vmatprep.subr.bf16.mxu0 0
    %348 = vmatpush1.bf16.msra.mxu0 0
    %349 = vmatprep.subr.bf16.mxu0 0
    %350 = vmatpush1.bf16.msra.mxu0 0
    %351 = vmatprep.subr.bf16.mxu0 0
    %352 = vmatpush1.bf16.msra.mxu0 0
    %353 = vmatprep.subr.bf16.mxu0 0
    %354 = vmatpush1.bf16.msra.mxu0 %v113
    %355 = vmatprep.subr.bf16.mxu0 0
    %356 = vmatpush1.bf16.msra.mxu0 %v112
    %357 = vmatprep.subr.bf16.mxu0 0
    %358 = vmatpush2.bf16.msra.mxu0 0
    %359 = vmatprep.subr.bf16.mxu0 0
    %360 = vmatpush2.bf16.msra.mxu0 0
    %361 = vmatprep.subr.bf16.mxu0 0
    %362 = vmatpush2.bf16.msra.mxu0 0
    %363 = vmatprep.subr.bf16.mxu0 0
    %364 = vmatpush2.bf16.msra.mxu0 0
    %365 = vmatprep.subr.bf16.mxu0 0
    %366 = vmatpush2.bf16.msra.mxu0 0
    %367 = vmatprep.subr.bf16.mxu0 0
    %368 = vmatpush2.bf16.msra.mxu0 0
    %369 = vmatprep.subr.bf16.mxu0 0
    %370 = vmatpush2.bf16.msra.mxu0 0
    %371 = vmatprep.subr.bf16.mxu0 0
    %372 = vmatpush2.bf16.msra.mxu0 0
    %373 = vmatprep.mubr.bf16.mxu0 0
    %374 = vmatmul.mubr.bf16.gmra.mxu0 %v299
    %v375 = vpop.f32.mrf.mxu0
    %v376 = vadd.f32 0.0, %v375
    %v377 = vpop.f32.mrf.mxu0
    %v378 = vpop.f32.mrf.mxu0
    %v379 = vpop.f32.mrf.mxu0
    %380 = vdwg.mxu0
    %381 = vmatprep.subr.bf16.mxu0 0
    %382 = vmatpush1.bf16.msra.mxu0 0
    %383 = vmatprep.subr.bf16.mxu0 0
    %384 = vmatpush1.bf16.msra.mxu0 0
    %385 = vmatprep.subr.bf16.mxu0 0
    %386 = vmatpush1.bf16.msra.mxu0 0
    %387 = vmatprep.subr.bf16.mxu0 0
    %388 = vmatpush1.bf16.msra.mxu0 0
    %389 = vmatprep.subr.bf16.mxu0 0
    %390 = vmatpush1.bf16.msra.mxu0 0
    %391 = vmatprep.subr.bf16.mxu0 0
    %392 = vmatpush1.bf16.msra.mxu0 0
    %393 = vmatprep.subr.bf16.mxu0 0
    %394 = vmatpush1.bf16.msra.mxu0 %v165
    %395 = vmatprep.subr.bf16.mxu0 0
    %396 = vmatpush1.bf16.msra.mxu0 %v164
    %397 = vmatprep.subr.bf16.mxu0 0
    %398 = vmatpush2.bf16.msra.mxu0 0
    %399 = vmatprep.subr.bf16.mxu0 0
    %400 = vmatpush2.bf16.msra.mxu0 0
    %401 = vmatprep.subr.bf16.mxu0 0
    %402 = vmatpush2.bf16.msra.mxu0 0
    %403 = vmatprep.subr.bf16.mxu0 0
    %404 = vmatpush2.bf16.msra.mxu0 0
    %405 = vmatprep.subr.bf16.mxu0 0
    %406 = vmatpush2.bf16.msra.mxu0 0
    %407 = vmatprep.subr.bf16.mxu0 0
    %408 = vmatpush2.bf16.msra.mxu0 0
    %409 = vmatprep.subr.bf16.mxu0 0
    %410 = vmatpush2.bf16.msra.mxu0 0
    %411 = vmatprep.subr.bf16.mxu0 0
    %412 = vmatpush2.bf16.msra.mxu0 0
    %413 = vmatprep.mubr.bf16.mxu0 0
    %414 = vmatmul.mubr.bf16.gmra.mxu0 %v299
    %v415 = vpop.f32.mrf.mxu0
    %v416 = vadd.f32 0.0, %v415
    %v417 = vpop.f32.mrf.mxu0
    %v418 = vpop.f32.mrf.mxu0
    %v419 = vpop.f32.mrf.mxu0
    %420 = vdwg.mxu0
    %421 = vmatprep.subr.bf16.mxu0 0
    %422 = vmatpush1.bf16.msra.mxu0 0
    %423 = vmatprep.subr.bf16.mxu0 0
    %424 = vmatpush1.bf16.msra.mxu0 0
    %425 = vmatprep.subr.bf16.mxu0 0
    %426 = vmatpush1.bf16.msra.mxu0 0
    %427 = vmatprep.subr.bf16.mxu0 0
    %428 = vmatpush1.bf16.msra.mxu0 0
    %429 = vmatprep.subr.bf16.mxu0 0
    %430 = vmatpush1.bf16.msra.mxu0 0
    %431 = vmatprep.subr.bf16.mxu0 0
    %432 = vmatpush1.bf16.msra.mxu0 0
    %433 = vmatprep.subr.bf16.mxu0 0
    %434 = vmatpush1.bf16.msra.mxu0 %v217
    %435 = vmatprep.subr.bf16.mxu0 0
    %436 = vmatpush1.bf16.msra.mxu0 %v216
    %437 = vmatprep.subr.bf16.mxu0 0
    %438 = vmatpush2.bf16.msra.mxu0 0
    %439 = vmatprep.subr.bf16.mxu0 0
    %440 = vmatpush2.bf16.msra.mxu0 0
    %441 = vmatprep.subr.bf16.mxu0 0
    %442 = vmatpush2.bf16.msra.mxu0 0
    %443 = vmatprep.subr.bf16.mxu0 0
    %444 = vmatpush2.bf16.msra.mxu0 0
    %445 = vmatprep.subr.bf16.mxu0 0
    %446 = vmatpush2.bf16.msra.mxu0 0
    %447 = vmatprep.subr.bf16.mxu0 0
    %448 = vmatpush2.bf16.msra.mxu0 0
    %449 = vmatprep.subr.bf16.mxu0 0
    %450 = vmatpush2.bf16.msra.mxu0 0
    %451 = vmatprep.subr.bf16.mxu0 0
    %452 = vmatpush2.bf16.msra.mxu0 0
    %453 = vmatprep.mubr.bf16.mxu0 0
    %454 = vmatmul.mubr.bf16.gmra.mxu0 %v299
    %v455 = vpop.f32.mrf.mxu0
    %v456 = vadd.f32 0.0, %v455
    %v457 = vpop.f32.mrf.mxu0
    %v458 = vpop.f32.mrf.mxu0
    %v459 = vpop.f32.mrf.mxu0
    %460 = vdwg.mxu0
    %s461 = scalar_lea.vmem %s0, 2
    %v462 = vld [vmem:[%s461] sm:$0x3]
    %v463 = vadd.f32 %v462, %v336
    %v464 = vxor.u32 %v463, 2147483648
    %v465 = vmul.f32 %v464, 1.442695
    %v466 = vpow.pop %v465
    %v467 = vadd.f32 %v466, 1.0
    %v468 = vrcp.pop %v467
    %v469 = vmul.f32 1.0, %v468
    %s470 = scalar_lea.vmem %s0, 18
    %v471 = vld [vmem:[%s470] sm:$0x3]
    %v472 = vadd.f32 %v471, %v376
    %v473 = vxor.u32 %v472, 2147483648
    %v474 = vmul.f32 %v473, 1.442695
    %v475 = vpow.pop %v474
    %v476 = vadd.f32 %v475, 1.0
    %v477 = vrcp.pop %v476
    %v478 = vmul.f32 1.0, %v477
    %s479 = scalar_lea.vmem %s0, 34
    %v480 = vld [vmem:[%s479] sm:$0x3]
    %v481 = vadd.f32 %v480, %v416
    %v482 = vtanh.pop %v481
    %s483 = scalar_lea.vmem %s0, 50
    %v484 = vld [vmem:[%s483] sm:$0x3]
    %v485 = vadd.f32 %v484, %v456
    %v486 = vxor.u32 %v485, 2147483648
    %v487 = vmul.f32 %v486, 1.442695
    %v488 = vpow.pop %v487
    %v489 = vadd.f32 %v488, 1.0
    %v490 = vrcp.pop %v489
    %v491 = vmul.f32 1.0, %v490
    %v492 = vmul.f32 %v478, %v292
    %v493 = vmul.f32 %v469, %v482
    %v494 = vadd.f32 %v492, %v493
    %v495 = vtanh.pop %v494
    %v496 = vmul.f32 %v491, %v495
    %v497 = vpack.c.bf16 %v496, %v496
    %s498 = scalar_lea.vmem [#allocation4], 1
    %499 = vst.msk [vmem:[%s498] sm:$0x1] %vm296, %v497
    %v501 = vsel %vm60, %v497, 0
    %503 = vmatprep.subr.bf16.mxu0 0
    %504 = vmatpush1.bf16.msra.mxu0 0
    %505 = vmatprep.subr.bf16.mxu0 0
    %506 = vmatpush1.bf16.msra.mxu0 0
    %507 = vmatprep.subr.bf16.mxu0 0
    %508 = vmatpush1.bf16.msra.mxu0 0
    %509 = vmatprep.subr.bf16.mxu0 0
    %510 = vmatpush1.bf16.msra.mxu0 0
    %511 = vmatprep.subr.bf16.mxu0 0
    %512 = vmatpush1.bf16.msra.mxu0 0
    %513 = vmatprep.subr.bf16.mxu0 0
    %514 = vmatpush1.bf16.msra.mxu0 0
    %515 = vmatprep.subr.bf16.mxu0 0
    %516 = vmatpush1.bf16.msra.mxu0 %v57
    %517 = vmatprep.subr.bf16.mxu0 0
    %518 = vmatpush1.bf16.msra.mxu0 %v56
    %519 = vmatprep.subr.bf16.mxu0 0
    %520 = vmatpush2.bf16.msra.mxu0 0
    %521 = vmatprep.subr.bf16.mxu0 0
    %522 = vmatpush2.bf16.msra.mxu0 0
    %523 = vmatprep.subr.bf16.mxu0 0
    %524 = vmatpush2.bf16.msra.mxu0 0
    %525 = vmatprep.subr.bf16.mxu0 0
    %526 = vmatpush2.bf16.msra.mxu0 0
    %527 = vmatprep.subr.bf16.mxu0 0
    %528 = vmatpush2.bf16.msra.mxu0 0
    %529 = vmatprep.subr.bf16.mxu0 0
    %530 = vmatpush2.bf16.msra.mxu0 0
    %531 = vmatprep.subr.bf16.mxu0 0
    %532 = vmatpush2.bf16.msra.mxu0 0
    %533 = vmatprep.subr.bf16.mxu0 0
    %534 = vmatpush2.bf16.msra.mxu0 0
    %535 = vmatprep.mubr.bf16.mxu0 0
    %536 = vmatmul.mubr.bf16.gmra.mxu0 %v501
    %v537 = vpop.f32.mrf.mxu0
    %v538 = vadd.f32 0.0, %v537
    %v539 = vpop.f32.mrf.mxu0
    %v540 = vpop.f32.mrf.mxu0
    %v541 = vpop.f32.mrf.mxu0
    %542 = vdwg.mxu0
    %543 = vmatprep.subr.bf16.mxu0 0
    %544 = vmatpush1.bf16.msra.mxu0 0
    %545 = vmatprep.subr.bf16.mxu0 0
    %546 = vmatpush1.bf16.msra.mxu0 0
    %547 = vmatprep.subr.bf16.mxu0 0
    %548 = vmatpush1.bf16.msra.mxu0 0
    %549 = vmatprep.subr.bf16.mxu0 0
    %550 = vmatpush1.bf16.msra.mxu0 0
    %551 = vmatprep.subr.bf16.mxu0 0
    %552 = vmatpush1.bf16.msra.mxu0 0
    %553 = vmatprep.subr.bf16.mxu0 0
    %554 = vmatpush1.bf16.msra.mxu0 0
    %555 = vmatprep.subr.bf16.mxu0 0
    %556 = vmatpush1.bf16.msra.mxu0 %v113
    %557 = vmatprep.subr.bf16.mxu0 0
    %558 = vmatpush1.bf16.msra.mxu0 %v112
    %559 = vmatprep.subr.bf16.mxu0 0
    %560 = vmatpush2.bf16.msra.mxu0 0
    %561 = vmatprep.subr.bf16.mxu0 0
    %562 = vmatpush2.bf16.msra.mxu0 0
    %563 = vmatprep.subr.bf16.mxu0 0
    %564 = vmatpush2.bf16.msra.mxu0 0
    %565 = vmatprep.subr.bf16.mxu0 0
    %566 = vmatpush2.bf16.msra.mxu0 0
    %567 = vmatprep.subr.bf16.mxu0 0
    %568 = vmatpush2.bf16.msra.mxu0 0
    %569 = vmatprep.subr.bf16.mxu0 0
    %570 = vmatpush2.bf16.msra.mxu0 0
    %571 = vmatprep.subr.bf16.mxu0 0
    %572 = vmatpush2.bf16.msra.mxu0 0
    %573 = vmatprep.subr.bf16.mxu0 0
    %574 = vmatpush2.bf16.msra.mxu0 0
    %575 = vmatprep.mubr.bf16.mxu0 0
    %576 = vmatmul.mubr.bf16.gmra.mxu0 %v501
    %v577 = vpop.f32.mrf.mxu0
    %v578 = vadd.f32 0.0, %v577
    %v579 = vpop.f32.mrf.mxu0
    %v580 = vpop.f32.mrf.mxu0
    %v581 = vpop.f32.mrf.mxu0
    %582 = vdwg.mxu0
    %583 = vmatprep.subr.bf16.mxu0 0
    %584 = vmatpush1.bf16.msra.mxu0 0
    %585 = vmatprep.subr.bf16.mxu0 0
    %586 = vmatpush1.bf16.msra.mxu0 0
    %587 = vmatprep.subr.bf16.mxu0 0
    %588 = vmatpush1.bf16.msra.mxu0 0
    %589 = vmatprep.subr.bf16.mxu0 0
    %590 = vmatpush1.bf16.msra.mxu0 0
    %591 = vmatprep.subr.bf16.mxu0 0
    %592 = vmatpush1.bf16.msra.mxu0 0
    %593 = vmatprep.subr.bf16.mxu0 0
    %594 = vmatpush1.bf16.msra.mxu0 0
    %595 = vmatprep.subr.bf16.mxu0 0
    %596 = vmatpush1.bf16.msra.mxu0 %v165
    %597 = vmatprep.subr.bf16.mxu0 0
    %598 = vmatpush1.bf16.msra.mxu0 %v164
    %599 = vmatprep.subr.bf16.mxu0 0
    %600 = vmatpush2.bf16.msra.mxu0 0
    %601 = vmatprep.subr.bf16.mxu0 0
    %602 = vmatpush2.bf16.msra.mxu0 0
    %603 = vmatprep.subr.bf16.mxu0 0
    %604 = vmatpush2.bf16.msra.mxu0 0
    %605 = vmatprep.subr.bf16.mxu0 0
    %606 = vmatpush2.bf16.msra.mxu0 0
    %607 = vmatprep.subr.bf16.mxu0 0
    %608 = vmatpush2.bf16.msra.mxu0 0
    %609 = vmatprep.subr.bf16.mxu0 0
    %610 = vmatpush2.bf16.msra.mxu0 0
    %611 = vmatprep.subr.bf16.mxu0 0
    %612 = vmatpush2.bf16.msra.mxu0 0
    %613 = vmatprep.subr.bf16.mxu0 0
    %614 = vmatpush2.bf16.msra.mxu0 0
    %615 = vmatprep.mubr.bf16.mxu0 0
    %616 = vmatmul.mubr.bf16.gmra.mxu0 %v501
    %v617 = vpop.f32.mrf.mxu0
    %v618 = vadd.f32 0.0, %v617
    %v619 = vpop.f32.mrf.mxu0
    %v620 = vpop.f32.mrf.mxu0
    %v621 = vpop.f32.mrf.mxu0
    %622 = vdwg.mxu0
    %623 = vmatprep.subr.bf16.mxu0 0
    %624 = vmatpush1.bf16.msra.mxu0 0
    %625 = vmatprep.subr.bf16.mxu0 0
    %626 = vmatpush1.bf16.msra.mxu0 0
    %627 = vmatprep.subr.bf16.mxu0 0
    %628 = vmatpush1.bf16.msra.mxu0 0
    %629 = vmatprep.subr.bf16.mxu0 0
    %630 = vmatpush1.bf16.msra.mxu0 0
    %631 = vmatprep.subr.bf16.mxu0 0
    %632 = vmatpush1.bf16.msra.mxu0 0
    %633 = vmatprep.subr.bf16.mxu0 0
    %634 = vmatpush1.bf16.msra.mxu0 0
    %635 = vmatprep.subr.bf16.mxu0 0
    %636 = vmatpush1.bf16.msra.mxu0 %v217
    %637 = vmatprep.subr.bf16.mxu0 0
    %638 = vmatpush1.bf16.msra.mxu0 %v216
    %639 = vmatprep.subr.bf16.mxu0 0
    %640 = vmatpush2.bf16.msra.mxu0 0
    %641 = vmatprep.subr.bf16.mxu0 0
    %642 = vmatpush2.bf16.msra.mxu0 0
    %643 = vmatprep.subr.bf16.mxu0 0
    %644 = vmatpush2.bf16.msra.mxu0 0
    %645 = vmatprep.subr.bf16.mxu0 0
    %646 = vmatpush2.bf16.msra.mxu0 0
    %647 = vmatprep.subr.bf16.mxu0 0
    %648 = vmatpush2.bf16.msra.mxu0 0
    %649 = vmatprep.subr.bf16.mxu0 0
    %650 = vmatpush2.bf16.msra.mxu0 0
    %651 = vmatprep.subr.bf16.mxu0 0
    %652 = vmatpush2.bf16.msra.mxu0 0
    %653 = vmatprep.subr.bf16.mxu0 0
    %654 = vmatpush2.bf16.msra.mxu0 0
    %655 = vmatprep.mubr.bf16.mxu0 0
    %656 = vmatmul.mubr.bf16.gmra.mxu0 %v501
    %v657 = vpop.f32.mrf.mxu0
    %v658 = vadd.f32 0.0, %v657
    %v659 = vpop.f32.mrf.mxu0
    %v660 = vpop.f32.mrf.mxu0
    %v661 = vpop.f32.mrf.mxu0
    %662 = vdwg.mxu0
    %s663 = scalar_lea.vmem %s0, 4
    %v664 = vld [vmem:[%s663] sm:$0x3]
    %v665 = vadd.f32 %v664, %v538
    %v666 = vxor.u32 %v665, 2147483648
    %v667 = vmul.f32 %v666, 1.442695
    %v668 = vpow.pop %v667
    %v669 = vadd.f32 %v668, 1.0
    %v670 = vrcp.pop %v669
    %v671 = vmul.f32 1.0, %v670
    %s672 = scalar_lea.vmem %s0, 20
    %v673 = vld [vmem:[%s672] sm:$0x3]
    %v674 = vadd.f32 %v673, %v578
    %v675 = vxor.u32 %v674, 2147483648
    %v676 = vmul.f32 %v675, 1.442695
    %v677 = vpow.pop %v676
    %v678 = vadd.f32 %v677, 1.0
    %v679 = vrcp.pop %v678
    %v680 = vmul.f32 1.0, %v679
    %s681 = scalar_lea.vmem %s0, 36
    %v682 = vld [vmem:[%s681] sm:$0x3]
    %v683 = vadd.f32 %v682, %v618
    %v684 = vtanh.pop %v683
    %s685 = scalar_lea.vmem %s0, 52
    %v686 = vld [vmem:[%s685] sm:$0x3]
    %v687 = vadd.f32 %v686, %v658
    %v688 = vxor.u32 %v687, 2147483648
    %v689 = vmul.f32 %v688, 1.442695
    %v690 = vpow.pop %v689
    %v691 = vadd.f32 %v690, 1.0
    %v692 = vrcp.pop %v691
    %v693 = vmul.f32 1.0, %v692
    %v694 = vmul.f32 %v680, %v494
    %v695 = vmul.f32 %v671, %v684
    %v696 = vadd.f32 %v694, %v695
    %v697 = vtanh.pop %v696
    %v698 = vmul.f32 %v693, %v697
    %v699 = vpack.c.bf16 %v698, %v698
    %s700 = scalar_lea.vmem [#allocation4], 2
    %701 = vst.msk [vmem:[%s700] sm:$0x1] %vm296, %v699
    %v703 = vsel %vm60, %v699, 0
    %705 = vmatprep.subr.bf16.mxu0 0
    %706 = vmatpush1.bf16.msra.mxu0 0
    %707 = vmatprep.subr.bf16.mxu0 0
    %708 = vmatpush1.bf16.msra.mxu0 0
    %709 = vmatprep.subr.bf16.mxu0 0
    %710 = vmatpush1.bf16.msra.mxu0 0
    %711 = vmatprep.subr.bf16.mxu0 0
    %712 = vmatpush1.bf16.msra.mxu0 0
    %713 = vmatprep.subr.bf16.mxu0 0
    %714 = vmatpush1.bf16.msra.mxu0 0
    %715 = vmatprep.subr.bf16.mxu0 0
    %716 = vmatpush1.bf16.msra.mxu0 0
    %717 = vmatprep.subr.bf16.mxu0 0
    %718 = vmatpush1.bf16.msra.mxu0 %v57
    %719 = vmatprep.subr.bf16.mxu0 0
    %720 = vmatpush1.bf16.msra.mxu0 %v56
    %721 = vmatprep.subr.bf16.mxu0 0
    %722 = vmatpush2.bf16.msra.mxu0 0
    %723 = vmatprep.subr.bf16.mxu0 0
    %724 = vmatpush2.bf16.msra.mxu0 0
    %725 = vmatprep.subr.bf16.mxu0 0
    %726 = vmatpush2.bf16.msra.mxu0 0
    %727 = vmatprep.subr.bf16.mxu0 0
    %728 = vmatpush2.bf16.msra.mxu0 0
    %729 = vmatprep.subr.bf16.mxu0 0
    %730 = vmatpush2.bf16.msra.mxu0 0
    %731 = vmatprep.subr.bf16.mxu0 0
    %732 = vmatpush2.bf16.msra.mxu0 0
    %733 = vmatprep.subr.bf16.mxu0 0
    %734 = vmatpush2.bf16.msra.mxu0 0
    %735 = vmatprep.subr.bf16.mxu0 0
    %736 = vmatpush2.bf16.msra.mxu0 0
    %737 = vmatprep.mubr.bf16.mxu0 0
    %738 = vmatmul.mubr.bf16.gmra.mxu0 %v703
    %v739 = vpop.f32.mrf.mxu0
    %v740 = vadd.f32 0.0, %v739
    %v741 = vpop.f32.mrf.mxu0
    %v742 = vpop.f32.mrf.mxu0
    %v743 = vpop.f32.mrf.mxu0
    %744 = vdwg.mxu0
    %745 = vmatprep.subr.bf16.mxu0 0
    %746 = vmatpush1.bf16.msra.mxu0 0
    %747 = vmatprep.subr.bf16.mxu0 0
    %748 = vmatpush1.bf16.msra.mxu0 0
    %749 = vmatprep.subr.bf16.mxu0 0
    %750 = vmatpush1.bf16.msra.mxu0 0
    %751 = vmatprep.subr.bf16.mxu0 0
    %752 = vmatpush1.bf16.msra.mxu0 0
    %753 = vmatprep.subr.bf16.mxu0 0
    %754 = vmatpush1.bf16.msra.mxu0 0
    %755 = vmatprep.subr.bf16.mxu0 0
    %756 = vmatpush1.bf16.msra.mxu0 0
    %757 = vmatprep.subr.bf16.mxu0 0
    %758 = vmatpush1.bf16.msra.mxu0 %v113
    %759 = vmatprep.subr.bf16.mxu0 0
    %760 = vmatpush1.bf16.msra.mxu0 %v112
    %761 = vmatprep.subr.bf16.mxu0 0
    %762 = vmatpush2.bf16.msra.mxu0 0
    %763 = vmatprep.subr.bf16.mxu0 0
    %764 = vmatpush2.bf16.msra.mxu0 0
    %765 = vmatprep.subr.bf16.mxu0 0
    %766 = vmatpush2.bf16.msra.mxu0 0
    %767 = vmatprep.subr.bf16.mxu0 0
    %768 = vmatpush2.bf16.msra.mxu0 0
    %769 = vmatprep.subr.bf16.mxu0 0
    %770 = vmatpush2.bf16.msra.mxu0 0
    %771 = vmatprep.subr.bf16.mxu0 0
    %772 = vmatpush2.bf16.msra.mxu0 0
    %773 = vmatprep.subr.bf16.mxu0 0
    %774 = vmatpush2.bf16.msra.mxu0 0
    %775 = vmatprep.subr.bf16.mxu0 0
    %776 = vmatpush2.bf16.msra.mxu0 0
    %777 = vmatprep.mubr.bf16.mxu0 0
    %778 = vmatmul.mubr.bf16.gmra.mxu0 %v703
    %v779 = vpop.f32.mrf.mxu0
    %v780 = vadd.f32 0.0, %v779
    %v781 = vpop.f32.mrf.mxu0
    %v782 = vpop.f32.mrf.mxu0
    %v783 = vpop.f32.mrf.mxu0
    %784 = vdwg.mxu0
    %785 = vmatprep.subr.bf16.mxu0 0
    %786 = vmatpush1.bf16.msra.mxu0 0
    %787 = vmatprep.subr.bf16.mxu0 0
    %788 = vmatpush1.bf16.msra.mxu0 0
    %789 = vmatprep.subr.bf16.mxu0 0
    %790 = vmatpush1.bf16.msra.mxu0 0
    %791 = vmatprep.subr.bf16.mxu0 0
    %792 = vmatpush1.bf16.msra.mxu0 0
    %793 = vmatprep.subr.bf16.mxu0 0
    %794 = vmatpush1.bf16.msra.mxu0 0
    %795 = vmatprep.subr.bf16.mxu0 0
    %796 = vmatpush1.bf16.msra.mxu0 0
    %797 = vmatprep.subr.bf16.mxu0 0
    %798 = vmatpush1.bf16.msra.mxu0 %v165
    %799 = vmatprep.subr.bf16.mxu0 0
    %800 = vmatpush1.bf16.msra.mxu0 %v164
    %801 = vmatprep.subr.bf16.mxu0 0
    %802 = vmatpush2.bf16.msra.mxu0 0
    %803 = vmatprep.subr.bf16.mxu0 0
    %804 = vmatpush2.bf16.msra.mxu0 0
    %805 = vmatprep.subr.bf16.mxu0 0
    %806 = vmatpush2.bf16.msra.mxu0 0
    %807 = vmatprep.subr.bf16.mxu0 0
    %808 = vmatpush2.bf16.msra.mxu0 0
    %809 = vmatprep.subr.bf16.mxu0 0
    %810 = vmatpush2.bf16.msra.mxu0 0
    %811 = vmatprep.subr.bf16.mxu0 0
    %812 = vmatpush2.bf16.msra.mxu0 0
    %813 = vmatprep.subr.bf16.mxu0 0
    %814 = vmatpush2.bf16.msra.mxu0 0
    %815 = vmatprep.subr.bf16.mxu0 0
    %816 = vmatpush2.bf16.msra.mxu0 0
    %817 = vmatprep.mubr.bf16.mxu0 0
    %818 = vmatmul.mubr.bf16.gmra.mxu0 %v703
    %v819 = vpop.f32.mrf.mxu0
    %v820 = vadd.f32 0.0, %v819
    %v821 = vpop.f32.mrf.mxu0
    %v822 = vpop.f32.mrf.mxu0
    %v823 = vpop.f32.mrf.mxu0
    %824 = vdwg.mxu0
    %825 = vmatprep.subr.bf16.mxu0 0
    %826 = vmatpush1.bf16.msra.mxu0 0
    %827 = vmatprep.subr.bf16.mxu0 0
    %828 = vmatpush1.bf16.msra.mxu0 0
    %829 = vmatprep.subr.bf16.mxu0 0
    %830 = vmatpush1.bf16.msra.mxu0 0
    %831 = vmatprep.subr.bf16.mxu0 0
    %832 = vmatpush1.bf16.msra.mxu0 0
    %833 = vmatprep.subr.bf16.mxu0 0
    %834 = vmatpush1.bf16.msra.mxu0 0
    %835 = vmatprep.subr.bf16.mxu0 0
    %836 = vmatpush1.bf16.msra.mxu0 0
    %837 = vmatprep.subr.bf16.mxu0 0
    %838 = vmatpush1.bf16.msra.mxu0 %v217
    %839 = vmatprep.subr.bf16.mxu0 0
    %840 = vmatpush1.bf16.msra.mxu0 %v216
    %841 = vmatprep.subr.bf16.mxu0 0
    %842 = vmatpush2.bf16.msra.mxu0 0
    %843 = vmatprep.subr.bf16.mxu0 0
    %844 = vmatpush2.bf16.msra.mxu0 0
    %845 = vmatprep.subr.bf16.mxu0 0
    %846 = vmatpush2.bf16.msra.mxu0 0
    %847 = vmatprep.subr.bf16.mxu0 0
    %848 = vmatpush2.bf16.msra.mxu0 0
    %849 = vmatprep.subr.bf16.mxu0 0
    %850 = vmatpush2.bf16.msra.mxu0 0
    %851 = vmatprep.subr.bf16.mxu0 0
    %852 = vmatpush2.bf16.msra.mxu0 0
    %853 = vmatprep.subr.bf16.mxu0 0
    %854 = vmatpush2.bf16.msra.mxu0 0
    %855 = vmatprep.subr.bf16.mxu0 0
    %856 = vmatpush2.bf16.msra.mxu0 0
    %857 = vmatprep.mubr.bf16.mxu0 0
    %858 = vmatmul.mubr.bf16.gmra.mxu0 %v703
    %v859 = vpop.f32.mrf.mxu0
    %v860 = vadd.f32 0.0, %v859
    %v861 = vpop.f32.mrf.mxu0
    %v862 = vpop.f32.mrf.mxu0
    %v863 = vpop.f32.mrf.mxu0
    %864 = vdwg.mxu0
    %s865 = scalar_lea.vmem %s0, 6
    %v866 = vld [vmem:[%s865] sm:$0x3]
    %v867 = vadd.f32 %v866, %v740
    %v868 = vxor.u32 %v867, 2147483648
    %v869 = vmul.f32 %v868, 1.442695
    %v870 = vpow.pop %v869
    %v871 = vadd.f32 %v870, 1.0
    %v872 = vrcp.pop %v871
    %v873 = vmul.f32 1.0, %v872
    %s874 = scalar_lea.vmem %s0, 22
    %v875 = vld [vmem:[%s874] sm:$0x3]
    %v876 = vadd.f32 %v875, %v780
    %v877 = vxor.u32 %v876, 2147483648
    %v878 = vmul.f32 %v877, 1.442695
    %v879 = vpow.pop %v878
    %v880 = vadd.f32 %v879, 1.0
    %v881 = vrcp.pop %v880
    %v882 = vmul.f32 1.0, %v881
    %s883 = scalar_lea.vmem %s0, 38
    %v884 = vld [vmem:[%s883] sm:$0x3]
    %v885 = vadd.f32 %v884, %v820
    %v886 = vtanh.pop %v885
    %s887 = scalar_lea.vmem %s0, 54
    %v888 = vld [vmem:[%s887] sm:$0x3]
    %v889 = vadd.f32 %v888, %v860
    %v890 = vxor.u32 %v889, 2147483648
    %v891 = vmul.f32 %v890, 1.442695
    %v892 = vpow.pop %v891
    %v893 = vadd.f32 %v892, 1.0
    %v894 = vrcp.pop %v893
    %v895 = vmul.f32 1.0, %v894
    %v896 = vmul.f32 %v882, %v696
    %v897 = vmul.f32 %v873, %v886
    %v898 = vadd.f32 %v896, %v897
    %v899 = vtanh.pop %v898
    %v900 = vmul.f32 %v895, %v899
    %v901 = vpack.c.bf16 %v900, %v900
    %s902 = scalar_lea.vmem [#allocation4], 3
    %903 = vst.msk [vmem:[%s902] sm:$0x1] %vm296, %v901
    %v905 = vsel %vm60, %v901, 0
    %907 = vmatprep.subr.bf16.mxu0 0
    %908 = vmatpush1.bf16.msra.mxu0 0
    %909 = vmatprep.subr.bf16.mxu0 0
    %910 = vmatpush1.bf16.msra.mxu0 0
    %911 = vmatprep.subr.bf16.mxu0 0
    %912 = vmatpush1.bf16.msra.mxu0 0
    %913 = vmatprep.subr.bf16.mxu0 0
    %914 = vmatpush1.bf16.msra.mxu0 0
    %915 = vmatprep.subr.bf16.mxu0 0
    %916 = vmatpush1.bf16.msra.mxu0 0
    %917 = vmatprep.subr.bf16.mxu0 0
    %918 = vmatpush1.bf16.msra.mxu0 0
    %919 = vmatprep.subr.bf16.mxu0 0
    %920 = vmatpush1.bf16.msra.mxu0 %v57
    %921 = vmatprep.subr.bf16.mxu0 0
    %922 = vmatpush1.bf16.msra.mxu0 %v56
    %923 = vmatprep.subr.bf16.mxu0 0
    %924 = vmatpush2.bf16.msra.mxu0 0
    %925 = vmatprep.subr.bf16.mxu0 0
    %926 = vmatpush2.bf16.msra.mxu0 0
    %927 = vmatprep.subr.bf16.mxu0 0
    %928 = vmatpush2.bf16.msra.mxu0 0
    %929 = vmatprep.subr.bf16.mxu0 0
    %930 = vmatpush2.bf16.msra.mxu0 0
    %931 = vmatprep.subr.bf16.mxu0 0
    %932 = vmatpush2.bf16.msra.mxu0 0
    %933 = vmatprep.subr.bf16.mxu0 0
    %934 = vmatpush2.bf16.msra.mxu0 0
    %935 = vmatprep.subr.bf16.mxu0 0
    %936 = vmatpush2.bf16.msra.mxu0 0
    %937 = vmatprep.subr.bf16.mxu0 0
    %938 = vmatpush2.bf16.msra.mxu0 0
    %939 = vmatprep.mubr.bf16.mxu0 0
    %940 = vmatmul.mubr.bf16.gmra.mxu0 %v905
    %v941 = vpop.f32.mrf.mxu0
    %v942 = vadd.f32 0.0, %v941
    %v943 = vpop.f32.mrf.mxu0
    %v944 = vpop.f32.mrf.mxu0
    %v945 = vpop.f32.mrf.mxu0
    %946 = vdwg.mxu0
    %947 = vmatprep.subr.bf16.mxu0 0
    %948 = vmatpush1.bf16.msra.mxu0 0
    %949 = vmatprep.subr.bf16.mxu0 0
    %950 = vmatpush1.bf16.msra.mxu0 0
    %951 = vmatprep.subr.bf16.mxu0 0
    %952 = vmatpush1.bf16.msra.mxu0 0
    %953 = vmatprep.subr.bf16.mxu0 0
    %954 = vmatpush1.bf16.msra.mxu0 0
    %955 = vmatprep.subr.bf16.mxu0 0
    %956 = vmatpush1.bf16.msra.mxu0 0
    %957 = vmatprep.subr.bf16.mxu0 0
    %958 = vmatpush1.bf16.msra.mxu0 0
    %959 = vmatprep.subr.bf16.mxu0 0
    %960 = vmatpush1.bf16.msra.mxu0 %v113
    %961 = vmatprep.subr.bf16.mxu0 0
    %962 = vmatpush1.bf16.msra.mxu0 %v112
    %963 = vmatprep.subr.bf16.mxu0 0
    %964 = vmatpush2.bf16.msra.mxu0 0
    %965 = vmatprep.subr.bf16.mxu0 0
    %966 = vmatpush2.bf16.msra.mxu0 0
    %967 = vmatprep.subr.bf16.mxu0 0
    %968 = vmatpush2.bf16.msra.mxu0 0
    %969 = vmatprep.subr.bf16.mxu0 0
    %970 = vmatpush2.bf16.msra.mxu0 0
    %971 = vmatprep.subr.bf16.mxu0 0
    %972 = vmatpush2.bf16.msra.mxu0 0
    %973 = vmatprep.subr.bf16.mxu0 0
    %974 = vmatpush2.bf16.msra.mxu0 0
    %975 = vmatprep.subr.bf16.mxu0 0
    %976 = vmatpush2.bf16.msra.mxu0 0
    %977 = vmatprep.subr.bf16.mxu0 0
    %978 = vmatpush2.bf16.msra.mxu0 0
    %979 = vmatprep.mubr.bf16.mxu0 0
    %980 = vmatmul.mubr.bf16.gmra.mxu0 %v905
    %v981 = vpop.f32.mrf.mxu0
    %v982 = vadd.f32 0.0, %v981
    %v983 = vpop.f32.mrf.mxu0
    %v984 = vpop.f32.mrf.mxu0
    %v985 = vpop.f32.mrf.mxu0
    %986 = vdwg.mxu0
    %987 = vmatprep.subr.bf16.mxu0 0
    %988 = vmatpush1.bf16.msra.mxu0 0
    %989 = vmatprep.subr.bf16.mxu0 0
    %990 = vmatpush1.bf16.msra.mxu0 0
    %991 = vmatprep.subr.bf16.mxu0 0
    %992 = vmatpush1.bf16.msra.mxu0 0
    %993 = vmatprep.subr.bf16.mxu0 0
    %994 = vmatpush1.bf16.msra.mxu0 0
    %995 = vmatprep.subr.bf16.mxu0 0
    %996 = vmatpush1.bf16.msra.mxu0 0
    %997 = vmatprep.subr.bf16.mxu0 0
    %998 = vmatpush1.bf16.msra.mxu0 0
    %999 = vmatprep.subr.bf16.mxu0 0
    %1000 = vmatpush1.bf16.msra.mxu0 %v165
    %1001 = vmatprep.subr.bf16.mxu0 0
    %1002 = vmatpush1.bf16.msra.mxu0 %v164
    %1003 = vmatprep.subr.bf16.mxu0 0
    %1004 = vmatpush2.bf16.msra.mxu0 0
    %1005 = vmatprep.subr.bf16.mxu0 0
    %1006 = vmatpush2.bf16.msra.mxu0 0
    %1007 = vmatprep.subr.bf16.mxu0 0
    %1008 = vmatpush2.bf16.msra.mxu0 0
    %1009 = vmatprep.subr.bf16.mxu0 0
    %1010 = vmatpush2.bf16.msra.mxu0 0
    %1011 = vmatprep.subr.bf16.mxu0 0
    %1012 = vmatpush2.bf16.msra.mxu0 0
    %1013 = vmatprep.subr.bf16.mxu0 0
    %1014 = vmatpush2.bf16.msra.mxu0 0
    %1015 = vmatprep.subr.bf16.mxu0 0
    %1016 = vmatpush2.bf16.msra.mxu0 0
    %1017 = vmatprep.subr.bf16.mxu0 0
    %1018 = vmatpush2.bf16.msra.mxu0 0
    %1019 = vmatprep.mubr.bf16.mxu0 0
    %1020 = vmatmul.mubr.bf16.gmra.mxu0 %v905
    %v1021 = vpop.f32.mrf.mxu0
    %v1022 = vadd.f32 0.0, %v1021
    %v1023 = vpop.f32.mrf.mxu0
    %v1024 = vpop.f32.mrf.mxu0
    %v1025 = vpop.f32.mrf.mxu0
    %1026 = vdwg.mxu0
    %1027 = vmatprep.subr.bf16.mxu0 0
    %1028 = vmatpush1.bf16.msra.mxu0 0
    %1029 = vmatprep.subr.bf16.mxu0 0
    %1030 = vmatpush1.bf16.msra.mxu0 0
    %1031 = vmatprep.subr.bf16.mxu0 0
    %1032 = vmatpush1.bf16.msra.mxu0 0
    %1033 = vmatprep.subr.bf16.mxu0 0
    %1034 = vmatpush1.bf16.msra.mxu0 0
    %1035 = vmatprep.subr.bf16.mxu0 0
    %1036 = vmatpush1.bf16.msra.mxu0 0
    %1037 = vmatprep.subr.bf16.mxu0 0
    %1038 = vmatpush1.bf16.msra.mxu0 0
    %1039 = vmatprep.subr.bf16.mxu0 0
    %1040 = vmatpush1.bf16.msra.mxu0 %v217
    %1041 = vmatprep.subr.bf16.mxu0 0
    %1042 = vmatpush1.bf16.msra.mxu0 %v216
    %1043 = vmatprep.subr.bf16.mxu0 0
    %1044 = vmatpush2.bf16.msra.mxu0 0
    %1045 = vmatprep.subr.bf16.mxu0 0
    %1046 = vmatpush2.bf16.msra.mxu0 0
    %1047 = vmatprep.subr.bf16.mxu0 0
    %1048 = vmatpush2.bf16.msra.mxu0 0
    %1049 = vmatprep.subr.bf16.mxu0 0
    %1050 = vmatpush2.bf16.msra.mxu0 0
    %1051 = vmatprep.subr.bf16.mxu0 0
    %1052 = vmatpush2.bf16.msra.mxu0 0
    %1053 = vmatprep.subr.bf16.mxu0 0
    %1054 = vmatpush2.bf16.msra.mxu0 0
    %1055 = vmatprep.subr.bf16.mxu0 0
    %1056 = vmatpush2.bf16.msra.mxu0 0
    %1057 = vmatprep.subr.bf16.mxu0 0
    %1058 = vmatpush2.bf16.msra.mxu0 0
    %1059 = vmatprep.mubr.bf16.mxu0 0
    %1060 = vmatmul.mubr.bf16.gmra.mxu0 %v905
    %v1061 = vpop.f32.mrf.mxu0
    %v1062 = vadd.f32 0.0, %v1061
    %v1063 = vpop.f32.mrf.mxu0
    %v1064 = vpop.f32.mrf.mxu0
    %v1065 = vpop.f32.mrf.mxu0
    %1066 = vdwg.mxu0
    %s1067 = scalar_lea.vmem %s0, 8
    %v1068 = vld [vmem:[%s1067] sm:$0x3]
    %v1069 = vadd.f32 %v1068, %v942
    %v1070 = vxor.u32 %v1069, 2147483648
    %v1071 = vmul.f32 %v1070, 1.442695
    %v1072 = vpow.pop %v1071
    %v1073 = vadd.f32 %v1072, 1.0
    %v1074 = vrcp.pop %v1073
    %v1075 = vmul.f32 1.0, %v1074
    %s1076 = scalar_lea.vmem %s0, 24
    %v1077 = vld [vmem:[%s1076] sm:$0x3]
    %v1078 = vadd.f32 %v1077, %v982
    %v1079 = vxor.u32 %v1078, 2147483648
    %v1080 = vmul.f32 %v1079, 1.442695
    %v1081 = vpow.pop %v1080
    %v1082 = vadd.f32 %v1081, 1.0
    %v1083 = vrcp.pop %v1082
    %v1084 = vmul.f32 1.0, %v1083
    %s1085 = scalar_lea.vmem %s0, 40
    %v1086 = vld [vmem:[%s1085] sm:$0x3]
    %v1087 = vadd.f32 %v1086, %v1022
    %v1088 = vtanh.pop %v1087
    %s1089 = scalar_lea.vmem %s0, 56
    %v1090 = vld [vmem:[%s1089] sm:$0x3]
    %v1091 = vadd.f32 %v1090, %v1062
    %v1092 = vxor.u32 %v1091, 2147483648
    %v1093 = vmul.f32 %v1092, 1.442695
    %v1094 = vpow.pop %v1093
    %v1095 = vadd.f32 %v1094, 1.0
    %v1096 = vrcp.pop %v1095
    %v1097 = vmul.f32 1.0, %v1096
    %v1098 = vmul.f32 %v1084, %v898
    %v1099 = vmul.f32 %v1075, %v1088
    %v1100 = vadd.f32 %v1098, %v1099
    %v1101 = vtanh.pop %v1100
    %v1102 = vmul.f32 %v1097, %v1101
    %v1103 = vpack.c.bf16 %v1102, %v1102
    %s1104 = scalar_lea.vmem [#allocation4], 4
    %1105 = vst.msk [vmem:[%s1104] sm:$0x1] %vm296, %v1103
    %v1107 = vsel %vm60, %v1103, 0
    %1109 = vmatprep.subr.bf16.mxu0 0
    %1110 = vmatpush1.bf16.msra.mxu0 0
    %1111 = vmatprep.subr.bf16.mxu0 0
    %1112 = vmatpush1.bf16.msra.mxu0 0
    %1113 = vmatprep.subr.bf16.mxu0 0
    %1114 = vmatpush1.bf16.msra.mxu0 0
    %1115 = vmatprep.subr.bf16.mxu0 0
    %1116 = vmatpush1.bf16.msra.mxu0 0
    %1117 = vmatprep.subr.bf16.mxu0 0
    %1118 = vmatpush1.bf16.msra.mxu0 0
    %1119 = vmatprep.subr.bf16.mxu0 0
    %1120 = vmatpush1.bf16.msra.mxu0 0
    %1121 = vmatprep.subr.bf16.mxu0 0
    %1122 = vmatpush1.bf16.msra.mxu0 %v57
    %1123 = vmatprep.subr.bf16.mxu0 0
    %1124 = vmatpush1.bf16.msra.mxu0 %v56
    %1125 = vmatprep.subr.bf16.mxu0 0
    %1126 = vmatpush2.bf16.msra.mxu0 0
    %1127 = vmatprep.subr.bf16.mxu0 0
    %1128 = vmatpush2.bf16.msra.mxu0 0
    %1129 = vmatprep.subr.bf16.mxu0 0
    %1130 = vmatpush2.bf16.msra.mxu0 0
    %1131 = vmatprep.subr.bf16.mxu0 0
    %1132 = vmatpush2.bf16.msra.mxu0 0
    %1133 = vmatprep.subr.bf16.mxu0 0
    %1134 = vmatpush2.bf16.msra.mxu0 0
    %1135 = vmatprep.subr.bf16.mxu0 0
    %1136 = vmatpush2.bf16.msra.mxu0 0
    %1137 = vmatprep.subr.bf16.mxu0 0
    %1138 = vmatpush2.bf16.msra.mxu0 0
    %1139 = vmatprep.subr.bf16.mxu0 0
    %1140 = vmatpush2.bf16.msra.mxu0 0
    %1141 = vmatprep.mubr.bf16.mxu0 0
    %1142 = vmatmul.mubr.bf16.gmra.mxu0 %v1107
    %v1143 = vpop.f32.mrf.mxu0
    %v1144 = vadd.f32 0.0, %v1143
    %v1145 = vpop.f32.mrf.mxu0
    %v1146 = vpop.f32.mrf.mxu0
    %v1147 = vpop.f32.mrf.mxu0
    %1148 = vdwg.mxu0
    %1149 = vmatprep.subr.bf16.mxu0 0
    %1150 = vmatpush1.bf16.msra.mxu0 0
    %1151 = vmatprep.subr.bf16.mxu0 0
    %1152 = vmatpush1.bf16.msra.mxu0 0
    %1153 = vmatprep.subr.bf16.mxu0 0
    %1154 = vmatpush1.bf16.msra.mxu0 0
    %1155 = vmatprep.subr.bf16.mxu0 0
    %1156 = vmatpush1.bf16.msra.mxu0 0
    %1157 = vmatprep.subr.bf16.mxu0 0
    %1158 = vmatpush1.bf16.msra.mxu0 0
    %1159 = vmatprep.subr.bf16.mxu0 0
    %1160 = vmatpush1.bf16.msra.mxu0 0
    %1161 = vmatprep.subr.bf16.mxu0 0
    %1162 = vmatpush1.bf16.msra.mxu0 %v113
    %1163 = vmatprep.subr.bf16.mxu0 0
    %1164 = vmatpush1.bf16.msra.mxu0 %v112
    %1165 = vmatprep.subr.bf16.mxu0 0
    %1166 = vmatpush2.bf16.msra.mxu0 0
    %1167 = vmatprep.subr.bf16.mxu0 0
    %1168 = vmatpush2.bf16.msra.mxu0 0
    %1169 = vmatprep.subr.bf16.mxu0 0
    %1170 = vmatpush2.bf16.msra.mxu0 0
    %1171 = vmatprep.subr.bf16.mxu0 0
    %1172 = vmatpush2.bf16.msra.mxu0 0
    %1173 = vmatprep.subr.bf16.mxu0 0
    %1174 = vmatpush2.bf16.msra.mxu0 0
    %1175 = vmatprep.subr.bf16.mxu0 0
    %1176 = vmatpush2.bf16.msra.mxu0 0
    %1177 = vmatprep.subr.bf16.mxu0 0
    %1178 = vmatpush2.bf16.msra.mxu0 0
    %1179 = vmatprep.subr.bf16.mxu0 0
    %1180 = vmatpush2.bf16.msra.mxu0 0
    %1181 = vmatprep.mubr.bf16.mxu0 0
    %1182 = vmatmul.mubr.bf16.gmra.mxu0 %v1107
    %v1183 = vpop.f32.mrf.mxu0
    %v1184 = vadd.f32 0.0, %v1183
    %v1185 = vpop.f32.mrf.mxu0
    %v1186 = vpop.f32.mrf.mxu0
    %v1187 = vpop.f32.mrf.mxu0
    %1188 = vdwg.mxu0
    %1189 = vmatprep.subr.bf16.mxu0 0
    %1190 = vmatpush1.bf16.msra.mxu0 0
    %1191 = vmatprep.subr.bf16.mxu0 0
    %1192 = vmatpush1.bf16.msra.mxu0 0
    %1193 = vmatprep.subr.bf16.mxu0 0
    %1194 = vmatpush1.bf16.msra.mxu0 0
    %1195 = vmatprep.subr.bf16.mxu0 0
    %1196 = vmatpush1.bf16.msra.mxu0 0
    %1197 = vmatprep.subr.bf16.mxu0 0
    %1198 = vmatpush1.bf16.msra.mxu0 0
    %1199 = vmatprep.subr.bf16.mxu0 0
    %1200 = vmatpush1.bf16.msra.mxu0 0
    %1201 = vmatprep.subr.bf16.mxu0 0
    %1202 = vmatpush1.bf16.msra.mxu0 %v165
    %1203 = vmatprep.subr.bf16.mxu0 0
    %1204 = vmatpush1.bf16.msra.mxu0 %v164
    %1205 = vmatprep.subr.bf16.mxu0 0
    %1206 = vmatpush2.bf16.msra.mxu0 0
    %1207 = vmatprep.subr.bf16.mxu0 0
    %1208 = vmatpush2.bf16.msra.mxu0 0
    %1209 = vmatprep.subr.bf16.mxu0 0
    %1210 = vmatpush2.bf16.msra.mxu0 0
    %1211 = vmatprep.subr.bf16.mxu0 0
    %1212 = vmatpush2.bf16.msra.mxu0 0
    %1213 = vmatprep.subr.bf16.mxu0 0
    %1214 = vmatpush2.bf16.msra.mxu0 0
    %1215 = vmatprep.subr.bf16.mxu0 0
    %1216 = vmatpush2.bf16.msra.mxu0 0
    %1217 = vmatprep.subr.bf16.mxu0 0
    %1218 = vmatpush2.bf16.msra.mxu0 0
    %1219 = vmatprep.subr.bf16.mxu0 0
    %1220 = vmatpush2.bf16.msra.mxu0 0
    %1221 = vmatprep.mubr.bf16.mxu0 0
    %1222 = vmatmul.mubr.bf16.gmra.mxu0 %v1107
    %v1223 = vpop.f32.mrf.mxu0
    %v1224 = vadd.f32 0.0, %v1223
    %v1225 = vpop.f32.mrf.mxu0
    %v1226 = vpop.f32.mrf.mxu0
    %v1227 = vpop.f32.mrf.mxu0
    %1228 = vdwg.mxu0
    %1229 = vmatprep.subr.bf16.mxu0 0
    %1230 = vmatpush1.bf16.msra.mxu0 0
    %1231 = vmatprep.subr.bf16.mxu0 0
    %1232 = vmatpush1.bf16.msra.mxu0 0
    %1233 = vmatprep.subr.bf16.mxu0 0
    %1234 = vmatpush1.bf16.msra.mxu0 0
    %1235 = vmatprep.subr.bf16.mxu0 0
    %1236 = vmatpush1.bf16.msra.mxu0 0
    %1237 = vmatprep.subr.bf16.mxu0 0
    %1238 = vmatpush1.bf16.msra.mxu0 0
    %1239 = vmatprep.subr.bf16.mxu0 0
    %1240 = vmatpush1.bf16.msra.mxu0 0
    %1241 = vmatprep.subr.bf16.mxu0 0
    %1242 = vmatpush1.bf16.msra.mxu0 %v217
    %1243 = vmatprep.subr.bf16.mxu0 0
    %1244 = vmatpush1.bf16.msra.mxu0 %v216
    %1245 = vmatprep.subr.bf16.mxu0 0
    %1246 = vmatpush2.bf16.msra.mxu0 0
    %1247 = vmatprep.subr.bf16.mxu0 0
    %1248 = vmatpush2.bf16.msra.mxu0 0
    %1249 = vmatprep.subr.bf16.mxu0 0
    %1250 = vmatpush2.bf16.msra.mxu0 0
    %1251 = vmatprep.subr.bf16.mxu0 0
    %1252 = vmatpush2.bf16.msra.mxu0 0
    %1253 = vmatprep.subr.bf16.mxu0 0
    %1254 = vmatpush2.bf16.msra.mxu0 0
    %1255 = vmatprep.subr.bf16.mxu0 0
    %1256 = vmatpush2.bf16.msra.mxu0 0
    %1257 = vmatprep.subr.bf16.mxu0 0
    %1258 = vmatpush2.bf16.msra.mxu0 0
    %1259 = vmatprep.subr.bf16.mxu0 0
    %1260 = vmatpush2.bf16.msra.mxu0 0
    %1261 = vmatprep.mubr.bf16.mxu0 0
    %1262 = vmatmul.mubr.bf16.gmra.mxu0 %v1107
    %v1263 = vpop.f32.mrf.mxu0
    %v1264 = vadd.f32 0.0, %v1263
    %v1265 = vpop.f32.mrf.mxu0
    %v1266 = vpop.f32.mrf.mxu0
    %v1267 = vpop.f32.mrf.mxu0
    %1268 = vdwg.mxu0
    %s1269 = scalar_lea.vmem %s0, 10
    %v1270 = vld [vmem:[%s1269] sm:$0x3]
    %v1271 = vadd.f32 %v1270, %v1144
    %v1272 = vxor.u32 %v1271, 2147483648
    %v1273 = vmul.f32 %v1272, 1.442695
    %v1274 = vpow.pop %v1273
    %v1275 = vadd.f32 %v1274, 1.0
    %v1276 = vrcp.pop %v1275
    %v1277 = vmul.f32 1.0, %v1276
    %s1278 = scalar_lea.vmem %s0, 26
    %v1279 = vld [vmem:[%s1278] sm:$0x3]
    %v1280 = vadd.f32 %v1279, %v1184
    %v1281 = vxor.u32 %v1280, 2147483648
    %v1282 = vmul.f32 %v1281, 1.442695
    %v1283 = vpow.pop %v1282
    %v1284 = vadd.f32 %v1283, 1.0
    %v1285 = vrcp.pop %v1284
    %v1286 = vmul.f32 1.0, %v1285
    %s1287 = scalar_lea.vmem %s0, 42
    %v1288 = vld [vmem:[%s1287] sm:$0x3]
    %v1289 = vadd.f32 %v1288, %v1224
    %v1290 = vtanh.pop %v1289
    %s1291 = scalar_lea.vmem %s0, 58
    %v1292 = vld [vmem:[%s1291] sm:$0x3]
    %v1293 = vadd.f32 %v1292, %v1264
    %v1294 = vxor.u32 %v1293, 2147483648
    %v1295 = vmul.f32 %v1294, 1.442695
    %v1296 = vpow.pop %v1295
    %v1297 = vadd.f32 %v1296, 1.0
    %v1298 = vrcp.pop %v1297
    %v1299 = vmul.f32 1.0, %v1298
    %v1300 = vmul.f32 %v1286, %v1100
    %v1301 = vmul.f32 %v1277, %v1290
    %v1302 = vadd.f32 %v1300, %v1301
    %v1303 = vtanh.pop %v1302
    %v1304 = vmul.f32 %v1299, %v1303
    %v1305 = vpack.c.bf16 %v1304, %v1304
    %s1306 = scalar_lea.vmem [#allocation4], 5
    %1307 = vst.msk [vmem:[%s1306] sm:$0x1] %vm296, %v1305
    %v1309 = vsel %vm60, %v1305, 0
    %1311 = vmatprep.subr.bf16.mxu0 0
    %1312 = vmatpush1.bf16.msra.mxu0 0
    %1313 = vmatprep.subr.bf16.mxu0 0
    %1314 = vmatpush1.bf16.msra.mxu0 0
    %1315 = vmatprep.subr.bf16.mxu0 0
    %1316 = vmatpush1.bf16.msra.mxu0 0
    %1317 = vmatprep.subr.bf16.mxu0 0
    %1318 = vmatpush1.bf16.msra.mxu0 0
    %1319 = vmatprep.subr.bf16.mxu0 0
    %1320 = vmatpush1.bf16.msra.mxu0 0
    %1321 = vmatprep.subr.bf16.mxu0 0
    %1322 = vmatpush1.bf16.msra.mxu0 0
    %1323 = vmatprep.subr.bf16.mxu0 0
    %1324 = vmatpush1.bf16.msra.mxu0 %v57
    %1325 = vmatprep.subr.bf16.mxu0 0
    %1326 = vmatpush1.bf16.msra.mxu0 %v56
    %1327 = vmatprep.subr.bf16.mxu0 0
    %1328 = vmatpush2.bf16.msra.mxu0 0
    %1329 = vmatprep.subr.bf16.mxu0 0
    %1330 = vmatpush2.bf16.msra.mxu0 0
    %1331 = vmatprep.subr.bf16.mxu0 0
    %1332 = vmatpush2.bf16.msra.mxu0 0
    %1333 = vmatprep.subr.bf16.mxu0 0
    %1334 = vmatpush2.bf16.msra.mxu0 0
    %1335 = vmatprep.subr.bf16.mxu0 0
    %1336 = vmatpush2.bf16.msra.mxu0 0
    %1337 = vmatprep.subr.bf16.mxu0 0
    %1338 = vmatpush2.bf16.msra.mxu0 0
    %1339 = vmatprep.subr.bf16.mxu0 0
    %1340 = vmatpush2.bf16.msra.mxu0 0
    %1341 = vmatprep.subr.bf16.mxu0 0
    %1342 = vmatpush2.bf16.msra.mxu0 0
    %1343 = vmatprep.mubr.bf16.mxu0 0
    %1344 = vmatmul.mubr.bf16.gmra.mxu0 %v1309
    %v1345 = vpop.f32.mrf.mxu0
    %v1346 = vadd.f32 0.0, %v1345
    %v1347 = vpop.f32.mrf.mxu0
    %v1348 = vpop.f32.mrf.mxu0
    %v1349 = vpop.f32.mrf.mxu0
    %1350 = vdwg.mxu0
    %1351 = vmatprep.subr.bf16.mxu0 0
    %1352 = vmatpush1.bf16.msra.mxu0 0
    %1353 = vmatprep.subr.bf16.mxu0 0
    %1354 = vmatpush1.bf16.msra.mxu0 0
    %1355 = vmatprep.subr.bf16.mxu0 0
    %1356 = vmatpush1.bf16.msra.mxu0 0
    %1357 = vmatprep.subr.bf16.mxu0 0
    %1358 = vmatpush1.bf16.msra.mxu0 0
    %1359 = vmatprep.subr.bf16.mxu0 0
    %1360 = vmatpush1.bf16.msra.mxu0 0
    %1361 = vmatprep.subr.bf16.mxu0 0
    %1362 = vmatpush1.bf16.msra.mxu0 0
    %1363 = vmatprep.subr.bf16.mxu0 0
    %1364 = vmatpush1.bf16.msra.mxu0 %v113
    %1365 = vmatprep.subr.bf16.mxu0 0
    %1366 = vmatpush1.bf16.msra.mxu0 %v112
    %1367 = vmatprep.subr.bf16.mxu0 0
    %1368 = vmatpush2.bf16.msra.mxu0 0
    %1369 = vmatprep.subr.bf16.mxu0 0
    %1370 = vmatpush2.bf16.msra.mxu0 0
    %1371 = vmatprep.subr.bf16.mxu0 0
    %1372 = vmatpush2.bf16.msra.mxu0 0
    %1373 = vmatprep.subr.bf16.mxu0 0
    %1374 = vmatpush2.bf16.msra.mxu0 0
    %1375 = vmatprep.subr.bf16.mxu0 0
    %1376 = vmatpush2.bf16.msra.mxu0 0
    %1377 = vmatprep.subr.bf16.mxu0 0
    %1378 = vmatpush2.bf16.msra.mxu0 0
    %1379 = vmatprep.subr.bf16.mxu0 0
    %1380 = vmatpush2.bf16.msra.mxu0 0
    %1381 = vmatprep.subr.bf16.mxu0 0
    %1382 = vmatpush2.bf16.msra.mxu0 0
    %1383 = vmatprep.mubr.bf16.mxu0 0
    %1384 = vmatmul.mubr.bf16.gmra.mxu0 %v1309
    %v1385 = vpop.f32.mrf.mxu0
    %v1386 = vadd.f32 0.0, %v1385
    %v1387 = vpop.f32.mrf.mxu0
    %v1388 = vpop.f32.mrf.mxu0
    %v1389 = vpop.f32.mrf.mxu0
    %1390 = vdwg.mxu0
    %1391 = vmatprep.subr.bf16.mxu0 0
    %1392 = vmatpush1.bf16.msra.mxu0 0
    %1393 = vmatprep.subr.bf16.mxu0 0
    %1394 = vmatpush1.bf16.msra.mxu0 0
    %1395 = vmatprep.subr.bf16.mxu0 0
    %1396 = vmatpush1.bf16.msra.mxu0 0
    %1397 = vmatprep.subr.bf16.mxu0 0
    %1398 = vmatpush1.bf16.msra.mxu0 0
    %1399 = vmatprep.subr.bf16.mxu0 0
    %1400 = vmatpush1.bf16.msra.mxu0 0
    %1401 = vmatprep.subr.bf16.mxu0 0
    %1402 = vmatpush1.bf16.msra.mxu0 0
    %1403 = vmatprep.subr.bf16.mxu0 0
    %1404 = vmatpush1.bf16.msra.mxu0 %v165
    %1405 = vmatprep.subr.bf16.mxu0 0
    %1406 = vmatpush1.bf16.msra.mxu0 %v164
    %1407 = vmatprep.subr.bf16.mxu0 0
    %1408 = vmatpush2.bf16.msra.mxu0 0
    %1409 = vmatprep.subr.bf16.mxu0 0
    %1410 = vmatpush2.bf16.msra.mxu0 0
    %1411 = vmatprep.subr.bf16.mxu0 0
    %1412 = vmatpush2.bf16.msra.mxu0 0
    %1413 = vmatprep.subr.bf16.mxu0 0
    %1414 = vmatpush2.bf16.msra.mxu0 0
    %1415 = vmatprep.subr.bf16.mxu0 0
    %1416 = vmatpush2.bf16.msra.mxu0 0
    %1417 = vmatprep.subr.bf16.mxu0 0
    %1418 = vmatpush2.bf16.msra.mxu0 0
    %1419 = vmatprep.subr.bf16.mxu0 0
    %1420 = vmatpush2.bf16.msra.mxu0 0
    %1421 = vmatprep.subr.bf16.mxu0 0
    %1422 = vmatpush2.bf16.msra.mxu0 0
    %1423 = vmatprep.mubr.bf16.mxu0 0
    %1424 = vmatmul.mubr.bf16.gmra.mxu0 %v1309
    %v1425 = vpop.f32.mrf.mxu0
    %v1426 = vadd.f32 0.0, %v1425
    %v1427 = vpop.f32.mrf.mxu0
    %v1428 = vpop.f32.mrf.mxu0
    %v1429 = vpop.f32.mrf.mxu0
    %1430 = vdwg.mxu0
    %1431 = vmatprep.subr.bf16.mxu0 0
    %1432 = vmatpush1.bf16.msra.mxu0 0
    %1433 = vmatprep.subr.bf16.mxu0 0
    %1434 = vmatpush1.bf16.msra.mxu0 0
    %1435 = vmatprep.subr.bf16.mxu0 0
    %1436 = vmatpush1.bf16.msra.mxu0 0
    %1437 = vmatprep.subr.bf16.mxu0 0
    %1438 = vmatpush1.bf16.msra.mxu0 0
    %1439 = vmatprep.subr.bf16.mxu0 0
    %1440 = vmatpush1.bf16.msra.mxu0 0
    %1441 = vmatprep.subr.bf16.mxu0 0
    %1442 = vmatpush1.bf16.msra.mxu0 0
    %1443 = vmatprep.subr.bf16.mxu0 0
    %1444 = vmatpush1.bf16.msra.mxu0 %v217
    %1445 = vmatprep.subr.bf16.mxu0 0
    %1446 = vmatpush1.bf16.msra.mxu0 %v216
    %1447 = vmatprep.subr.bf16.mxu0 0
    %1448 = vmatpush2.bf16.msra.mxu0 0
    %1449 = vmatprep.subr.bf16.mxu0 0
    %1450 = vmatpush2.bf16.msra.mxu0 0
    %1451 = vmatprep.subr.bf16.mxu0 0
    %1452 = vmatpush2.bf16.msra.mxu0 0
    %1453 = vmatprep.subr.bf16.mxu0 0
    %1454 = vmatpush2.bf16.msra.mxu0 0
    %1455 = vmatprep.subr.bf16.mxu0 0
    %1456 = vmatpush2.bf16.msra.mxu0 0
    %1457 = vmatprep.subr.bf16.mxu0 0
    %1458 = vmatpush2.bf16.msra.mxu0 0
    %1459 = vmatprep.subr.bf16.mxu0 0
    %1460 = vmatpush2.bf16.msra.mxu0 0
    %1461 = vmatprep.subr.bf16.mxu0 0
    %1462 = vmatpush2.bf16.msra.mxu0 0
    %1463 = vmatprep.mubr.bf16.mxu0 0
    %1464 = vmatmul.mubr.bf16.gmra.mxu0 %v1309
    %v1465 = vpop.f32.mrf.mxu0
    %v1466 = vadd.f32 0.0, %v1465
    %v1467 = vpop.f32.mrf.mxu0
    %v1468 = vpop.f32.mrf.mxu0
    %v1469 = vpop.f32.mrf.mxu0
    %1470 = vdwg.mxu0
    %s1471 = scalar_lea.vmem %s0, 12
    %v1472 = vld [vmem:[%s1471] sm:$0x3]
    %v1473 = vadd.f32 %v1472, %v1346
    %v1474 = vxor.u32 %v1473, 2147483648
    %v1475 = vmul.f32 %v1474, 1.442695
    %v1476 = vpow.pop %v1475
    %v1477 = vadd.f32 %v1476, 1.0
    %v1478 = vrcp.pop %v1477
    %v1479 = vmul.f32 1.0, %v1478
    %s1480 = scalar_lea.vmem %s0, 28
    %v1481 = vld [vmem:[%s1480] sm:$0x3]
    %v1482 = vadd.f32 %v1481, %v1386
    %v1483 = vxor.u32 %v1482, 2147483648
    %v1484 = vmul.f32 %v1483, 1.442695
    %v1485 = vpow.pop %v1484
    %v1486 = vadd.f32 %v1485, 1.0
    %v1487 = vrcp.pop %v1486
    %v1488 = vmul.f32 1.0, %v1487
    %s1489 = scalar_lea.vmem %s0, 44
    %v1490 = vld [vmem:[%s1489] sm:$0x3]
    %v1491 = vadd.f32 %v1490, %v1426
    %v1492 = vtanh.pop %v1491
    %s1493 = scalar_lea.vmem %s0, 60
    %v1494 = vld [vmem:[%s1493] sm:$0x3]
    %v1495 = vadd.f32 %v1494, %v1466
    %v1496 = vxor.u32 %v1495, 2147483648
    %v1497 = vmul.f32 %v1496, 1.442695
    %v1498 = vpow.pop %v1497
    %v1499 = vadd.f32 %v1498, 1.0
    %v1500 = vrcp.pop %v1499
    %v1501 = vmul.f32 1.0, %v1500
    %v1502 = vmul.f32 %v1488, %v1302
    %v1503 = vmul.f32 %v1479, %v1492
    %v1504 = vadd.f32 %v1502, %v1503
    %v1505 = vtanh.pop %v1504
    %v1506 = vmul.f32 %v1501, %v1505
    %v1507 = vpack.c.bf16 %v1506, %v1506
    %s1508 = scalar_lea.vmem [#allocation4], 6
    %1509 = vst.msk [vmem:[%s1508] sm:$0x1] %vm296, %v1507
    %v1511 = vsel %vm60, %v1507, 0
    %1513 = vmatprep.subr.bf16.mxu0 0
    %1514 = vmatpush1.bf16.msra.mxu0 0
    %1515 = vmatprep.subr.bf16.mxu0 0
    %1516 = vmatpush1.bf16.msra.mxu0 0
    %1517 = vmatprep.subr.bf16.mxu0 0
    %1518 = vmatpush1.bf16.msra.mxu0 0
    %1519 = vmatprep.subr.bf16.mxu0 0
    %1520 = vmatpush1.bf16.msra.mxu0 0
    %1521 = vmatprep.subr.bf16.mxu0 0
    %1522 = vmatpush1.bf16.msra.mxu0 0
    %1523 = vmatprep.subr.bf16.mxu0 0
    %1524 = vmatpush1.bf16.msra.mxu0 0
    %1525 = vmatprep.subr.bf16.mxu0 0
    %1526 = vmatpush1.bf16.msra.mxu0 %v57
    %1527 = vmatprep.subr.bf16.mxu0 0
    %1528 = vmatpush1.bf16.msra.mxu0 %v56
    %1529 = vmatprep.subr.bf16.mxu0 0
    %1530 = vmatpush2.bf16.msra.mxu0 0
    %1531 = vmatprep.subr.bf16.mxu0 0
    %1532 = vmatpush2.bf16.msra.mxu0 0
    %1533 = vmatprep.subr.bf16.mxu0 0
    %1534 = vmatpush2.bf16.msra.mxu0 0
    %1535 = vmatprep.subr.bf16.mxu0 0
    %1536 = vmatpush2.bf16.msra.mxu0 0
    %1537 = vmatprep.subr.bf16.mxu0 0
    %1538 = vmatpush2.bf16.msra.mxu0 0
    %1539 = vmatprep.subr.bf16.mxu0 0
    %1540 = vmatpush2.bf16.msra.mxu0 0
    %1541 = vmatprep.subr.bf16.mxu0 0
    %1542 = vmatpush2.bf16.msra.mxu0 0
    %1543 = vmatprep.subr.bf16.mxu0 0
    %1544 = vmatpush2.bf16.msra.mxu0 0
    %1545 = vmatprep.mubr.bf16.mxu0 0
    %1546 = vmatmul.mubr.bf16.gmra.mxu0 %v1511
    %v1547 = vpop.f32.mrf.mxu0
    %v1548 = vadd.f32 0.0, %v1547
    %v1549 = vpop.f32.mrf.mxu0
    %v1550 = vpop.f32.mrf.mxu0
    %v1551 = vpop.f32.mrf.mxu0
    %1552 = vdwg.mxu0
    %1553 = vmatprep.subr.bf16.mxu0 0
    %1554 = vmatpush1.bf16.msra.mxu0 0
    %1555 = vmatprep.subr.bf16.mxu0 0
    %1556 = vmatpush1.bf16.msra.mxu0 0
    %1557 = vmatprep.subr.bf16.mxu0 0
    %1558 = vmatpush1.bf16.msra.mxu0 0
    %1559 = vmatprep.subr.bf16.mxu0 0
    %1560 = vmatpush1.bf16.msra.mxu0 0
    %1561 = vmatprep.subr.bf16.mxu0 0
    %1562 = vmatpush1.bf16.msra.mxu0 0
    %1563 = vmatprep.subr.bf16.mxu0 0
    %1564 = vmatpush1.bf16.msra.mxu0 0
    %1565 = vmatprep.subr.bf16.mxu0 0
    %1566 = vmatpush1.bf16.msra.mxu0 %v113
    %1567 = vmatprep.subr.bf16.mxu0 0
    %1568 = vmatpush1.bf16.msra.mxu0 %v112
    %1569 = vmatprep.subr.bf16.mxu0 0
    %1570 = vmatpush2.bf16.msra.mxu0 0
    %1571 = vmatprep.subr.bf16.mxu0 0
    %1572 = vmatpush2.bf16.msra.mxu0 0
    %1573 = vmatprep.subr.bf16.mxu0 0
    %1574 = vmatpush2.bf16.msra.mxu0 0
    %1575 = vmatprep.subr.bf16.mxu0 0
    %1576 = vmatpush2.bf16.msra.mxu0 0
    %1577 = vmatprep.subr.bf16.mxu0 0
    %1578 = vmatpush2.bf16.msra.mxu0 0
    %1579 = vmatprep.subr.bf16.mxu0 0
    %1580 = vmatpush2.bf16.msra.mxu0 0
    %1581 = vmatprep.subr.bf16.mxu0 0
    %1582 = vmatpush2.bf16.msra.mxu0 0
    %1583 = vmatprep.subr.bf16.mxu0 0
    %1584 = vmatpush2.bf16.msra.mxu0 0
    %1585 = vmatprep.mubr.bf16.mxu0 0
    %1586 = vmatmul.mubr.bf16.gmra.mxu0 %v1511
    %v1587 = vpop.f32.mrf.mxu0
    %v1588 = vadd.f32 0.0, %v1587
    %v1589 = vpop.f32.mrf.mxu0
    %v1590 = vpop.f32.mrf.mxu0
    %v1591 = vpop.f32.mrf.mxu0
    %1592 = vdwg.mxu0
    %1593 = vmatprep.subr.bf16.mxu0 0
    %1594 = vmatpush1.bf16.msra.mxu0 0
    %1595 = vmatprep.subr.bf16.mxu0 0
    %1596 = vmatpush1.bf16.msra.mxu0 0
    %1597 = vmatprep.subr.bf16.mxu0 0
    %1598 = vmatpush1.bf16.msra.mxu0 0
    %1599 = vmatprep.subr.bf16.mxu0 0
    %1600 = vmatpush1.bf16.msra.mxu0 0
    %1601 = vmatprep.subr.bf16.mxu0 0
    %1602 = vmatpush1.bf16.msra.mxu0 0
    %1603 = vmatprep.subr.bf16.mxu0 0
    %1604 = vmatpush1.bf16.msra.mxu0 0
    %1605 = vmatprep.subr.bf16.mxu0 0
    %1606 = vmatpush1.bf16.msra.mxu0 %v165
    %1607 = vmatprep.subr.bf16.mxu0 0
    %1608 = vmatpush1.bf16.msra.mxu0 %v164
    %1609 = vmatprep.subr.bf16.mxu0 0
    %1610 = vmatpush2.bf16.msra.mxu0 0
    %1611 = vmatprep.subr.bf16.mxu0 0
    %1612 = vmatpush2.bf16.msra.mxu0 0
    %1613 = vmatprep.subr.bf16.mxu0 0
    %1614 = vmatpush2.bf16.msra.mxu0 0
    %1615 = vmatprep.subr.bf16.mxu0 0
    %1616 = vmatpush2.bf16.msra.mxu0 0
    %1617 = vmatprep.subr.bf16.mxu0 0
    %1618 = vmatpush2.bf16.msra.mxu0 0
    %1619 = vmatprep.subr.bf16.mxu0 0
    %1620 = vmatpush2.bf16.msra.mxu0 0
    %1621 = vmatprep.subr.bf16.mxu0 0
    %1622 = vmatpush2.bf16.msra.mxu0 0
    %1623 = vmatprep.subr.bf16.mxu0 0
    %1624 = vmatpush2.bf16.msra.mxu0 0
    %1625 = vmatprep.mubr.bf16.mxu0 0
    %1626 = vmatmul.mubr.bf16.gmra.mxu0 %v1511
    %v1627 = vpop.f32.mrf.mxu0
    %v1628 = vadd.f32 0.0, %v1627
    %v1629 = vpop.f32.mrf.mxu0
    %v1630 = vpop.f32.mrf.mxu0
    %v1631 = vpop.f32.mrf.mxu0
    %1632 = vdwg.mxu0
    %1633 = vmatprep.subr.bf16.mxu0 0
    %1634 = vmatpush1.bf16.msra.mxu0 0
    %1635 = vmatprep.subr.bf16.mxu0 0
    %1636 = vmatpush1.bf16.msra.mxu0 0
    %1637 = vmatprep.subr.bf16.mxu0 0
    %1638 = vmatpush1.bf16.msra.mxu0 0
    %1639 = vmatprep.subr.bf16.mxu0 0
    %1640 = vmatpush1.bf16.msra.mxu0 0
    %1641 = vmatprep.subr.bf16.mxu0 0
    %1642 = vmatpush1.bf16.msra.mxu0 0
    %1643 = vmatprep.subr.bf16.mxu0 0
    %1644 = vmatpush1.bf16.msra.mxu0 0
    %1645 = vmatprep.subr.bf16.mxu0 0
    %1646 = vmatpush1.bf16.msra.mxu0 %v217
    %1647 = vmatprep.subr.bf16.mxu0 0
    %1648 = vmatpush1.bf16.msra.mxu0 %v216
    %1649 = vmatprep.subr.bf16.mxu0 0
    %1650 = vmatpush2.bf16.msra.mxu0 0
    %1651 = vmatprep.subr.bf16.mxu0 0
    %1652 = vmatpush2.bf16.msra.mxu0 0
    %1653 = vmatprep.subr.bf16.mxu0 0
    %1654 = vmatpush2.bf16.msra.mxu0 0
    %1655 = vmatprep.subr.bf16.mxu0 0
    %1656 = vmatpush2.bf16.msra.mxu0 0
    %1657 = vmatprep.subr.bf16.mxu0 0
    %1658 = vmatpush2.bf16.msra.mxu0 0
    %1659 = vmatprep.subr.bf16.mxu0 0
    %1660 = vmatpush2.bf16.msra.mxu0 0
    %1661 = vmatprep.subr.bf16.mxu0 0
    %1662 = vmatpush2.bf16.msra.mxu0 0
    %1663 = vmatprep.subr.bf16.mxu0 0
    %1664 = vmatpush2.bf16.msra.mxu0 0
    %1665 = vmatprep.mubr.bf16.mxu0 0
    %1666 = vmatmul.mubr.bf16.gmra.mxu0 %v1511
    %v1667 = vpop.f32.mrf.mxu0
    %v1668 = vadd.f32 0.0, %v1667
    %v1669 = vpop.f32.mrf.mxu0
    %v1670 = vpop.f32.mrf.mxu0
    %v1671 = vpop.f32.mrf.mxu0
    %1672 = vdwg.mxu0
    %s1673 = scalar_lea.vmem %s0, 14
    %v1674 = vld [vmem:[%s1673] sm:$0x3]
    %v1675 = vadd.f32 %v1674, %v1548
    %v1676 = vxor.u32 %v1675, 2147483648
    %v1677 = vmul.f32 %v1676, 1.442695
    %v1678 = vpow.pop %v1677
    %v1679 = vadd.f32 %v1678, 1.0
    %v1680 = vrcp.pop %v1679
    %v1681 = vmul.f32 1.0, %v1680
    %s1682 = scalar_lea.vmem %s0, 30
    %v1683 = vld [vmem:[%s1682] sm:$0x3]
    %v1684 = vadd.f32 %v1683, %v1588
    %v1685 = vxor.u32 %v1684, 2147483648
    %v1686 = vmul.f32 %v1685, 1.442695
    %v1687 = vpow.pop %v1686
    %v1688 = vadd.f32 %v1687, 1.0
    %v1689 = vrcp.pop %v1688
    %v1690 = vmul.f32 1.0, %v1689
    %s1691 = scalar_lea.vmem %s0, 46
    %v1692 = vld [vmem:[%s1691] sm:$0x3]
    %v1693 = vadd.f32 %v1692, %v1628
    %v1694 = vtanh.pop %v1693
    %s1695 = scalar_lea.vmem %s0, 62
    %v1696 = vld [vmem:[%s1695] sm:$0x3]
    %v1697 = vadd.f32 %v1696, %v1668
    %v1698 = vxor.u32 %v1697, 2147483648
    %v1699 = vmul.f32 %v1698, 1.442695
    %v1700 = vpow.pop %v1699
    %v1701 = vadd.f32 %v1700, 1.0
    %v1702 = vrcp.pop %v1701
    %v1703 = vmul.f32 1.0, %v1702
    %v1704 = vmul.f32 %v1690, %v1504
    %v1705 = vmul.f32 %v1681, %v1694
    %v1706 = vadd.f32 %v1704, %v1705
    %v1707 = vtanh.pop %v1706
    %v1708 = vmul.f32 %v1703, %v1707
    %v1709 = vpack.c.bf16 %v1708, %v1708
    %s1710 = scalar_lea.vmem [#allocation4], 7
    %1711 = vst.msk [vmem:[%s1710] sm:$0x1] %vm296, %v1709
    %1712 = vst.msk [vmem:[#allocation2] sm:$0x1] %vm296, %v1709
    %vm1713 = vcmask 254976
    %1714 = vst.msk [vmem:[#allocation3] sm:$0x3] %vm1713, %v1706
    %v1715 = vld [vmem:[#allocation4] sm:$0x1]
    %v1716 = vld [vmem:[#allocation4 + $0x1] sm:$0x1]
    %v1717 = vld [vmem:[#allocation4 + $0x2] sm:$0x1]
    %v1718 = vld [vmem:[#allocation4 + $0x3] sm:$0x1]
    %v1719 = vld [vmem:[#allocation4 + $0x4] sm:$0x1]
    %v1720 = vld [vmem:[#allocation4 + $0x5] sm:$0x1]
    %v1721 = vld [vmem:[#allocation4 + $0x6] sm:$0x1]
    %v1722 = vld [vmem:[#allocation4 + $0x7] sm:$0x1]
    %v1723 = vld [vmem:[%s2] sm:$0xf]
    %v1724 = vld [vmem:[%s2 + $0x4] sm:$0xf]
    %v1725 = vld [vmem:[%s2 + $0x8] sm:$0xf]
    %v1726 = vld [vmem:[%s2 + $0xc] sm:$0xf]
    %v1727 = vld [vmem:[%s3] sm:$0x1]
    %v1729 = vlaneseq
    %v1730 = vshrl.u32 %v1729, 7
    %v1731 = vsub.s32 0, %v1730
    %v1732 = vrot.slane %v1727, %v1731
    %v1742 = vcombine.low %v1715, %v1716
    %v1743 = vcombine.low %v1717, %v1718
    %v1744 = vcombine.low %v1719, %v1720
    %v1745 = vcombine.low %v1721, %v1722
    %v1747 = vunpack.c.l.s4 1966171168
    %v1748 = vunpack.c.0.s8 %v1747
    %v1749 = vlaneseq
    %v1750 = vshrl.u32 %v1749, 7
    %v1751 = vsub.s32 %v1748, %v1750
    %v1752 = vrot.slane %v1742, %v1751
    %v1754 = vunpack.c.l.s4 1966171168
    %v1755 = vunpack.c.0.s8 %v1754
    %v1756 = vlaneseq
    %v1757 = vshrl.u32 %v1756, 7
    %v1758 = vsub.s32 %v1755, %v1757
    %v1759 = vrot.slane %v1743, %v1758
    %v1761 = vunpack.c.l.s4 1966171168
    %v1762 = vunpack.c.0.s8 %v1761
    %v1763 = vlaneseq
    %v1764 = vshrl.u32 %v1763, 7
    %v1765 = vsub.s32 %v1762, %v1764
    %v1766 = vrot.slane %v1744, %v1765
    %v1768 = vunpack.c.l.s4 1966171168
    %v1769 = vunpack.c.0.s8 %v1768
    %v1770 = vlaneseq
    %v1771 = vshrl.u32 %v1770, 7
    %v1772 = vsub.s32 %v1769, %v1771
    %v1773 = vrot.slane %v1745, %v1772
    %v1774 = vcombine.low %v1752, %v1759
    %v1775 = vcombine.low %v1766, %v1773
    %v1777 = vunpack.c.l.s4 1966171168
    %v1778 = vunpack.c.0.s8 %v1777
    %v1779 = vlaneseq
    %v1780 = vshrl.u32 %v1779, 7
    %v1781 = vsub.s32 %v1778, %v1780
    %v1782 = vrot.slane %v1774, %v1781
    %v1784 = vunpack.c.l.s4 1966171168
    %v1785 = vunpack.c.0.s8 %v1784
    %v1786 = vlaneseq
    %v1787 = vshrl.u32 %v1786, 7
    %v1788 = vsub.s32 %v1785, %v1787
    %v1789 = vrot.slane %v1775, %v1788
    %v1790 = vcombine.low %v1782, %v1789
    %v1795 = vunpack.c.l.b16 %v1723
    %v1796 = vunpack.c.l.b16 %v1724
    %v1797 = vunpack.c.l.b16 %v1725
    %v1798 = vunpack.c.l.b16 %v1726
    %v1799 = vpack.c.b16 %v1796, %v1795
    %v1800 = vpack.c.b16 %v1798, %v1797
    %v1804 = vsel %vm60, %v1790, 0
    %1806 = vmatprep.subr.bf16.mxu0 0
    %1807 = vmatpush1.bf16.msra.mxu0 0
    %1808 = vmatprep.subr.bf16.mxu0 0
    %1809 = vmatpush1.bf16.msra.mxu0 0
    %1810 = vmatprep.subr.bf16.mxu0 0
    %1811 = vmatpush1.bf16.msra.mxu0 0
    %1812 = vmatprep.subr.bf16.mxu0 0
    %1813 = vmatpush1.bf16.msra.mxu0 0
    %1814 = vmatprep.subr.bf16.mxu0 0
    %1815 = vmatpush1.bf16.msra.mxu0 0
    %1816 = vmatprep.subr.bf16.mxu0 0
    %1817 = vmatpush1.bf16.msra.mxu0 0
    %1818 = vmatprep.subr.bf16.mxu0 0
    %1819 = vmatpush1.bf16.msra.mxu0 %v1800
    %1820 = vmatprep.subr.bf16.mxu0 0
    %1821 = vmatpush1.bf16.msra.mxu0 %v1799
    %1822 = vmatprep.subr.bf16.mxu0 0
    %1823 = vmatpush2.bf16.msra.mxu0 0
    %1824 = vmatprep.subr.bf16.mxu0 0
    %1825 = vmatpush2.bf16.msra.mxu0 0
    %1826 = vmatprep.subr.bf16.mxu0 0
    %1827 = vmatpush2.bf16.msra.mxu0 0
    %1828 = vmatprep.subr.bf16.mxu0 0
    %1829 = vmatpush2.bf16.msra.mxu0 0
    %1830 = vmatprep.subr.bf16.mxu0 0
    %1831 = vmatpush2.bf16.msra.mxu0 0
    %1832 = vmatprep.subr.bf16.mxu0 0
    %1833 = vmatpush2.bf16.msra.mxu0 0
    %1834 = vmatprep.subr.bf16.mxu0 0
    %1835 = vmatpush2.bf16.msra.mxu0 0
    %1836 = vmatprep.subr.bf16.mxu0 0
    %1837 = vmatpush2.bf16.msra.mxu0 0
    %1838 = vmatprep.mubr.bf16.mxu0 0
    %1839 = vmatmul.mubr.bf16.gmra.mxu0 %v1804
    %v1840 = vpop.f32.mrf.mxu0
    %v1841 = vadd.f32 %v1732, %v1840
    %v1842 = vpop.f32.mrf.mxu0
    %v1843 = vpop.f32.mrf.mxu0
    %v1844 = vadd.f32 %v1732, %v1843
    %v1845 = vpop.f32.mrf.mxu0
    %1846 = vdwg.mxu0
    %v1849 = vcombine.high %v1841, %v1841
    %v1851 = vunpack.c.l.s4 1983009808
    %v1852 = vunpack.c.0.s8 %v1851
    %v1853 = vlaneseq
    %v1854 = vshrl.u32 %v1853, 7
    %v1855 = vsub.s32 %v1852, %v1854
    %v1856 = vrot.slane %v1841, %v1855
    %v1858 = vunpack.c.l.s4 1983009808
    %v1859 = vunpack.c.0.s8 %v1858
    %v1860 = vlaneseq
    %v1861 = vshrl.u32 %v1860, 7
    %v1862 = vsub.s32 %v1859, %v1861
    %v1863 = vrot.slane %v1849, %v1862
    %v1864 = vcombine.high %v1856, %v1856
    %v1865 = vcombine.high %v1863, %v1863
    %v1866 = vcombine.high %v1844, %v1844
    %v1868 = vunpack.c.l.s4 1983009808
    %v1869 = vunpack.c.0.s8 %v1868
    %v1870 = vlaneseq
    %v1871 = vshrl.u32 %v1870, 7
    %v1872 = vsub.s32 %v1869, %v1871
    %v1873 = vrot.slane %v1844, %v1872
    %v1875 = vunpack.c.l.s4 1983009808
    %v1876 = vunpack.c.0.s8 %v1875
    %v1877 = vlaneseq
    %v1878 = vshrl.u32 %v1877, 7
    %v1879 = vsub.s32 %v1876, %v1878
    %v1880 = vrot.slane %v1866, %v1879
    %v1881 = vcombine.high %v1873, %v1873
    %v1882 = vcombine.high %v1880, %v1880
    %vm1891 = vcmask 58368
    %1892 = vst.msk [vmem:[#allocation5] sm:$0x3] %vm1891, %v1856
    %1893 = vst.msk [vmem:[#allocation5 + $0x2] sm:$0x3] %vm1891, %v1864
    %1894 = vst.msk [vmem:[#allocation5 + $0x4] sm:$0x3] %vm1891, %v1863
    %1895 = vst.msk [vmem:[#allocation5 + $0x6] sm:$0x3] %vm1891, %v1865
    %1896 = vst.msk [vmem:[#allocation5 + $0x8] sm:$0x3] %vm1891, %v1873
    %1897 = vst.msk [vmem:[#allocation5 + $0xa] sm:$0x3] %vm1891, %v1881
    %1898 = vst.msk [vmem:[#allocation5 + $0xc] sm:$0x3] %vm1891, %v1880
    %1899 = vst.msk [vmem:[#allocation5 + $0xe] sm:$0x3] %vm1891, %v1882
    // Predicated region
    $region22: #{lstm_model_forward.7} parent=1 // pred_check
      _
    $region23: #{lstm_model_forward.7} parent=1 // pred_check_branch
      %1901 = sbr.rel (0) target = $region25
    $region24: #{lstm_model_forward.7} parent=1 // pred_region
      %s1903 = ssub.s32 256, 256
      %1904 = vsyncadd [#allocation6], %s1903
      %s1905 = sshll.u32 [#allocation5], 4
      %s1906 = int_to_ptr.vmem [resolvable:$true] %s1905
      %1911 = dma.vmem_to_hbm [thread:$0]  %s1906, 256, %s4, [#allocation6], 32, 32, 2
    $region25: #{lstm_model_forward.7} parent=1 // pred_fallthru
      _
    // Predicated region
    $region26: #{lstm_model_forward.7} parent=1 // pred_check
      _
    $region27: #{lstm_model_forward.7} parent=1 // pred_check_branch
      %1913 = sbr.rel (0) target = $region29
    $region28: #{lstm_model_forward.7} parent=1 // pred_region
      %1914 = dma.done [#allocation6], 256
    $region29: #{lstm_model_forward.7} parent=1 // pred_fallthru
      _
    %1915 = vsyncpa [#allocation6], 1

</llo_original>
